<compile_context>
chip_gen: v7x
topology: tpu7x:2x2x1
jax: 0.10.0
libtpu: 0.0.40
codegen_flags: <defaults>
</compile_context>

<pallas_src>
import functools
import numpy as np

import jax
import jax.numpy as jnp
from jax import lax
from jax.experimental import pallas as pl
from jax.experimental.pallas import tpu as pltpu


# ----------------------------------------------------------------------------
# Spherical-harmonics (degree 4) expressed as:  sh = mono @ C^T
# where mono are 20 monomials in (x, y, z) up to degree 3, and each monomial is
# a product of three factors picked from the base [x, y, z, 1].
# ----------------------------------------------------------------------------
# base index order: 0=x, 1=y, 2=z, 3=1
_MONO_FACTORS = [
    (3, 3, 3),  # 0: 1
    (0, 3, 3),  # 1: x
    (1, 3, 3),  # 2: y
    (2, 3, 3),  # 3: z
    (0, 0, 3),  # 4: x^2
    (1, 1, 3),  # 5: y^2
    (2, 2, 3),  # 6: z^2
    (0, 1, 3),  # 7: xy
    (1, 2, 3),  # 8: yz
    (0, 2, 3),  # 9: xz
    (0, 1, 2),  # 10: xyz
    (0, 0, 0),  # 11: x^3
    (1, 1, 1),  # 12: y^3
    (2, 2, 2),  # 13: z^3
    (0, 0, 1),  # 14: x^2 y
    (0, 0, 2),  # 15: x^2 z
    (0, 1, 1),  # 16: x y^2
    (1, 1, 2),  # 17: y^2 z
    (0, 2, 2),  # 18: x z^2
    (1, 2, 2),  # 19: y z^2
]


def _sh_constants():
    """Selection matrices SA/SB/SC (4, 20) and SH coefficient matrix C (16, 20)."""
    M = len(_MONO_FACTORS)
    sa = np.zeros((4, M), np.float32)
    sb = np.zeros((4, M), np.float32)
    sc = np.zeros((4, M), np.float32)
    for m, (a, b, c) in enumerate(_MONO_FACTORS):
        sa[a, m] = 1.0
        sb[b, m] = 1.0
        sc[c, m] = 1.0

    C = np.zeros((16, M), np.float32)
    C[0, 0] = 0.28209479177387814
    C[1, 2] = -0.48860251190291987
    C[2, 3] = 0.48860251190291987
    C[3, 1] = -0.48860251190291987
    C[4, 7] = 1.0925484305920792
    C[5, 8] = -1.0925484305920792
    C[6, 6] = 0.94617469575755997
    C[6, 0] = -0.31539156525251999
    C[7, 9] = -1.0925484305920792
    C[8, 4] = 0.54627421529603959
    C[8, 5] = -0.54627421529603959
    C[9, 14] = -3.0 * 0.59004358992664352
    C[9, 12] = 0.59004358992664352
    C[10, 10] = 2.8906114426405538
    C[11, 2] = 0.45704579946446572
    C[11, 19] = -5.0 * 0.45704579946446572
    C[12, 13] = 5.0 * 0.3731763325901154
    C[12, 3] = -3.0 * 0.3731763325901154
    C[13, 1] = 0.45704579946446572
    C[13, 18] = -5.0 * 0.45704579946446572
    C[14, 15] = 1.4453057213202769
    C[14, 17] = -1.4453057213202769
    C[15, 11] = -0.59004358992664352
    C[15, 16] = 3.0 * 0.59004358992664352
    return sa, sb, sc, C


_SA_NP, _SB_NP, _SC_NP, _SH_C_NP = _sh_constants()


# ----------------------------------------------------------------------------
# Pallas kernel: fused MLPs + SH encoding + activations
# ----------------------------------------------------------------------------
def _ngp_mlp_kernel(enc_ref, d_ref,
                    w1x_ref, w2x_ref,
                    sa_ref, sb_ref, sc_ref,
                    wsh_ref, wh_ref, wr2_ref, wr3_ref,
                    out_ref):
    f32 = jnp.float32
    bf16 = jnp.bfloat16

    # ---- xyz_encoder network: 32 -> 64 (ReLU) -> 16 (no bias, tcnn FullyFusedMLP)
    enc = enc_ref[...].astype(bf16)                                      # (TN, 32)
    h1 = jnp.maximum(
        jnp.dot(enc, w1x_ref[...], preferred_element_type=f32), 0.0)
    h = jnp.dot(h1.astype(bf16), w2x_ref[...], preferred_element_type=f32)  # (TN, 16)

    # sigmas = TruncExp(h[:, 0]); forward of TruncExp is exp
    sigma = jnp.exp(h[:, 0:1])                                           # (TN, 1)

    # ---- direction normalization: d / ||d||  (elementwise kept in f32)
    d = d_ref[...]                                                       # (TN, 3)
    inv_n = lax.rsqrt(jnp.sum(d * d, axis=-1, keepdims=True))
    dn = d * inv_n
    base = jnp.concatenate([dn, jnp.ones_like(inv_n)], axis=-1)          # (TN, 4)=[x,y,z,1]

    # ---- degree-4 spherical harmonics via monomials.
    # mono[:, m] = base[:, a_m] * base[:, b_m] * base[:, c_m]; the three
    # selections are tiny matmuls so the work lands on the (idle) MXU slot.
    A = jnp.dot(base, sa_ref[...], preferred_element_type=f32)           # (TN, 20)
    B = jnp.dot(base, sb_ref[...], preferred_element_type=f32)
    Cm = jnp.dot(base, sc_ref[...], preferred_element_type=f32)
    mono = (A * B * Cm).astype(bf16)                                     # (TN, 20)

    # ---- rgb_net: 32 -> 64 (ReLU) -> 64 (ReLU) -> 3 (Sigmoid)
    # first layer split: sh-part folded into wsh (= C^T @ wr1[:16]), h-part wh.
    r1 = jnp.maximum(
        jnp.dot(mono, wsh_ref[...], preferred_element_type=f32)
        + jnp.dot(h.astype(bf16), wh_ref[...], preferred_element_type=f32), 0.0)
    r2 = jnp.maximum(
        jnp.dot(r1.astype(bf16), wr2_ref[...], preferred_element_type=f32), 0.0)
    rgb = jax.nn.sigmoid(
        jnp.dot(r2.astype(bf16), wr3_ref[...], preferred_element_type=f32))

    # merged output slab: [sigma | r | g | b]
    out_ref[...] = jnp.concatenate([sigma, rgb], axis=-1)                # (TN, 4)


def _round_up(n, m):
    return ((n + m - 1) // m) * m


def ngp_mlp_pallas(enc, d, weights, tn=2048):
    """enc: (N,32) hash-grid features, d: (N,3) raw directions.

    weights = (w1x, w2x, sa, sb, sc, w_sh, w_h, wr2, wr3) — see _prep_weights.
    """
    N = enc.shape[0]
    tn_eff = min(tn, _round_up(max(N, 8), 8))
    Np = _round_up(N, tn_eff)
    if Np != N:
        enc = jnp.pad(enc, ((0, Np - N), (0, 0)))
        d = jnp.pad(d, ((0, Np - N), (0, 0)), constant_values=1.0)

    w_specs = [pl.BlockSpec(w.shape, lambda i: (0, 0)) for w in weights]
    out = pl.pallas_call(
        _ngp_mlp_kernel,
        out_shape=jax.ShapeDtypeStruct((Np, 4), jnp.float32),
        grid=(Np // tn_eff,),
        in_specs=[pl.BlockSpec((tn_eff, enc.shape[1]), lambda i: (i, 0)),
                  pl.BlockSpec((tn_eff, 3), lambda i: (i, 0))] + w_specs,
        out_specs=pl.BlockSpec((tn_eff, 4), lambda i: (i, 0)),
        compiler_params=pltpu.CompilerParams(
            dimension_semantics=("parallel",)),
    )(enc, d, *weights)
    return out[:N, 0], out[:N, 1:4]


# ----------------------------------------------------------------------------
# Hash-grid encoding (plain-JAX glue; data-dependent gather from a 64 MiB table)
# ----------------------------------------------------------------------------
_PRIMES = (1, 2654435761, 805459861, 3674653429)


def hash_grid_encode(xf, tables, n_min, b, T):
    # TODO(synk): tcnn uses dense (non-hashed) indexing for levels whose grid fits
    # in T; with randomly-initialized tables we hash every level instead.
    N = xf.shape[0]
    L, _, F = tables.shape
    primes = jnp.array(_PRIMES, dtype=jnp.uint32)
    feats = []
    for l in range(L):
        scale = n_min * (b ** l) - 1.0
        pos = xf * scale + 0.5
        floor = jnp.floor(pos)
        frac = (pos - floor).astype(jnp.float32)
        base = floor.astype(jnp.uint32)
        acc = jnp.zeros((N, F), jnp.float32)
        for corner in range(16):                      # 2^4 corners (4-D input)
            bits = [(corner >> dd) & 1 for dd in range(4)]
            coord = base + jnp.array(bits, dtype=jnp.uint32)[None, :]
            idx = coord[:, 0] * primes[0]
            for dd in range(1, 4):
                idx = idx ^ (coord[:, dd] * primes[dd])
            idx = (idx & jnp.uint32(T - 1)).astype(jnp.int32)
            w = jnp.ones((N, 1), jnp.float32)
            for dd in range(4):
                wd = frac[:, dd:dd + 1] if bits[dd] else (1.0 - frac[:, dd:dd + 1])
                w = w * wd
            acc = acc + w * tables[l, idx]
        feats.append(acc)
    return jnp.concatenate(feats, axis=1)             # (N, L*F) = (N, 32)


# ----------------------------------------------------------------------------
# Parameters (deterministic synthetic init, shapes from NGP.__init__)
# ----------------------------------------------------------------------------
def init_ngp(key, scale):
    L, F, log2_T, N_min = 16, 2, 19, 16
    T = 2 ** log2_T
    b = float(np.exp(np.log(2048 * scale / N_min) / (L - 1)))
    ks = jax.random.split(key, 6)

    def dense(k, fan_in, fan_out):
        return (jax.random.normal(k, (fan_in, fan_out), jnp.float32)
                / np.sqrt(fan_in))

    params = dict(
        tables=jax.random.uniform(ks[0], (L, T, F), jnp.float32, -1e-4, 1e-4),
        w1x=dense(ks[1], L * F, 64),   # xyz_encoder hidden
        w2x=dense(ks[2], 64, 16),      # xyz_encoder out (16 dims)
        wr1=dense(ks[3], 32, 64),      # rgb_net hidden 1 (rows 0..15: SH, 16..31: h)
        wr2=dense(ks[4], 64, 64),      # rgb_net hidden 2
        wr3=dense(ks[5], 64, 3),       # rgb_net out
    )
    cfg = dict(scale=scale, L=L, F=F, T=T, N_min=N_min, b=b)
    return params, cfg


def _prep_weights(params):
    """bf16 matmul weights; SH coefficients pre-folded into wr1's first 16 rows."""
    bf16 = jnp.bfloat16
    sa = jnp.asarray(_SA_NP)                     # (4, 20) f32 (exact selection)
    sb = jnp.asarray(_SB_NP)
    sc = jnp.asarray(_SC_NP)
    wr1 = params["wr1"]
    w_sh = (jnp.asarray(_SH_C_NP.T) @ wr1[:16]).astype(bf16)   # (20, 64)
    w_h = wr1[16:].astype(bf16)                                # (16, 64)
    return (params["w1x"].astype(bf16),
            params["w2x"].astype(bf16),
            sa, sb, sc,
            w_sh, w_h,
            params["wr2"].astype(bf16),
            params["wr3"].astype(bf16))


def ngp_forward(cfg, params, x, d, frames):
    """x: (N,3) in [-scale, scale], d: (N,3) directions, frames: (N,)."""
    scale = cfg["scale"]
    # density(): normalize xyz to [0,1], append frame channel -> (N, 4)
    xn = (x - (-scale)) / (scale - (-scale))
    xf = jnp.concatenate([xn, frames[:, None]], axis=1)
    enc = hash_grid_encode(xf, params["tables"], cfg["N_min"], cfg["b"], cfg["T"])
    weights = _prep_weights(params)
    sigmas, rgbs = ngp_mlp_pallas(enc, d, weights)
    return sigmas, rgbs


# ----------------------------------------------------------------------------
if __name__ == "__main__":
    key = jax.random.PRNGKey(0)
    pkey, xkey, dkey, fkey = jax.random.split(key, 4)

    scale = 0.5
    params, cfg = init_ngp(pkey, scale)

    N = 256
    x = jax.random.uniform(xkey, (N, 3), jnp.float32, -scale, scale)
    d = jax.random.normal(dkey, (N, 3), jnp.float32)
    frames = jax.random.uniform(fkey, (N,), jnp.float32)

    fwd = jax.jit(functools.partial(ngp_forward, cfg))
    sigmas, rgbs = fwd(params, x, d, frames)
    jax.block_until_ready((sigmas, rgbs))

    assert sigmas.shape == (N,) and sigmas.dtype == jnp.float32
    assert rgbs.shape == (N, 3) and rgbs.dtype == jnp.float32
    assert bool(jnp.all(jnp.isfinite(sigmas))) and bool(jnp.all(jnp.isfinite(rgbs)))
    assert bool(jnp.all(rgbs >= 0.0)) and bool(jnp.all(rgbs <= 1.0))

    print("KERNEL_OK")
</pallas_src>

<mosaic_0001>
module attributes {stable_mosaic.version = 11 : i64} {
  func.func @_ngp_mlp_kernel(%arg0: i32, %arg1: memref<256x32xf32, #tpu.memory_space<vmem>>, %arg2: memref<256x3xf32, #tpu.memory_space<vmem>>, %arg3: memref<32x64xbf16, #tpu.memory_space<vmem>>, %arg4: memref<64x16xbf16, #tpu.memory_space<vmem>>, %arg5: memref<4x20xf32, #tpu.memory_space<vmem>>, %arg6: memref<4x20xf32, #tpu.memory_space<vmem>>, %arg7: memref<4x20xf32, #tpu.memory_space<vmem>>, %arg8: memref<20x64xbf16, #tpu.memory_space<vmem>>, %arg9: memref<16x64xbf16, #tpu.memory_space<vmem>>, %arg10: memref<64x64xbf16, #tpu.memory_space<vmem>>, %arg11: memref<64x3xbf16, #tpu.memory_space<vmem>>, %arg12: memref<256x4xf32, #tpu.memory_space<vmem>>) attributes {dimension_semantics = [#tpu.dimension_semantics<parallel>], iteration_bounds = array<i64: 1>, scalar_prefetch = 0 : i64, scratch_operands = 0 : i64, tpu.core_type = #tpu.core_type<tc>, window_params = [{transform_indices = @transform_0, window_bounds = array<i64: 256, 32>}, {transform_indices = @transform_1, window_bounds = array<i64: 256, 3>}, {pipeline_mode = #tpu.pipeline_mode<synchronous>, transform_indices = @transform_2, window_bounds = array<i64: 32, 64>}, {pipeline_mode = #tpu.pipeline_mode<synchronous>, transform_indices = @transform_3, window_bounds = array<i64: 64, 16>}, {pipeline_mode = #tpu.pipeline_mode<synchronous>, transform_indices = @transform_4, window_bounds = array<i64: 4, 20>}, {pipeline_mode = #tpu.pipeline_mode<synchronous>, transform_indices = @transform_5, window_bounds = array<i64: 4, 20>}, {pipeline_mode = #tpu.pipeline_mode<synchronous>, transform_indices = @transform_6, window_bounds = array<i64: 4, 20>}, {pipeline_mode = #tpu.pipeline_mode<synchronous>, transform_indices = @transform_7, window_bounds = array<i64: 20, 64>}, {pipeline_mode = #tpu.pipeline_mode<synchronous>, transform_indices = @transform_8, window_bounds = array<i64: 16, 64>}, {pipeline_mode = #tpu.pipeline_mode<synchronous>, transform_indices = @transform_9, window_bounds = array<i64: 64, 64>}, {pipeline_mode = #tpu.pipeline_mode<synchronous>, transform_indices = @transform_10, window_bounds = array<i64: 64, 3>}, {transform_indices = @transform_11, window_bounds = array<i64: 256, 4>}]} {
    %c0 = arith.constant 0 : index
    %c0_0 = arith.constant 0 : index
    %0 = vector.load %arg1[%c0, %c0_0] : memref<256x32xf32, #tpu.memory_space<vmem>>, vector<256x32xf32>
    %1 = arith.truncf %0 : vector<256x32xf32> to vector<256x32xbf16>
    %c0_1 = arith.constant 0 : index
    %c0_2 = arith.constant 0 : index
    %2 = vector.load %arg3[%c0_1, %c0_2] : memref<32x64xbf16, #tpu.memory_space<vmem>>, vector<32x64xbf16>
    %cst = arith.constant dense<0.000000e+00> : vector<256x64xf32>
    %3 = tpu.matmul %1, %2, %cst {dimension_numbers = #tpu.dot_dimension_numbers<[1], [0], [0], [1], [0, 0, 1, 1], [], []>} : vector<256x32xbf16>, vector<32x64xbf16>, vector<256x64xf32> -> vector<256x64xf32>
    %cst_3 = arith.constant 0.000000e+00 : f32
    %4 = vector.broadcast %cst_3 : f32 to vector<256x64xf32>
    %5 = arith.maximumf %3, %4 : vector<256x64xf32>
    %6 = arith.truncf %5 : vector<256x64xf32> to vector<256x64xbf16>
    %c0_4 = arith.constant 0 : index
    %c0_5 = arith.constant 0 : index
    %7 = vector.load %arg4[%c0_4, %c0_5] : memref<64x16xbf16, #tpu.memory_space<vmem>>, vector<64x16xbf16>
    %cst_6 = arith.constant dense<0.000000e+00> : vector<256x16xf32>
    %8 = tpu.matmul %6, %7, %cst_6 {dimension_numbers = #tpu.dot_dimension_numbers<[1], [0], [0], [1], [0, 0, 1, 1], [], []>} : vector<256x64xbf16>, vector<64x16xbf16>, vector<256x16xf32> -> vector<256x16xf32>
    %9 = vector.extract_strided_slice %8 {offsets = [0, 0], sizes = [256, 1], strides = [1, 1]} : vector<256x16xf32> to vector<256x1xf32>
    %10 = math.exp %9 : vector<256x1xf32>
    %c0_7 = arith.constant 0 : index
    %c0_8 = arith.constant 0 : index
    %11 = vector.load %arg2[%c0_7, %c0_8] : memref<256x3xf32, #tpu.memory_space<vmem>>, vector<256x3xf32>
    %12 = arith.mulf %11, %11 : vector<256x3xf32>
    %cst_9 = arith.constant dense<0.000000e+00> : vector<256xf32>
    %13 = vector.multi_reduction <add>, %12, %cst_9 [1] : vector<256x3xf32> to vector<256xf32>
    %14 = vector.shape_cast %13 : vector<256xf32> to vector<256x1xf32>
    %15 = math.rsqrt %14 : vector<256x1xf32>
    %16 = vector.broadcast %15 : vector<256x1xf32> to vector<256x3xf32>
    %17 = arith.mulf %11, %16 : vector<256x3xf32>
    %cst_10 = arith.constant 1.000000e+00 : f32
    %18 = vector.broadcast %cst_10 : f32 to vector<256x1xf32>
    %19 = tpu.concatenate %17, %18 in 1 : vector<256x3xf32>, vector<256x1xf32> -> vector<256x4xf32>
    %c0_11 = arith.constant 0 : index
    %c0_12 = arith.constant 0 : index
    %20 = vector.load %arg5[%c0_11, %c0_12] : memref<4x20xf32, #tpu.memory_space<vmem>>, vector<4x20xf32>
    %cst_13 = arith.constant dense<0.000000e+00> : vector<256x20xf32>
    %21 = tpu.matmul %19, %20, %cst_13 {dimension_numbers = #tpu.dot_dimension_numbers<[1], [0], [0], [1], [0, 0, 1, 1], [], []>} : vector<256x4xf32>, vector<4x20xf32>, vector<256x20xf32> -> vector<256x20xf32>
    %c0_14 = arith.constant 0 : index
    %c0_15 = arith.constant 0 : index
    %22 = vector.load %arg6[%c0_14, %c0_15] : memref<4x20xf32, #tpu.memory_space<vmem>>, vector<4x20xf32>
    %cst_16 = arith.constant dense<0.000000e+00> : vector<256x20xf32>
    %23 = tpu.matmul %19, %22, %cst_16 {dimension_numbers = #tpu.dot_dimension_numbers<[1], [0], [0], [1], [0, 0, 1, 1], [], []>} : vector<256x4xf32>, vector<4x20xf32>, vector<256x20xf32> -> vector<256x20xf32>
    %c0_17 = arith.constant 0 : index
    %c0_18 = arith.constant 0 : index
    %24 = vector.load %arg7[%c0_17, %c0_18] : memref<4x20xf32, #tpu.memory_space<vmem>>, vector<4x20xf32>
    %cst_19 = arith.constant dense<0.000000e+00> : vector<256x20xf32>
    %25 = tpu.matmul %19, %24, %cst_19 {dimension_numbers = #tpu.dot_dimension_numbers<[1], [0], [0], [1], [0, 0, 1, 1], [], []>} : vector<256x4xf32>, vector<4x20xf32>, vector<256x20xf32> -> vector<256x20xf32>
    %26 = arith.mulf %21, %23 : vector<256x20xf32>
    %27 = arith.mulf %26, %25 : vector<256x20xf32>
    %28 = arith.truncf %27 : vector<256x20xf32> to vector<256x20xbf16>
    %c0_20 = arith.constant 0 : index
    %c0_21 = arith.constant 0 : index
    %29 = vector.load %arg8[%c0_20, %c0_21] : memref<20x64xbf16, #tpu.memory_space<vmem>>, vector<20x64xbf16>
    %cst_22 = arith.constant dense<0.000000e+00> : vector<256x64xf32>
    %30 = tpu.matmul %28, %29, %cst_22 {dimension_numbers = #tpu.dot_dimension_numbers<[1], [0], [0], [1], [0, 0, 1, 1], [], []>} : vector<256x20xbf16>, vector<20x64xbf16>, vector<256x64xf32> -> vector<256x64xf32>
    %31 = arith.truncf %8 : vector<256x16xf32> to vector<256x16xbf16>
    %c0_23 = arith.constant 0 : index
    %c0_24 = arith.constant 0 : index
    %32 = vector.load %arg9[%c0_23, %c0_24] : memref<16x64xbf16, #tpu.memory_space<vmem>>, vector<16x64xbf16>
    %cst_25 = arith.constant dense<0.000000e+00> : vector<256x64xf32>
    %33 = tpu.matmul %31, %32, %cst_25 {dimension_numbers = #tpu.dot_dimension_numbers<[1], [0], [0], [1], [0, 0, 1, 1], [], []>} : vector<256x16xbf16>, vector<16x64xbf16>, vector<256x64xf32> -> vector<256x64xf32>
    %34 = arith.addf %30, %33 : vector<256x64xf32>
    %cst_26 = arith.constant 0.000000e+00 : f32
    %35 = vector.broadcast %cst_26 : f32 to vector<256x64xf32>
    %36 = arith.maximumf %34, %35 : vector<256x64xf32>
    %37 = arith.truncf %36 : vector<256x64xf32> to vector<256x64xbf16>
    %c0_27 = arith.constant 0 : index
    %c0_28 = arith.constant 0 : index
    %38 = vector.load %arg10[%c0_27, %c0_28] : memref<64x64xbf16, #tpu.memory_space<vmem>>, vector<64x64xbf16>
    %cst_29 = arith.constant dense<0.000000e+00> : vector<256x64xf32>
    %39 = tpu.matmul %37, %38, %cst_29 {dimension_numbers = #tpu.dot_dimension_numbers<[1], [0], [0], [1], [0, 0, 1, 1], [], []>} : vector<256x64xbf16>, vector<64x64xbf16>, vector<256x64xf32> -> vector<256x64xf32>
    %cst_30 = arith.constant 0.000000e+00 : f32
    %40 = vector.broadcast %cst_30 : f32 to vector<256x64xf32>
    %41 = arith.maximumf %39, %40 : vector<256x64xf32>
    %42 = arith.truncf %41 : vector<256x64xf32> to vector<256x64xbf16>
    %c0_31 = arith.constant 0 : index
    %c0_32 = arith.constant 0 : index
    %43 = vector.load %arg11[%c0_31, %c0_32] : memref<64x3xbf16, #tpu.memory_space<vmem>>, vector<64x3xbf16>
    %cst_33 = arith.constant dense<0.000000e+00> : vector<256x3xf32>
    %44 = tpu.matmul %42, %43, %cst_33 {dimension_numbers = #tpu.dot_dimension_numbers<[1], [0], [0], [1], [0, 0, 1, 1], [], []>} : vector<256x64xbf16>, vector<64x3xbf16>, vector<256x3xf32> -> vector<256x3xf32>
    %45 = arith.negf %44 : vector<256x3xf32>
    %46 = math.exp %45 : vector<256x3xf32>
    %cst_34 = arith.constant 1.000000e+00 : f32
    %47 = vector.broadcast %cst_34 : f32 to vector<256x3xf32>
    %48 = arith.addf %47, %46 : vector<256x3xf32>
    %49 = arith.divf %47, %48 : vector<256x3xf32>
    %50 = tpu.concatenate %10, %49 in 1 : vector<256x1xf32>, vector<256x3xf32> -> vector<256x4xf32>
    %c0_35 = arith.constant 0 : index
    %c0_36 = arith.constant 0 : index
    %51 = vector.load %arg12[%c0_35, %c0_36] : memref<256x4xf32, #tpu.memory_space<vmem>>, vector<256x4xf32>
    tpu.vector_store %arg12[%c0_35, %c0_36], %50 {strides = array<i32>} : memref<256x4xf32, #tpu.memory_space<vmem>>, vector<256x4xf32>,
    return
  }
  func.func @transform_0(%arg0: i32) -> (i32, i32) {
    %c0_i32 = arith.constant 0 : i32
    %c0_i32_0 = arith.constant 0 : i32
    return %arg0, %c0_i32 : i32, i32
  }
  func.func @transform_1(%arg0: i32) -> (i32, i32) {
    %c0_i32 = arith.constant 0 : i32
    %c0_i32_0 = arith.constant 0 : i32
    return %arg0, %c0_i32 : i32, i32
  }
  func.func @transform_2(%arg0: i32) -> (i32, i32) {
    %c0_i32 = arith.constant 0 : i32
    %c0_i32_0 = arith.constant 0 : i32
    %c0_i32_1 = arith.constant 0 : i32
    return %c0_i32, %c0_i32_0 : i32, i32
  }
  func.func @transform_3(%arg0: i32) -> (i32, i32) {
    %c0_i32 = arith.constant 0 : i32
    %c0_i32_0 = arith.constant 0 : i32
    %c0_i32_1 = arith.constant 0 : i32
    return %c0_i32, %c0_i32_0 : i32, i32
  }
  func.func @transform_4(%arg0: i32) -> (i32, i32) {
    %c0_i32 = arith.constant 0 : i32
    %c0_i32_0 = arith.constant 0 : i32
    %c0_i32_1 = arith.constant 0 : i32
    return %c0_i32, %c0_i32_0 : i32, i32
  }
  func.func @transform_5(%arg0: i32) -> (i32, i32) {
    %c0_i32 = arith.constant 0 : i32
    %c0_i32_0 = arith.constant 0 : i32
    %c0_i32_1 = arith.constant 0 : i32
    return %c0_i32, %c0_i32_0 : i32, i32
  }
  func.func @transform_6(%arg0: i32) -> (i32, i32) {
    %c0_i32 = arith.constant 0 : i32
    %c0_i32_0 = arith.constant 0 : i32
    %c0_i32_1 = arith.constant 0 : i32
    return %c0_i32, %c0_i32_0 : i32, i32
  }
  func.func @transform_7(%arg0: i32) -> (i32, i32) {
    %c0_i32 = arith.constant 0 : i32
    %c0_i32_0 = arith.constant 0 : i32
    %c0_i32_1 = arith.constant 0 : i32
    return %c0_i32, %c0_i32_0 : i32, i32
  }
  func.func @transform_8(%arg0: i32) -> (i32, i32) {
    %c0_i32 = arith.constant 0 : i32
    %c0_i32_0 = arith.constant 0 : i32
    %c0_i32_1 = arith.constant 0 : i32
    return %c0_i32, %c0_i32_0 : i32, i32
  }
  func.func @transform_9(%arg0: i32) -> (i32, i32) {
    %c0_i32 = arith.constant 0 : i32
    %c0_i32_0 = arith.constant 0 : i32
    %c0_i32_1 = arith.constant 0 : i32
    return %c0_i32, %c0_i32_0 : i32, i32
  }
  func.func @transform_10(%arg0: i32) -> (i32, i32) {
    %c0_i32 = arith.constant 0 : i32
    %c0_i32_0 = arith.constant 0 : i32
    %c0_i32_1 = arith.constant 0 : i32
    return %c0_i32, %c0_i32_0 : i32, i32
  }
  func.func @transform_11(%arg0: i32) -> (i32, i32) {
    %c0_i32 = arith.constant 0 : i32
    %c0_i32_0 = arith.constant 0 : i32
    return %arg0, %c0_i32 : i32, i32
  }
}

</mosaic_0001>

<llo_original>
// kernel: ngp_forward.1
$region0: #{ngp_forward.1}
  #allocation0 [shape = 'u32[]', space=smem, size = 0x4, offset = 0x4, fixed_abs, tag = 'smem constant byte address 0x4 - core index']
  #allocation1 [shape = 'u32[144,128]{1,0:T(1,128)}', space=vmem, size = 0x12000, scoped, tag = 'internal scratch']
  %s0 = inlined_call_operand.vmem [shape: f32[256,32], index: 0, kind: input, shape index: {}]
  %s1 = inlined_call_operand.vmem [shape: f32[256,3], index: 1, kind: input, shape index: {}]
  %s2 = inlined_call_operand.vmem [shape: bf16[32,64], index: 2, kind: input, shape index: {}]
  %s3 = inlined_call_operand.vmem [shape: bf16[64,16], index: 3, kind: input, shape index: {}]
  %s4 = inlined_call_operand.vmem [shape: f32[4,20], index: 4, kind: input, shape index: {}]
  %s5 = inlined_call_operand.vmem [shape: f32[4,20], index: 5, kind: input, shape index: {}]
  %s6 = inlined_call_operand.vmem [shape: f32[4,20], index: 6, kind: input, shape index: {}]
  %s7 = inlined_call_operand.vmem [shape: bf16[20,64], index: 7, kind: input, shape index: {}]
  %s8 = inlined_call_operand.vmem [shape: bf16[16,64], index: 8, kind: input, shape index: {}]
  %s9 = inlined_call_operand.vmem [shape: bf16[64,64], index: 9, kind: input, shape index: {}]
  %s10 = inlined_call_operand.vmem [shape: bf16[64,3], index: 10, kind: input, shape index: {}]
  %s11 = inlined_call_operand.vmem [shape: f32[256,4], index: 11, kind: output, shape index: {}]
  %s12 = sld [smem:[#allocation0]]
  $region54: #{ngp_forward.1} parent=0
    _
  %s14 = ssub.s32 1, %s12
  %s15 = scalar_select 0, %s14, %s12
  // Predicated region
  $region2: #{ngp_forward.1} parent=0 // pred_check
    _
  $region3: #{ngp_forward.1} parent=0 // pred_check_branch
    %17 = sbr.rel (0) target = $region5
  $region4: #{ngp_forward.1} parent=0 // pred_region
    _
  $region5: #{ngp_forward.1} parent=0 // pred_fallthru
    _
  // Predicated region
  $region6: #{ngp_forward.1} parent=0 // pred_check
    _
  $region7: #{ngp_forward.1} parent=0 // pred_check_branch
    %19 = sbr.rel (0) target = $region9
  $region8: #{ngp_forward.1} parent=0 // pred_region
    _
  $region9: #{ngp_forward.1} parent=0 // pred_fallthru
    _
  // Predicated region
  $region10: #{ngp_forward.1} parent=0 // pred_check
    _
  $region11: #{ngp_forward.1} parent=0 // pred_check_branch
    %21 = sbr.rel (0) target = $region13
  $region12: #{ngp_forward.1} parent=0 // pred_region
    _
  $region13: #{ngp_forward.1} parent=0 // pred_fallthru
    _
  // Predicated region
  $region14: #{ngp_forward.1} parent=0 // pred_check
    _
  $region15: #{ngp_forward.1} parent=0 // pred_check_branch
    %23 = sbr.rel (0) target = $region17
  $region16: #{ngp_forward.1} parent=0 // pred_region
    _
  $region17: #{ngp_forward.1} parent=0 // pred_fallthru
    _
  // Predicated region
  $region18: #{ngp_forward.1} parent=0 // pred_check
    _
  $region19: #{ngp_forward.1} parent=0 // pred_check_branch
    %25 = sbr.rel (0) target = $region21
  $region20: #{ngp_forward.1} parent=0 // pred_region
    _
  $region21: #{ngp_forward.1} parent=0 // pred_fallthru
    _
  // Predicated region
  $region22: #{ngp_forward.1} parent=0 // pred_check
    _
  $region23: #{ngp_forward.1} parent=0 // pred_check_branch
    %27 = sbr.rel (0) target = $region25
  $region24: #{ngp_forward.1} parent=0 // pred_region
    _
  $region25: #{ngp_forward.1} parent=0 // pred_fallthru
    _
  // Predicated region
  $region26: #{ngp_forward.1} parent=0 // pred_check
    _
  $region27: #{ngp_forward.1} parent=0 // pred_check_branch
    %29 = sbr.rel (0) target = $region29
  $region28: #{ngp_forward.1} parent=0 // pred_region
    _
  $region29: #{ngp_forward.1} parent=0 // pred_fallthru
    _
  // Predicated region
  $region30: #{ngp_forward.1} parent=0 // pred_check
    _
  $region31: #{ngp_forward.1} parent=0 // pred_check_branch
    %31 = sbr.rel (0) target = $region33
  $region32: #{ngp_forward.1} parent=0 // pred_region
    _
  $region33: #{ngp_forward.1} parent=0 // pred_fallthru
    _
  // Predicated region
  $region34: #{ngp_forward.1} parent=0 // pred_check
    _
  $region35: #{ngp_forward.1} parent=0 // pred_check_branch
    %33 = sbr.rel (0) target = $region37
  $region36: #{ngp_forward.1} parent=0 // pred_region
    _
  $region37: #{ngp_forward.1} parent=0 // pred_fallthru
    _
  // Predicated region
  $region38: #{ngp_forward.1} parent=0 // pred_check
    _
  $region39: #{ngp_forward.1} parent=0 // pred_check_branch
    %35 = sbr.rel (0) target = $region41
  $region40: #{ngp_forward.1} parent=0 // pred_region
    _
  $region41: #{ngp_forward.1} parent=0 // pred_fallthru
    _
  // Predicated region
  $region42: #{ngp_forward.1} parent=0 // pred_check
    _
  $region43: #{ngp_forward.1} parent=0 // pred_check_branch
    %37 = sbr.rel (0) target = $region45
  $region44: #{ngp_forward.1} parent=0 // pred_region
    _
  $region45: #{ngp_forward.1} parent=0 // pred_fallthru
    _
  %v39 = vld [vmem:[%s0] sm:$0xff]
  %v40 = vld [vmem:[%s0 + $0x8] sm:$0xff]
  %v41 = vld [vmem:[%s0 + $0x10] sm:$0xff]
  %v42 = vld [vmem:[%s0 + $0x18] sm:$0xff]
  %v43 = vld [vmem:[%s0 + $0x20] sm:$0xff]
  %v44 = vld [vmem:[%s0 + $0x28] sm:$0xff]
  %v45 = vld [vmem:[%s0 + $0x30] sm:$0xff]
  %v46 = vld [vmem:[%s0 + $0x38] sm:$0xff]
  %v47 = vld [vmem:[%s0 + $0x40] sm:$0xff]
  %v48 = vld [vmem:[%s0 + $0x48] sm:$0xff]
  %v49 = vld [vmem:[%s0 + $0x50] sm:$0xff]
  %v50 = vld [vmem:[%s0 + $0x58] sm:$0xff]
  %v51 = vld [vmem:[%s0 + $0x60] sm:$0xff]
  %v52 = vld [vmem:[%s0 + $0x68] sm:$0xff]
  %v53 = vld [vmem:[%s0 + $0x70] sm:$0xff]
  %v54 = vld [vmem:[%s0 + $0x78] sm:$0xff]
  %v55 = vld [vmem:[%s0 + $0x80] sm:$0xff]
  %v56 = vld [vmem:[%s0 + $0x88] sm:$0xff]
  %v57 = vld [vmem:[%s0 + $0x90] sm:$0xff]
  %v58 = vld [vmem:[%s0 + $0x98] sm:$0xff]
  %v59 = vld [vmem:[%s0 + $0xa0] sm:$0xff]
  %v60 = vld [vmem:[%s0 + $0xa8] sm:$0xff]
  %v61 = vld [vmem:[%s0 + $0xb0] sm:$0xff]
  %v62 = vld [vmem:[%s0 + $0xb8] sm:$0xff]
  %v63 = vld [vmem:[%s0 + $0xc0] sm:$0xff]
  %v64 = vld [vmem:[%s0 + $0xc8] sm:$0xff]
  %v65 = vld [vmem:[%s0 + $0xd0] sm:$0xff]
  %v66 = vld [vmem:[%s0 + $0xd8] sm:$0xff]
  %v67 = vld [vmem:[%s0 + $0xe0] sm:$0xff]
  %v68 = vld [vmem:[%s0 + $0xe8] sm:$0xff]
  %v69 = vld [vmem:[%s0 + $0xf0] sm:$0xff]
  %v70 = vld [vmem:[%s0 + $0xf8] sm:$0xff]
  %v71 = vpack.c.bf16 %v40, %v39
  %v72 = vpack.c.bf16 %v42, %v41
  %v73 = vpack.c.bf16 %v44, %v43
  %v74 = vpack.c.bf16 %v46, %v45
  %v75 = vpack.c.bf16 %v48, %v47
  %v76 = vpack.c.bf16 %v50, %v49
  %v77 = vpack.c.bf16 %v52, %v51
  %v78 = vpack.c.bf16 %v54, %v53
  %v79 = vpack.c.bf16 %v56, %v55
  %v80 = vpack.c.bf16 %v58, %v57
  %v81 = vpack.c.bf16 %v60, %v59
  %v82 = vpack.c.bf16 %v62, %v61
  %v83 = vpack.c.bf16 %v64, %v63
  %v84 = vpack.c.bf16 %v66, %v65
  %v85 = vpack.c.bf16 %v68, %v67
  %v86 = vpack.c.bf16 %v70, %v69
  %v87 = vld [vmem:[%s2] sm:$0xf]
  %v88 = vld [vmem:[%s2 + $0x4] sm:$0xf]
  %v89 = vld [vmem:[%s2 + $0x8] sm:$0xf]
  %v90 = vld [vmem:[%s2 + $0xc] sm:$0xf]
  %v95 = vunpack.c.l.b16 %v87
  %v96 = vunpack.c.l.b16 %v88
  %v97 = vunpack.c.l.b16 %v89
  %v98 = vunpack.c.l.b16 %v90
  %v99 = vpack.c.b16 %v96, %v95
  %v100 = vpack.c.b16 %v98, %v97
  %vm103 = vcmask 261120
  %v105 = vsel %vm103, %v71, 0
  %v108 = vsel %vm103, %v72, 0
  %v111 = vsel %vm103, %v73, 0
  %v114 = vsel %vm103, %v74, 0
  %v117 = vsel %vm103, %v75, 0
  %v120 = vsel %vm103, %v76, 0
  %v123 = vsel %vm103, %v77, 0
  %v126 = vsel %vm103, %v78, 0
  %v129 = vsel %vm103, %v79, 0
  %v132 = vsel %vm103, %v80, 0
  %v135 = vsel %vm103, %v81, 0
  %v138 = vsel %vm103, %v82, 0
  %v141 = vsel %vm103, %v83, 0
  %v144 = vsel %vm103, %v84, 0
  %v147 = vsel %vm103, %v85, 0
  %v150 = vsel %vm103, %v86, 0
  %152 = vmatprep.subr.bf16.mxu0 0
  %153 = vmatpush1.bf16.msra.mxu0 %v99
  %154 = vmatprep.subr.bf16.mxu0 0
  %155 = vmatpush1.bf16.msra.mxu0 %v100
  %156 = vmatprep.subr.bf16.mxu0 0
  %157 = vmatpush1.bf16.msra.mxu0 0
  %158 = vmatprep.subr.bf16.mxu0 0
  %159 = vmatpush1.bf16.msra.mxu0 0
  %160 = vmatprep.subr.bf16.mxu0 0
  %161 = vmatpush1.bf16.msra.mxu0 0
  %162 = vmatprep.subr.bf16.mxu0 0
  %163 = vmatpush1.bf16.msra.mxu0 0
  %164 = vmatprep.subr.bf16.mxu0 0
  %165 = vmatpush1.bf16.msra.mxu0 0
  %166 = vmatprep.subr.bf16.mxu0 0
  %167 = vmatpush1.bf16.msra.mxu0 0
  %168 = vmatprep.subr.bf16.mxu0 0
  %169 = vmatpush1.bf16.msra.mxu0 0
  %170 = vmatprep.subr.bf16.mxu0 0
  %171 = vmatpush1.bf16.msra.mxu0 0
  %172 = vmatprep.subr.bf16.mxu0 0
  %173 = vmatpush1.bf16.msra.mxu0 0
  %174 = vmatprep.subr.bf16.mxu0 0
  %175 = vmatpush1.bf16.msra.mxu0 0
  %176 = vmatprep.subr.bf16.mxu0 0
  %177 = vmatpush1.bf16.msra.mxu0 0
  %178 = vmatprep.subr.bf16.mxu0 0
  %179 = vmatpush1.bf16.msra.mxu0 0
  %180 = vmatprep.subr.bf16.mxu0 0
  %181 = vmatpush1.bf16.msra.mxu0 0
  %182 = vmatprep.subr.bf16.mxu0 0
  %183 = vmatpush1.bf16.msra.mxu0 0
  %184 = vmatprep.mubr.bf16.mxu0 0
  %185 = vmatmul.mubr.bf16.gmra.mrb[0].mxu0 %v105
  %v186 = vpop.f32.mrb[0].mxu0
  %v187 = vadd.f32 0.0, %v186
  %v188 = vpop.f32.mrb[0].mxu0
  %v189 = vpop.f32.mrb[0].mxu0
  %v190 = vadd.f32 0.0, %v189
  %v191 = vpop.f32.mrb[0].mxu0
  %192 = vmatprep.mubr.bf16.mxu0 0
  %193 = vmatmul.mubr.bf16.gmra.mrb[0].mxu0 %v108
  %v194 = vpop.f32.mrb[0].mxu0
  %v195 = vadd.f32 0.0, %v194
  %v196 = vpop.f32.mrb[0].mxu0
  %v197 = vpop.f32.mrb[0].mxu0
  %v198 = vadd.f32 0.0, %v197
  %v199 = vpop.f32.mrb[0].mxu0
  %200 = vmatprep.mubr.bf16.mxu0 0
  %201 = vmatmul.mubr.bf16.gmra.mrb[0].mxu0 %v111
  %v202 = vpop.f32.mrb[0].mxu0
  %v203 = vadd.f32 0.0, %v202
  %v204 = vpop.f32.mrb[0].mxu0
  %v205 = vpop.f32.mrb[0].mxu0
  %v206 = vadd.f32 0.0, %v205
  %v207 = vpop.f32.mrb[0].mxu0
  %208 = vmatprep.mubr.bf16.mxu0 0
  %209 = vmatmul.mubr.bf16.gmra.mrb[0].mxu0 %v114
  %v210 = vpop.f32.mrb[0].mxu0
  %v211 = vadd.f32 0.0, %v210
  %v212 = vpop.f32.mrb[0].mxu0
  %v213 = vpop.f32.mrb[0].mxu0
  %v214 = vadd.f32 0.0, %v213
  %v215 = vpop.f32.mrb[0].mxu0
  %216 = vmatprep.mubr.bf16.mxu0 0
  %217 = vmatmul.mubr.bf16.gmra.mrb[0].mxu0 %v117
  %v218 = vpop.f32.mrb[0].mxu0
  %v219 = vadd.f32 0.0, %v218
  %v220 = vpop.f32.mrb[0].mxu0
  %v221 = vpop.f32.mrb[0].mxu0
  %v222 = vadd.f32 0.0, %v221
  %v223 = vpop.f32.mrb[0].mxu0
  %224 = vmatprep.mubr.bf16.mxu0 0
  %225 = vmatmul.mubr.bf16.gmra.mrb[0].mxu0 %v120
  %v226 = vpop.f32.mrb[0].mxu0
  %v227 = vadd.f32 0.0, %v226
  %v228 = vpop.f32.mrb[0].mxu0
  %v229 = vpop.f32.mrb[0].mxu0
  %v230 = vadd.f32 0.0, %v229
  %v231 = vpop.f32.mrb[0].mxu0
  %232 = vmatprep.mubr.bf16.mxu0 0
  %233 = vmatmul.mubr.bf16.gmra.mrb[0].mxu0 %v123
  %v234 = vpop.f32.mrb[0].mxu0
  %v235 = vadd.f32 0.0, %v234
  %v236 = vpop.f32.mrb[0].mxu0
  %v237 = vpop.f32.mrb[0].mxu0
  %v238 = vadd.f32 0.0, %v237
  %v239 = vpop.f32.mrb[0].mxu0
  %240 = vmatprep.mubr.bf16.mxu0 0
  %241 = vmatmul.mubr.bf16.gmra.mrb[0].mxu0 %v126
  %v242 = vpop.f32.mrb[0].mxu0
  %v243 = vadd.f32 0.0, %v242
  %v244 = vpop.f32.mrb[0].mxu0
  %v245 = vpop.f32.mrb[0].mxu0
  %v246 = vadd.f32 0.0, %v245
  %v247 = vpop.f32.mrb[0].mxu0
  %248 = vmatprep.mubr.bf16.mxu0 0
  %249 = vmatmul.mubr.bf16.gmra.mrb[0].mxu0 %v129
  %v250 = vpop.f32.mrb[0].mxu0
  %v251 = vadd.f32 0.0, %v250
  %v252 = vpop.f32.mrb[0].mxu0
  %v253 = vpop.f32.mrb[0].mxu0
  %v254 = vadd.f32 0.0, %v253
  %v255 = vpop.f32.mrb[0].mxu0
  %256 = vmatprep.mubr.bf16.mxu0 0
  %257 = vmatmul.mubr.bf16.gmra.mrb[0].mxu0 %v132
  %v258 = vpop.f32.mrb[0].mxu0
  %v259 = vadd.f32 0.0, %v258
  %v260 = vpop.f32.mrb[0].mxu0
  %v261 = vpop.f32.mrb[0].mxu0
  %v262 = vadd.f32 0.0, %v261
  %v263 = vpop.f32.mrb[0].mxu0
  %264 = vmatprep.mubr.bf16.mxu0 0
  %265 = vmatmul.mubr.bf16.gmra.mrb[0].mxu0 %v135
  %v266 = vpop.f32.mrb[0].mxu0
  %v267 = vadd.f32 0.0, %v266
  %v268 = vpop.f32.mrb[0].mxu0
  %v269 = vpop.f32.mrb[0].mxu0
  %v270 = vadd.f32 0.0, %v269
  %v271 = vpop.f32.mrb[0].mxu0
  %272 = vmatprep.mubr.bf16.mxu0 0
  %273 = vmatmul.mubr.bf16.gmra.mrb[0].mxu0 %v138
  %v274 = vpop.f32.mrb[0].mxu0
  %v275 = vadd.f32 0.0, %v274
  %v276 = vpop.f32.mrb[0].mxu0
  %v277 = vpop.f32.mrb[0].mxu0
  %v278 = vadd.f32 0.0, %v277
  %v279 = vpop.f32.mrb[0].mxu0
  %280 = vmatprep.mubr.bf16.mxu0 0
  %281 = vmatmul.mubr.bf16.gmra.mrb[0].mxu0 %v141
  %v282 = vpop.f32.mrb[0].mxu0
  %v283 = vadd.f32 0.0, %v282
  %v284 = vpop.f32.mrb[0].mxu0
  %v285 = vpop.f32.mrb[0].mxu0
  %v286 = vadd.f32 0.0, %v285
  %v287 = vpop.f32.mrb[0].mxu0
  %288 = vmatprep.mubr.bf16.mxu0 0
  %289 = vmatmul.mubr.bf16.gmra.mrb[0].mxu0 %v144
  %v290 = vpop.f32.mrb[0].mxu0
  %v291 = vadd.f32 0.0, %v290
  %v292 = vpop.f32.mrb[0].mxu0
  %v293 = vpop.f32.mrb[0].mxu0
  %v294 = vadd.f32 0.0, %v293
  %v295 = vpop.f32.mrb[0].mxu0
  %296 = vmatprep.mubr.bf16.mxu0 0
  %297 = vmatmul.mubr.bf16.gmra.mrb[0].mxu0 %v147
  %v298 = vpop.f32.mrb[0].mxu0
  %v299 = vadd.f32 0.0, %v298
  %v300 = vpop.f32.mrb[0].mxu0
  %v301 = vpop.f32.mrb[0].mxu0
  %v302 = vadd.f32 0.0, %v301
  %v303 = vpop.f32.mrb[0].mxu0
  %304 = vmatprep.mubr.bf16.mxu0 0
  %305 = vmatmul.mubr.bf16.gmra.mrb[0].mxu0 %v150
  %v306 = vpop.f32.mrb[0].mxu0
  %v307 = vadd.f32 0.0, %v306
  %v308 = vpop.f32.mrb[0].mxu0
  %v309 = vpop.f32.mrb[0].mxu0
  %v310 = vadd.f32 0.0, %v309
  %v311 = vpop.f32.mrb[0].mxu0
  %312 = vdwg.mxu0
  %v313 = vmax.f32 %v187, 0.0
  %v314 = vmax.f32 %v190, 0.0
  %v315 = vmax.f32 %v195, 0.0
  %v316 = vmax.f32 %v198, 0.0
  %v317 = vmax.f32 %v203, 0.0
  %v318 = vmax.f32 %v206, 0.0
  %v319 = vmax.f32 %v211, 0.0
  %v320 = vmax.f32 %v214, 0.0
  %v321 = vmax.f32 %v219, 0.0
  %v322 = vmax.f32 %v222, 0.0
  %v323 = vmax.f32 %v227, 0.0
  %v324 = vmax.f32 %v230, 0.0
  %v325 = vmax.f32 %v235, 0.0
  %v326 = vmax.f32 %v238, 0.0
  %v327 = vmax.f32 %v243, 0.0
  %v328 = vmax.f32 %v246, 0.0
  %v329 = vmax.f32 %v251, 0.0
  %v330 = vmax.f32 %v254, 0.0
  %v331 = vmax.f32 %v259, 0.0
  %v332 = vmax.f32 %v262, 0.0
  %v333 = vmax.f32 %v267, 0.0
  %v334 = vmax.f32 %v270, 0.0
  %v335 = vmax.f32 %v275, 0.0
  %v336 = vmax.f32 %v278, 0.0
  %v337 = vmax.f32 %v283, 0.0
  %v338 = vmax.f32 %v286, 0.0
  %v339 = vmax.f32 %v291, 0.0
  %v340 = vmax.f32 %v294, 0.0
  %v341 = vmax.f32 %v299, 0.0
  %v342 = vmax.f32 %v302, 0.0
  %v343 = vmax.f32 %v307, 0.0
  %v344 = vmax.f32 %v310, 0.0
  %v345 = vpack.c.bf16 %v314, %v313
  %v346 = vpack.c.bf16 %v316, %v315
  %v347 = vpack.c.bf16 %v318, %v317
  %v348 = vpack.c.bf16 %v320, %v319
  %v349 = vpack.c.bf16 %v322, %v321
  %v350 = vpack.c.bf16 %v324, %v323
  %v351 = vpack.c.bf16 %v326, %v325
  %v352 = vpack.c.bf16 %v328, %v327
  %v353 = vpack.c.bf16 %v330, %v329
  %v354 = vpack.c.bf16 %v332, %v331
  %v355 = vpack.c.bf16 %v334, %v333
  %v356 = vpack.c.bf16 %v336, %v335
  %v357 = vpack.c.bf16 %v338, %v337
  %v358 = vpack.c.bf16 %v340, %v339
  %v359 = vpack.c.bf16 %v342, %v341
  %v360 = vpack.c.bf16 %v344, %v343
  %v361 = vld [vmem:[%s3] sm:$0xf]
  %v362 = vld [vmem:[%s3 + $0x4] sm:$0xf]
  %v363 = vld [vmem:[%s3 + $0x8] sm:$0xf]
  %v364 = vld [vmem:[%s3 + $0xc] sm:$0xf]
  %v365 = vld [vmem:[%s3 + $0x10] sm:$0xf]
  %v366 = vld [vmem:[%s3 + $0x14] sm:$0xf]
  %v367 = vld [vmem:[%s3 + $0x18] sm:$0xf]
  %v368 = vld [vmem:[%s3 + $0x1c] sm:$0xf]
  %v377 = vunpack.c.l.b16 %v361
  %v378 = vunpack.c.l.b16 %v362
  %v379 = vunpack.c.l.b16 %v363
  %v380 = vunpack.c.l.b16 %v364
  %v381 = vunpack.c.l.b16 %v365
  %v382 = vunpack.c.l.b16 %v366
  %v383 = vunpack.c.l.b16 %v367
  %v384 = vunpack.c.l.b16 %v368
  %v385 = vpack.c.b16 %v378, %v377
  %v386 = vpack.c.b16 %v380, %v379
  %v387 = vpack.c.b16 %v382, %v381
  %v388 = vpack.c.b16 %v384, %v383
  %vm393 = vcmask 523264
  %v395 = vsel %vm393, %v345, 0
  %v398 = vsel %vm393, %v346, 0
  %v401 = vsel %vm393, %v347, 0
  %v404 = vsel %vm393, %v348, 0
  %v407 = vsel %vm393, %v349, 0
  %v410 = vsel %vm393, %v350, 0
  %v413 = vsel %vm393, %v351, 0
  %v416 = vsel %vm393, %v352, 0
  %v419 = vsel %vm393, %v353, 0
  %v422 = vsel %vm393, %v354, 0
  %v425 = vsel %vm393, %v355, 0
  %v428 = vsel %vm393, %v356, 0
  %v431 = vsel %vm393, %v357, 0
  %v434 = vsel %vm393, %v358, 0
  %v437 = vsel %vm393, %v359, 0
  %v440 = vsel %vm393, %v360, 0
  %442 = vmatprep.subr.bf16.mxu0 0
  %443 = vmatpush1.bf16.msra.mxu0 %v385
  %444 = vmatprep.subr.bf16.mxu0 0
  %445 = vmatpush1.bf16.msra.mxu0 %v386
  %446 = vmatprep.subr.bf16.mxu0 0
  %447 = vmatpush1.bf16.msra.mxu0 %v387
  %448 = vmatprep.subr.bf16.mxu0 0
  %449 = vmatpush1.bf16.msra.mxu0 %v388
  %450 = vmatprep.subr.bf16.mxu0 0
  %451 = vmatpush1.bf16.msra.mxu0 0
  %452 = vmatprep.subr.bf16.mxu0 0
  %453 = vmatpush1.bf16.msra.mxu0 0
  %454 = vmatprep.subr.bf16.mxu0 0
  %455 = vmatpush1.bf16.msra.mxu0 0
  %456 = vmatprep.subr.bf16.mxu0 0
  %457 = vmatpush1.bf16.msra.mxu0 0
  %458 = vmatprep.subr.bf16.mxu0 0
  %459 = vmatpush1.bf16.msra.mxu0 0
  %460 = vmatprep.subr.bf16.mxu0 0
  %461 = vmatpush1.bf16.msra.mxu0 0
  %462 = vmatprep.subr.bf16.mxu0 0
  %463 = vmatpush1.bf16.msra.mxu0 0
  %464 = vmatprep.subr.bf16.mxu0 0
  %465 = vmatpush1.bf16.msra.mxu0 0
  %466 = vmatprep.subr.bf16.mxu0 0
  %467 = vmatpush1.bf16.msra.mxu0 0
  %468 = vmatprep.subr.bf16.mxu0 0
  %469 = vmatpush1.bf16.msra.mxu0 0
  %470 = vmatprep.subr.bf16.mxu0 0
  %471 = vmatpush1.bf16.msra.mxu0 0
  %472 = vmatprep.subr.bf16.mxu0 0
  %473 = vmatpush1.bf16.msra.mxu0 0
  %474 = vmatprep.mubr.bf16.mxu0 0
  %475 = vmatmul.mubr.bf16.gmra.mrb[0].mxu0 %v395
  %v476 = vpop.f32.mrb[0].mxu0
  %v477 = vadd.f32 0.0, %v476
  %v478 = vpop.f32.mrb[0].mxu0
  %v479 = vpop.f32.mrb[0].mxu0
  %v480 = vadd.f32 0.0, %v479
  %v481 = vpop.f32.mrb[0].mxu0
  %482 = vmatprep.mubr.bf16.mxu0 0
  %483 = vmatmul.mubr.bf16.gmra.mrb[0].mxu0 %v398
  %v484 = vpop.f32.mrb[0].mxu0
  %v485 = vadd.f32 0.0, %v484
  %v486 = vpop.f32.mrb[0].mxu0
  %v487 = vpop.f32.mrb[0].mxu0
  %v488 = vadd.f32 0.0, %v487
  %v489 = vpop.f32.mrb[0].mxu0
  %490 = vmatprep.mubr.bf16.mxu0 0
  %491 = vmatmul.mubr.bf16.gmra.mrb[0].mxu0 %v401
  %v492 = vpop.f32.mrb[0].mxu0
  %v493 = vadd.f32 0.0, %v492
  %v494 = vpop.f32.mrb[0].mxu0
  %v495 = vpop.f32.mrb[0].mxu0
  %v496 = vadd.f32 0.0, %v495
  %v497 = vpop.f32.mrb[0].mxu0
  %498 = vmatprep.mubr.bf16.mxu0 0
  %499 = vmatmul.mubr.bf16.gmra.mrb[0].mxu0 %v404
  %v500 = vpop.f32.mrb[0].mxu0
  %v501 = vadd.f32 0.0, %v500
  %v502 = vpop.f32.mrb[0].mxu0
  %v503 = vpop.f32.mrb[0].mxu0
  %v504 = vadd.f32 0.0, %v503
  %v505 = vpop.f32.mrb[0].mxu0
  %506 = vmatprep.mubr.bf16.mxu0 0
  %507 = vmatmul.mubr.bf16.gmra.mrb[0].mxu0 %v407
  %v508 = vpop.f32.mrb[0].mxu0
  %v509 = vadd.f32 0.0, %v508
  %v510 = vpop.f32.mrb[0].mxu0
  %v511 = vpop.f32.mrb[0].mxu0
  %v512 = vadd.f32 0.0, %v511
  %v513 = vpop.f32.mrb[0].mxu0
  %514 = vmatprep.mubr.bf16.mxu0 0
  %515 = vmatmul.mubr.bf16.gmra.mrb[0].mxu0 %v410
  %v516 = vpop.f32.mrb[0].mxu0
  %v517 = vadd.f32 0.0, %v516
  %v518 = vpop.f32.mrb[0].mxu0
  %v519 = vpop.f32.mrb[0].mxu0
  %v520 = vadd.f32 0.0, %v519
  %v521 = vpop.f32.mrb[0].mxu0
  %522 = vmatprep.mubr.bf16.mxu0 0
  %523 = vmatmul.mubr.bf16.gmra.mrb[0].mxu0 %v413
  %v524 = vpop.f32.mrb[0].mxu0
  %v525 = vadd.f32 0.0, %v524
  %v526 = vpop.f32.mrb[0].mxu0
  %v527 = vpop.f32.mrb[0].mxu0
  %v528 = vadd.f32 0.0, %v527
  %v529 = vpop.f32.mrb[0].mxu0
  %530 = vmatprep.mubr.bf16.mxu0 0
  %531 = vmatmul.mubr.bf16.gmra.mrb[0].mxu0 %v416
  %v532 = vpop.f32.mrb[0].mxu0
  %v533 = vadd.f32 0.0, %v532
  %v534 = vpop.f32.mrb[0].mxu0
  %v535 = vpop.f32.mrb[0].mxu0
  %v536 = vadd.f32 0.0, %v535
  %v537 = vpop.f32.mrb[0].mxu0
  %538 = vmatprep.mubr.bf16.mxu0 0
  %539 = vmatmul.mubr.bf16.gmra.mrb[0].mxu0 %v419
  %v540 = vpop.f32.mrb[0].mxu0
  %v541 = vadd.f32 0.0, %v540
  %v542 = vpop.f32.mrb[0].mxu0
  %v543 = vpop.f32.mrb[0].mxu0
  %v544 = vadd.f32 0.0, %v543
  %v545 = vpop.f32.mrb[0].mxu0
  %546 = vmatprep.mubr.bf16.mxu0 0
  %547 = vmatmul.mubr.bf16.gmra.mrb[0].mxu0 %v422
  %v548 = vpop.f32.mrb[0].mxu0
  %v549 = vadd.f32 0.0, %v548
  %v550 = vpop.f32.mrb[0].mxu0
  %v551 = vpop.f32.mrb[0].mxu0
  %v552 = vadd.f32 0.0, %v551
  %v553 = vpop.f32.mrb[0].mxu0
  %554 = vmatprep.mubr.bf16.mxu0 0
  %555 = vmatmul.mubr.bf16.gmra.mrb[0].mxu0 %v425
  %v556 = vpop.f32.mrb[0].mxu0
  %v557 = vadd.f32 0.0, %v556
  %v558 = vpop.f32.mrb[0].mxu0
  %v559 = vpop.f32.mrb[0].mxu0
  %v560 = vadd.f32 0.0, %v559
  %v561 = vpop.f32.mrb[0].mxu0
  %562 = vmatprep.mubr.bf16.mxu0 0
  %563 = vmatmul.mubr.bf16.gmra.mrb[0].mxu0 %v428
  %v564 = vpop.f32.mrb[0].mxu0
  %v565 = vadd.f32 0.0, %v564
  %v566 = vpop.f32.mrb[0].mxu0
  %v567 = vpop.f32.mrb[0].mxu0
  %v568 = vadd.f32 0.0, %v567
  %v569 = vpop.f32.mrb[0].mxu0
  %570 = vmatprep.mubr.bf16.mxu0 0
  %571 = vmatmul.mubr.bf16.gmra.mrb[0].mxu0 %v431
  %v572 = vpop.f32.mrb[0].mxu0
  %v573 = vadd.f32 0.0, %v572
  %v574 = vpop.f32.mrb[0].mxu0
  %v575 = vpop.f32.mrb[0].mxu0
  %v576 = vadd.f32 0.0, %v575
  %v577 = vpop.f32.mrb[0].mxu0
  %578 = vmatprep.mubr.bf16.mxu0 0
  %579 = vmatmul.mubr.bf16.gmra.mrb[0].mxu0 %v434
  %v580 = vpop.f32.mrb[0].mxu0
  %v581 = vadd.f32 0.0, %v580
  %v582 = vpop.f32.mrb[0].mxu0
  %v583 = vpop.f32.mrb[0].mxu0
  %v584 = vadd.f32 0.0, %v583
  %v585 = vpop.f32.mrb[0].mxu0
  %586 = vmatprep.mubr.bf16.mxu0 0
  %587 = vmatmul.mubr.bf16.gmra.mrb[0].mxu0 %v437
  %v588 = vpop.f32.mrb[0].mxu0
  %v589 = vadd.f32 0.0, %v588
  %v590 = vpop.f32.mrb[0].mxu0
  %v591 = vpop.f32.mrb[0].mxu0
  %v592 = vadd.f32 0.0, %v591
  %v593 = vpop.f32.mrb[0].mxu0
  %594 = vmatprep.mubr.bf16.mxu0 0
  %595 = vmatmul.mubr.bf16.gmra.mrb[0].mxu0 %v440
  %v596 = vpop.f32.mrb[0].mxu0
  %v597 = vadd.f32 0.0, %v596
  %v598 = vpop.f32.mrb[0].mxu0
  %v599 = vpop.f32.mrb[0].mxu0
  %v600 = vadd.f32 0.0, %v599
  %v601 = vpop.f32.mrb[0].mxu0
  %602 = vdwg.mxu0
  %v603 = vmul.f32 %v477, 1.442695
  %v604 = vpow.pop %v603
  %v605 = vmul.f32 %v480, 1.442695
  %v606 = vpow.pop %v605
  %v607 = vmul.f32 %v485, 1.442695
  %v608 = vpow.pop %v607
  %v609 = vmul.f32 %v488, 1.442695
  %v610 = vpow.pop %v609
  %v611 = vmul.f32 %v493, 1.442695
  %v612 = vpow.pop %v611
  %v613 = vmul.f32 %v496, 1.442695
  %v614 = vpow.pop %v613
  %v615 = vmul.f32 %v501, 1.442695
  %v616 = vpow.pop %v615
  %v617 = vmul.f32 %v504, 1.442695
  %v618 = vpow.pop %v617
  %v619 = vmul.f32 %v509, 1.442695
  %v620 = vpow.pop %v619
  %v621 = vmul.f32 %v512, 1.442695
  %v622 = vpow.pop %v621
  %v623 = vmul.f32 %v517, 1.442695
  %v624 = vpow.pop %v623
  %v625 = vmul.f32 %v520, 1.442695
  %v626 = vpow.pop %v625
  %v627 = vmul.f32 %v525, 1.442695
  %v628 = vpow.pop %v627
  %v629 = vmul.f32 %v528, 1.442695
  %v630 = vpow.pop %v629
  %v631 = vmul.f32 %v533, 1.442695
  %v632 = vpow.pop %v631
  %v633 = vmul.f32 %v536, 1.442695
  %v634 = vpow.pop %v633
  %v635 = vmul.f32 %v541, 1.442695
  %v636 = vpow.pop %v635
  %v637 = vmul.f32 %v544, 1.442695
  %v638 = vpow.pop %v637
  %v639 = vmul.f32 %v549, 1.442695
  %v640 = vpow.pop %v639
  %v641 = vmul.f32 %v552, 1.442695
  %v642 = vpow.pop %v641
  %v643 = vmul.f32 %v557, 1.442695
  %v644 = vpow.pop %v643
  %v645 = vmul.f32 %v560, 1.442695
  %v646 = vpow.pop %v645
  %v647 = vmul.f32 %v565, 1.442695
  %v648 = vpow.pop %v647
  %v649 = vmul.f32 %v568, 1.442695
  %v650 = vpow.pop %v649
  %v651 = vmul.f32 %v573, 1.442695
  %v652 = vpow.pop %v651
  %v653 = vmul.f32 %v576, 1.442695
  %v654 = vpow.pop %v653
  %v655 = vmul.f32 %v581, 1.442695
  %v656 = vpow.pop %v655
  %v657 = vmul.f32 %v584, 1.442695
  %v658 = vpow.pop %v657
  %v659 = vmul.f32 %v589, 1.442695
  %v660 = vpow.pop %v659
  %v661 = vmul.f32 %v592, 1.442695
  %v662 = vpow.pop %v661
  %v663 = vmul.f32 %v597, 1.442695
  %v664 = vpow.pop %v663
  %v665 = vmul.f32 %v600, 1.442695
  %v666 = vpow.pop %v665
  %v667 = vld [vmem:[%s1] sm:$0xff]
  %v668 = vld [vmem:[%s1 + $0x8] sm:$0xff]
  %v669 = vld [vmem:[%s1 + $0x10] sm:$0xff]
  %v670 = vld [vmem:[%s1 + $0x18] sm:$0xff]
  %v671 = vld [vmem:[%s1 + $0x20] sm:$0xff]
  %v672 = vld [vmem:[%s1 + $0x28] sm:$0xff]
  %v673 = vld [vmem:[%s1 + $0x30] sm:$0xff]
  %v674 = vld [vmem:[%s1 + $0x38] sm:$0xff]
  %v675 = vld [vmem:[%s1 + $0x40] sm:$0xff]
  %v676 = vld [vmem:[%s1 + $0x48] sm:$0xff]
  %v677 = vld [vmem:[%s1 + $0x50] sm:$0xff]
  %v678 = vld [vmem:[%s1 + $0x58] sm:$0xff]
  %v679 = vld [vmem:[%s1 + $0x60] sm:$0xff]
  %v680 = vld [vmem:[%s1 + $0x68] sm:$0xff]
  %v681 = vld [vmem:[%s1 + $0x70] sm:$0xff]
  %v682 = vld [vmem:[%s1 + $0x78] sm:$0xff]
  %v683 = vld [vmem:[%s1 + $0x80] sm:$0xff]
  %v684 = vld [vmem:[%s1 + $0x88] sm:$0xff]
  %v685 = vld [vmem:[%s1 + $0x90] sm:$0xff]
  %v686 = vld [vmem:[%s1 + $0x98] sm:$0xff]
  %v687 = vld [vmem:[%s1 + $0xa0] sm:$0xff]
  %v688 = vld [vmem:[%s1 + $0xa8] sm:$0xff]
  %v689 = vld [vmem:[%s1 + $0xb0] sm:$0xff]
  %v690 = vld [vmem:[%s1 + $0xb8] sm:$0xff]
  %v691 = vld [vmem:[%s1 + $0xc0] sm:$0xff]
  %v692 = vld [vmem:[%s1 + $0xc8] sm:$0xff]
  %v693 = vld [vmem:[%s1 + $0xd0] sm:$0xff]
  %v694 = vld [vmem:[%s1 + $0xd8] sm:$0xff]
  %v695 = vld [vmem:[%s1 + $0xe0] sm:$0xff]
  %v696 = vld [vmem:[%s1 + $0xe8] sm:$0xff]
  %v697 = vld [vmem:[%s1 + $0xf0] sm:$0xff]
  %v698 = vld [vmem:[%s1 + $0xf8] sm:$0xff]
  %v699 = vmul.f32 %v667, %v667
  %v700 = vmul.f32 %v668, %v668
  %v701 = vmul.f32 %v669, %v669
  %v702 = vmul.f32 %v670, %v670
  %v703 = vmul.f32 %v671, %v671
  %v704 = vmul.f32 %v672, %v672
  %v705 = vmul.f32 %v673, %v673
  %v706 = vmul.f32 %v674, %v674
  %v707 = vmul.f32 %v675, %v675
  %v708 = vmul.f32 %v676, %v676
  %v709 = vmul.f32 %v677, %v677
  %v710 = vmul.f32 %v678, %v678
  %v711 = vmul.f32 %v679, %v679
  %v712 = vmul.f32 %v680, %v680
  %v713 = vmul.f32 %v681, %v681
  %v714 = vmul.f32 %v682, %v682
  %v715 = vmul.f32 %v683, %v683
  %v716 = vmul.f32 %v684, %v684
  %v717 = vmul.f32 %v685, %v685
  %v718 = vmul.f32 %v686, %v686
  %v719 = vmul.f32 %v687, %v687
  %v720 = vmul.f32 %v688, %v688
  %v721 = vmul.f32 %v689, %v689
  %v722 = vmul.f32 %v690, %v690
  %v723 = vmul.f32 %v691, %v691
  %v724 = vmul.f32 %v692, %v692
  %v725 = vmul.f32 %v693, %v693
  %v726 = vmul.f32 %v694, %v694
  %v727 = vmul.f32 %v695, %v695
  %v728 = vmul.f32 %v696, %v696
  %v729 = vmul.f32 %v697, %v697
  %v730 = vmul.f32 %v698, %v698
  %vm731 = vcmask 23552
  %v732 = vsel %vm731, %v699, 0.0
  %733 = vadd.xlane.f32.xlu0 %v732
  %v734 = vpop.xlane.xlu0 %733
  %v735 = vsel %vm731, %v700, 0.0
  %736 = vadd.xlane.f32.xlu0 %v735
  %v737 = vpop.xlane.xlu0 %736
  %v738 = vsel %vm731, %v701, 0.0
  %739 = vadd.xlane.f32.xlu0 %v738
  %v740 = vpop.xlane.xlu0 %739
  %v741 = vsel %vm731, %v702, 0.0
  %742 = vadd.xlane.f32.xlu0 %v741
  %v743 = vpop.xlane.xlu0 %742
  %v744 = vsel %vm731, %v703, 0.0
  %745 = vadd.xlane.f32.xlu0 %v744
  %v746 = vpop.xlane.xlu0 %745
  %v747 = vsel %vm731, %v704, 0.0
  %748 = vadd.xlane.f32.xlu0 %v747
  %v749 = vpop.xlane.xlu0 %748
  %v750 = vsel %vm731, %v705, 0.0
  %751 = vadd.xlane.f32.xlu0 %v750
  %v752 = vpop.xlane.xlu0 %751
  %v753 = vsel %vm731, %v706, 0.0
  %754 = vadd.xlane.f32.xlu0 %v753
  %v755 = vpop.xlane.xlu0 %754
  %v756 = vsel %vm731, %v707, 0.0
  %757 = vadd.xlane.f32.xlu0 %v756
  %v758 = vpop.xlane.xlu0 %757
  %v759 = vsel %vm731, %v708, 0.0
  %760 = vadd.xlane.f32.xlu0 %v759
  %v761 = vpop.xlane.xlu0 %760
  %v762 = vsel %vm731, %v709, 0.0
  %763 = vadd.xlane.f32.xlu0 %v762
  %v764 = vpop.xlane.xlu0 %763
  %v765 = vsel %vm731, %v710, 0.0
  %766 = vadd.xlane.f32.xlu0 %v765
  %v767 = vpop.xlane.xlu0 %766
  %v768 = vsel %vm731, %v711, 0.0
  %769 = vadd.xlane.f32.xlu0 %v768
  %v770 = vpop.xlane.xlu0 %769
  %v771 = vsel %vm731, %v712, 0.0
  %772 = vadd.xlane.f32.xlu0 %v771
  %v773 = vpop.xlane.xlu0 %772
  %v774 = vsel %vm731, %v713, 0.0
  %775 = vadd.xlane.f32.xlu0 %v774
  %v776 = vpop.xlane.xlu0 %775
  %v777 = vsel %vm731, %v714, 0.0
  %778 = vadd.xlane.f32.xlu0 %v777
  %v779 = vpop.xlane.xlu0 %778
  %v780 = vsel %vm731, %v715, 0.0
  %781 = vadd.xlane.f32.xlu0 %v780
  %v782 = vpop.xlane.xlu0 %781
  %v783 = vsel %vm731, %v716, 0.0
  %784 = vadd.xlane.f32.xlu0 %v783
  %v785 = vpop.xlane.xlu0 %784
  %v786 = vsel %vm731, %v717, 0.0
  %787 = vadd.xlane.f32.xlu0 %v786
  %v788 = vpop.xlane.xlu0 %787
  %v789 = vsel %vm731, %v718, 0.0
  %790 = vadd.xlane.f32.xlu0 %v789
  %v791 = vpop.xlane.xlu0 %790
  %v792 = vsel %vm731, %v719, 0.0
  %793 = vadd.xlane.f32.xlu0 %v792
  %v794 = vpop.xlane.xlu0 %793
  %v795 = vsel %vm731, %v720, 0.0
  %796 = vadd.xlane.f32.xlu0 %v795
  %v797 = vpop.xlane.xlu0 %796
  %v798 = vsel %vm731, %v721, 0.0
  %799 = vadd.xlane.f32.xlu0 %v798
  %v800 = vpop.xlane.xlu0 %799
  %v801 = vsel %vm731, %v722, 0.0
  %802 = vadd.xlane.f32.xlu0 %v801
  %v803 = vpop.xlane.xlu0 %802
  %v804 = vsel %vm731, %v723, 0.0
  %805 = vadd.xlane.f32.xlu0 %v804
  %v806 = vpop.xlane.xlu0 %805
  %v807 = vsel %vm731, %v724, 0.0
  %808 = vadd.xlane.f32.xlu0 %v807
  %v809 = vpop.xlane.xlu0 %808
  %v810 = vsel %vm731, %v725, 0.0
  %811 = vadd.xlane.f32.xlu0 %v810
  %v812 = vpop.xlane.xlu0 %811
  %v813 = vsel %vm731, %v726, 0.0
  %814 = vadd.xlane.f32.xlu0 %v813
  %v815 = vpop.xlane.xlu0 %814
  %v816 = vsel %vm731, %v727, 0.0
  %817 = vadd.xlane.f32.xlu0 %v816
  %v818 = vpop.xlane.xlu0 %817
  %v819 = vsel %vm731, %v728, 0.0
  %820 = vadd.xlane.f32.xlu0 %v819
  %v821 = vpop.xlane.xlu0 %820
  %v822 = vsel %vm731, %v729, 0.0
  %823 = vadd.xlane.f32.xlu0 %v822
  %v824 = vpop.xlane.xlu0 %823
  %v825 = vsel %vm731, %v730, 0.0
  %826 = vadd.xlane.f32.xlu0 %v825
  %v827 = vpop.xlane.xlu0 %826
  %v828 = vrsqrt.pop %v734
  %v829 = vrsqrt.pop %v737
  %v830 = vrsqrt.pop %v740
  %v831 = vrsqrt.pop %v743
  %v832 = vrsqrt.pop %v746
  %v833 = vrsqrt.pop %v749
  %v834 = vrsqrt.pop %v752
  %v835 = vrsqrt.pop %v755
  %v836 = vrsqrt.pop %v758
  %v837 = vrsqrt.pop %v761
  %v838 = vrsqrt.pop %v764
  %v839 = vrsqrt.pop %v767
  %v840 = vrsqrt.pop %v770
  %v841 = vrsqrt.pop %v773
  %v842 = vrsqrt.pop %v776
  %v843 = vrsqrt.pop %v779
  %v844 = vrsqrt.pop %v782
  %v845 = vrsqrt.pop %v785
  %v846 = vrsqrt.pop %v788
  %v847 = vrsqrt.pop %v791
  %v848 = vrsqrt.pop %v794
  %v849 = vrsqrt.pop %v797
  %v850 = vrsqrt.pop %v800
  %v851 = vrsqrt.pop %v803
  %v852 = vrsqrt.pop %v806
  %v853 = vrsqrt.pop %v809
  %v854 = vrsqrt.pop %v812
  %v855 = vrsqrt.pop %v815
  %v856 = vrsqrt.pop %v818
  %v857 = vrsqrt.pop %v821
  %v858 = vrsqrt.pop %v824
  %v859 = vrsqrt.pop %v827
  %v860 = vmul.f32 %v667, %v828
  %v861 = vmul.f32 %v668, %v829
  %v862 = vmul.f32 %v669, %v830
  %v863 = vmul.f32 %v670, %v831
  %v864 = vmul.f32 %v671, %v832
  %v865 = vmul.f32 %v672, %v833
  %v866 = vmul.f32 %v673, %v834
  %v867 = vmul.f32 %v674, %v835
  %v868 = vmul.f32 %v675, %v836
  %v869 = vmul.f32 %v676, %v837
  %v870 = vmul.f32 %v677, %v838
  %v871 = vmul.f32 %v678, %v839
  %v872 = vmul.f32 %v679, %v840
  %v873 = vmul.f32 %v680, %v841
  %v874 = vmul.f32 %v681, %v842
  %v875 = vmul.f32 %v682, %v843
  %v876 = vmul.f32 %v683, %v844
  %v877 = vmul.f32 %v684, %v845
  %v878 = vmul.f32 %v685, %v846
  %v879 = vmul.f32 %v686, %v847
  %v880 = vmul.f32 %v687, %v848
  %v881 = vmul.f32 %v688, %v849
  %v882 = vmul.f32 %v689, %v850
  %v883 = vmul.f32 %v690, %v851
  %v884 = vmul.f32 %v691, %v852
  %v885 = vmul.f32 %v692, %v853
  %v886 = vmul.f32 %v693, %v854
  %v887 = vmul.f32 %v694, %v855
  %v888 = vmul.f32 %v695, %v856
  %v889 = vmul.f32 %v696, %v857
  %v890 = vmul.f32 %v697, %v858
  %v891 = vmul.f32 %v698, %v859
  %v892 = vsel %vm731, %v860, 1.0
  %v893 = vsel %vm731, %v861, 1.0
  %v894 = vsel %vm731, %v862, 1.0
  %v895 = vsel %vm731, %v863, 1.0
  %v896 = vsel %vm731, %v864, 1.0
  %v897 = vsel %vm731, %v865, 1.0
  %v898 = vsel %vm731, %v866, 1.0
  %v899 = vsel %vm731, %v867, 1.0
  %v900 = vsel %vm731, %v868, 1.0
  %v901 = vsel %vm731, %v869, 1.0
  %v902 = vsel %vm731, %v870, 1.0
  %v903 = vsel %vm731, %v871, 1.0
  %v904 = vsel %vm731, %v872, 1.0
  %v905 = vsel %vm731, %v873, 1.0
  %v906 = vsel %vm731, %v874, 1.0
  %v907 = vsel %vm731, %v875, 1.0
  %v908 = vsel %vm731, %v876, 1.0
  %v909 = vsel %vm731, %v877, 1.0
  %v910 = vsel %vm731, %v878, 1.0
  %v911 = vsel %vm731, %v879, 1.0
  %v912 = vsel %vm731, %v880, 1.0
  %v913 = vsel %vm731, %v881, 1.0
  %v914 = vsel %vm731, %v882, 1.0
  %v915 = vsel %vm731, %v883, 1.0
  %v916 = vsel %vm731, %v884, 1.0
  %v917 = vsel %vm731, %v885, 1.0
  %v918 = vsel %vm731, %v886, 1.0
  %v919 = vsel %vm731, %v887, 1.0
  %v920 = vsel %vm731, %v888, 1.0
  %v921 = vsel %vm731, %v889, 1.0
  %v922 = vsel %vm731, %v890, 1.0
  %v923 = vsel %vm731, %v891, 1.0
  %v924 = vld [vmem:[%s4] sm:$0xf]
  %vm925 = vcmask 31744
  %v927 = vsel %vm925, %v892, 0
  %v930 = vsel %vm925, %v893, 0
  %v933 = vsel %vm925, %v894, 0
  %v936 = vsel %vm925, %v895, 0
  %v939 = vsel %vm925, %v896, 0
  %v942 = vsel %vm925, %v897, 0
  %v945 = vsel %vm925, %v898, 0
  %v948 = vsel %vm925, %v899, 0
  %v951 = vsel %vm925, %v900, 0
  %v954 = vsel %vm925, %v901, 0
  %v957 = vsel %vm925, %v902, 0
  %v960 = vsel %vm925, %v903, 0
  %v963 = vsel %vm925, %v904, 0
  %v966 = vsel %vm925, %v905, 0
  %v969 = vsel %vm925, %v906, 0
  %v972 = vsel %vm925, %v907, 0
  %v975 = vsel %vm925, %v908, 0
  %v978 = vsel %vm925, %v909, 0
  %v981 = vsel %vm925, %v910, 0
  %v984 = vsel %vm925, %v911, 0
  %v987 = vsel %vm925, %v912, 0
  %v990 = vsel %vm925, %v913, 0
  %v993 = vsel %vm925, %v914, 0
  %v996 = vsel %vm925, %v915, 0
  %v999 = vsel %vm925, %v916, 0
  %v1002 = vsel %vm925, %v917, 0
  %v1005 = vsel %vm925, %v918, 0
  %v1008 = vsel %vm925, %v919, 0
  %v1011 = vsel %vm925, %v920, 0
  %v1014 = vsel %vm925, %v921, 0
  %v1017 = vsel %vm925, %v922, 0
  %v1020 = vsel %vm925, %v923, 0
  %vm1022 = vcmask 1043456
  %v1024 = vsel %vm1022, %v924, 0
  %1026 = vmatprep.subr.mxu0 0.0
  %1027 = vmatpush1.msra.mxu0 %v1024
  %1028 = vmatprep.subr.mxu0 0.0
  %1029 = vmatpush1.msra.mxu0 0.0
  %1030 = vmatprep.subr.mxu0 0.0
  %1031 = vmatpush1.msra.mxu0 0.0
  %1032 = vmatprep.subr.mxu0 0.0
  %1033 = vmatpush1.msra.mxu0 0.0
  %1034 = vmatprep.subr.mxu0 0.0
  %1035 = vmatpush1.msra.mxu0 0.0
  %1036 = vmatprep.subr.mxu0 0.0
  %1037 = vmatpush1.msra.mxu0 0.0
  %1038 = vmatprep.subr.mxu0 0.0
  %1039 = vmatpush1.msra.mxu0 0.0
  %1040 = vmatprep.subr.mxu0 0.0
  %1041 = vmatpush1.msra.mxu0 0.0
  %1042 = vmatprep.subr.mxu0 0.0
  %1043 = vmatpush1.msra.mxu0 0.0
  %1044 = vmatprep.subr.mxu0 0.0
  %1045 = vmatpush1.msra.mxu0 0.0
  %1046 = vmatprep.subr.mxu0 0.0
  %1047 = vmatpush1.msra.mxu0 0.0
  %1048 = vmatprep.subr.mxu0 0.0
  %1049 = vmatpush1.msra.mxu0 0.0
  %1050 = vmatprep.subr.mxu0 0.0
  %1051 = vmatpush1.msra.mxu0 0.0
  %1052 = vmatprep.subr.mxu0 0.0
  %1053 = vmatpush1.msra.mxu0 0.0
  %1054 = vmatprep.subr.mxu0 0.0
  %1055 = vmatpush1.msra.mxu0 0.0
  %1056 = vmatprep.subr.mxu0 0.0
  %1057 = vmatpush1.msra.mxu0 0.0
  %1058 = vmatprep.subr.mxu0 0.0
  %1059 = vmatpush1.msra.mxu0 0.0
  %1060 = vmatprep.subr.mxu0 0.0
  %1061 = vmatpush1.msra.mxu0 0.0
  %1062 = vmatprep.subr.mxu0 0.0
  %1063 = vmatpush1.msra.mxu0 0.0
  %1064 = vmatprep.subr.mxu0 0.0
  %1065 = vmatpush1.msra.mxu0 0.0
  %1066 = vmatprep.subr.mxu0 0.0
  %1067 = vmatpush1.msra.mxu0 0.0
  %1068 = vmatprep.subr.mxu0 0.0
  %1069 = vmatpush1.msra.mxu0 0.0
  %1070 = vmatprep.subr.mxu0 0.0
  %1071 = vmatpush1.msra.mxu0 0.0
  %1072 = vmatprep.subr.mxu0 0.0
  %1073 = vmatpush1.msra.mxu0 0.0
  %1074 = vmatprep.subr.mxu0 0.0
  %1075 = vmatpush1.msra.mxu0 0.0
  %1076 = vmatprep.subr.mxu0 0.0
  %1077 = vmatpush1.msra.mxu0 0.0
  %1078 = vmatprep.subr.mxu0 0.0
  %1079 = vmatpush1.msra.mxu0 0.0
  %1080 = vmatprep.subr.mxu0 0.0
  %1081 = vmatpush1.msra.mxu0 0.0
  %1082 = vmatprep.subr.mxu0 0.0
  %1083 = vmatpush1.msra.mxu0 0.0
  %1084 = vmatprep.subr.mxu0 0.0
  %1085 = vmatpush1.msra.mxu0 0.0
  %1086 = vmatprep.subr.mxu0 0.0
  %1087 = vmatpush1.msra.mxu0 0.0
  %1088 = vmatprep.subr.mxu0 0.0
  %1089 = vmatpush1.msra.mxu0 0.0
  %1090 = vmatprep.mubr.f32.mxu0 0.0
  %1091 = vmatmul.mubr.f32.gmra.mrb[0].mxu0 %v927
  %v1092 = vpop.f32.mrb[0].mxu0
  %v1093 = vadd.f32 0.0, %v1092
  %v1094 = vpop.f32.mrb[0].mxu0
  %1095 = vmatprep.mubr.f32.mxu0 0.0
  %1096 = vmatmul.mubr.f32.gmra.mrb[0].mxu0 %v930
  %v1097 = vpop.f32.mrb[0].mxu0
  %v1098 = vadd.f32 0.0, %v1097
  %v1099 = vpop.f32.mrb[0].mxu0
  %1100 = vmatprep.mubr.f32.mxu0 0.0
  %1101 = vmatmul.mubr.f32.gmra.mrb[0].mxu0 %v933
  %v1102 = vpop.f32.mrb[0].mxu0
  %v1103 = vadd.f32 0.0, %v1102
  %v1104 = vpop.f32.mrb[0].mxu0
  %1105 = vmatprep.mubr.f32.mxu0 0.0
  %1106 = vmatmul.mubr.f32.gmra.mrb[0].mxu0 %v936
  %v1107 = vpop.f32.mrb[0].mxu0
  %v1108 = vadd.f32 0.0, %v1107
  %v1109 = vpop.f32.mrb[0].mxu0
  %1110 = vmatprep.mubr.f32.mxu0 0.0
  %1111 = vmatmul.mubr.f32.gmra.mrb[0].mxu0 %v939
  %v1112 = vpop.f32.mrb[0].mxu0
  %v1113 = vadd.f32 0.0, %v1112
  %v1114 = vpop.f32.mrb[0].mxu0
  %1115 = vmatprep.mubr.f32.mxu0 0.0
  %1116 = vmatmul.mubr.f32.gmra.mrb[0].mxu0 %v942
  %v1117 = vpop.f32.mrb[0].mxu0
  %v1118 = vadd.f32 0.0, %v1117
  %v1119 = vpop.f32.mrb[0].mxu0
  %1120 = vmatprep.mubr.f32.mxu0 0.0
  %1121 = vmatmul.mubr.f32.gmra.mrb[0].mxu0 %v945
  %v1122 = vpop.f32.mrb[0].mxu0
  %v1123 = vadd.f32 0.0, %v1122
  %v1124 = vpop.f32.mrb[0].mxu0
  %1125 = vmatprep.mubr.f32.mxu0 0.0
  %1126 = vmatmul.mubr.f32.gmra.mrb[0].mxu0 %v948
  %v1127 = vpop.f32.mrb[0].mxu0
  %v1128 = vadd.f32 0.0, %v1127
  %v1129 = vpop.f32.mrb[0].mxu0
  %1130 = vmatprep.mubr.f32.mxu0 0.0
  %1131 = vmatmul.mubr.f32.gmra.mrb[0].mxu0 %v951
  %v1132 = vpop.f32.mrb[0].mxu0
  %v1133 = vadd.f32 0.0, %v1132
  %v1134 = vpop.f32.mrb[0].mxu0
  %1135 = vmatprep.mubr.f32.mxu0 0.0
  %1136 = vmatmul.mubr.f32.gmra.mrb[0].mxu0 %v954
  %v1137 = vpop.f32.mrb[0].mxu0
  %v1138 = vadd.f32 0.0, %v1137
  %v1139 = vpop.f32.mrb[0].mxu0
  %1140 = vmatprep.mubr.f32.mxu0 0.0
  %1141 = vmatmul.mubr.f32.gmra.mrb[0].mxu0 %v957
  %v1142 = vpop.f32.mrb[0].mxu0
  %v1143 = vadd.f32 0.0, %v1142
  %v1144 = vpop.f32.mrb[0].mxu0
  %1145 = vmatprep.mubr.f32.mxu0 0.0
  %1146 = vmatmul.mubr.f32.gmra.mrb[0].mxu0 %v960
  %v1147 = vpop.f32.mrb[0].mxu0
  %v1148 = vadd.f32 0.0, %v1147
  %v1149 = vpop.f32.mrb[0].mxu0
  %1150 = vmatprep.mubr.f32.mxu0 0.0
  %1151 = vmatmul.mubr.f32.gmra.mrb[0].mxu0 %v963
  %v1152 = vpop.f32.mrb[0].mxu0
  %v1153 = vadd.f32 0.0, %v1152
  %v1154 = vpop.f32.mrb[0].mxu0
  %1155 = vmatprep.mubr.f32.mxu0 0.0
  %1156 = vmatmul.mubr.f32.gmra.mrb[0].mxu0 %v966
  %v1157 = vpop.f32.mrb[0].mxu0
  %v1158 = vadd.f32 0.0, %v1157
  %v1159 = vpop.f32.mrb[0].mxu0
  %1160 = vmatprep.mubr.f32.mxu0 0.0
  %1161 = vmatmul.mubr.f32.gmra.mrb[0].mxu0 %v969
  %v1162 = vpop.f32.mrb[0].mxu0
  %v1163 = vadd.f32 0.0, %v1162
  %v1164 = vpop.f32.mrb[0].mxu0
  %1165 = vmatprep.mubr.f32.mxu0 0.0
  %1166 = vmatmul.mubr.f32.gmra.mrb[0].mxu0 %v972
  %v1167 = vpop.f32.mrb[0].mxu0
  %v1168 = vadd.f32 0.0, %v1167
  %v1169 = vpop.f32.mrb[0].mxu0
  %1170 = vmatprep.mubr.f32.mxu0 0.0
  %1171 = vmatmul.mubr.f32.gmra.mrb[0].mxu0 %v975
  %v1172 = vpop.f32.mrb[0].mxu0
  %v1173 = vadd.f32 0.0, %v1172
  %v1174 = vpop.f32.mrb[0].mxu0
  %1175 = vmatprep.mubr.f32.mxu0 0.0
  %1176 = vmatmul.mubr.f32.gmra.mrb[0].mxu0 %v978
  %v1177 = vpop.f32.mrb[0].mxu0
  %v1178 = vadd.f32 0.0, %v1177
  %v1179 = vpop.f32.mrb[0].mxu0
  %1180 = vmatprep.mubr.f32.mxu0 0.0
  %1181 = vmatmul.mubr.f32.gmra.mrb[0].mxu0 %v981
  %v1182 = vpop.f32.mrb[0].mxu0
  %v1183 = vadd.f32 0.0, %v1182
  %v1184 = vpop.f32.mrb[0].mxu0
  %1185 = vmatprep.mubr.f32.mxu0 0.0
  %1186 = vmatmul.mubr.f32.gmra.mrb[0].mxu0 %v984
  %v1187 = vpop.f32.mrb[0].mxu0
  %v1188 = vadd.f32 0.0, %v1187
  %v1189 = vpop.f32.mrb[0].mxu0
  %1190 = vmatprep.mubr.f32.mxu0 0.0
  %1191 = vmatmul.mubr.f32.gmra.mrb[0].mxu0 %v987
  %v1192 = vpop.f32.mrb[0].mxu0
  %v1193 = vadd.f32 0.0, %v1192
  %v1194 = vpop.f32.mrb[0].mxu0
  %1195 = vmatprep.mubr.f32.mxu0 0.0
  %1196 = vmatmul.mubr.f32.gmra.mrb[0].mxu0 %v990
  %v1197 = vpop.f32.mrb[0].mxu0
  %v1198 = vadd.f32 0.0, %v1197
  %v1199 = vpop.f32.mrb[0].mxu0
  %1200 = vmatprep.mubr.f32.mxu0 0.0
  %1201 = vmatmul.mubr.f32.gmra.mrb[0].mxu0 %v993
  %v1202 = vpop.f32.mrb[0].mxu0
  %v1203 = vadd.f32 0.0, %v1202
  %v1204 = vpop.f32.mrb[0].mxu0
  %1205 = vmatprep.mubr.f32.mxu0 0.0
  %1206 = vmatmul.mubr.f32.gmra.mrb[0].mxu0 %v996
  %v1207 = vpop.f32.mrb[0].mxu0
  %v1208 = vadd.f32 0.0, %v1207
  %v1209 = vpop.f32.mrb[0].mxu0
  %1210 = vmatprep.mubr.f32.mxu0 0.0
  %1211 = vmatmul.mubr.f32.gmra.mrb[0].mxu0 %v999
  %v1212 = vpop.f32.mrb[0].mxu0
  %v1213 = vadd.f32 0.0, %v1212
  %v1214 = vpop.f32.mrb[0].mxu0
  %1215 = vmatprep.mubr.f32.mxu0 0.0
  %1216 = vmatmul.mubr.f32.gmra.mrb[0].mxu0 %v1002
  %v1217 = vpop.f32.mrb[0].mxu0
  %v1218 = vadd.f32 0.0, %v1217
  %v1219 = vpop.f32.mrb[0].mxu0
  %1220 = vmatprep.mubr.f32.mxu0 0.0
  %1221 = vmatmul.mubr.f32.gmra.mrb[0].mxu0 %v1005
  %v1222 = vpop.f32.mrb[0].mxu0
  %v1223 = vadd.f32 0.0, %v1222
  %v1224 = vpop.f32.mrb[0].mxu0
  %1225 = vmatprep.mubr.f32.mxu0 0.0
  %1226 = vmatmul.mubr.f32.gmra.mrb[0].mxu0 %v1008
  %v1227 = vpop.f32.mrb[0].mxu0
  %v1228 = vadd.f32 0.0, %v1227
  %v1229 = vpop.f32.mrb[0].mxu0
  %1230 = vmatprep.mubr.f32.mxu0 0.0
  %1231 = vmatmul.mubr.f32.gmra.mrb[0].mxu0 %v1011
  %v1232 = vpop.f32.mrb[0].mxu0
  %v1233 = vadd.f32 0.0, %v1232
  %v1234 = vpop.f32.mrb[0].mxu0
  %1235 = vmatprep.mubr.f32.mxu0 0.0
  %1236 = vmatmul.mubr.f32.gmra.mrb[0].mxu0 %v1014
  %v1237 = vpop.f32.mrb[0].mxu0
  %v1238 = vadd.f32 0.0, %v1237
  %v1239 = vpop.f32.mrb[0].mxu0
  %1240 = vmatprep.mubr.f32.mxu0 0.0
  %1241 = vmatmul.mubr.f32.gmra.mrb[0].mxu0 %v1017
  %v1242 = vpop.f32.mrb[0].mxu0
  %v1243 = vadd.f32 0.0, %v1242
  %v1244 = vpop.f32.mrb[0].mxu0
  %1245 = vmatprep.mubr.f32.mxu0 0.0
  %1246 = vmatmul.mubr.f32.gmra.mrb[0].mxu0 %v1020
  %v1247 = vpop.f32.mrb[0].mxu0
  %v1248 = vadd.f32 0.0, %v1247
  %v1249 = vpop.f32.mrb[0].mxu0
  %1250 = vdwg.mxu0
  %v1251 = vld [vmem:[%s5] sm:$0xf]
  %v1253 = vsel %vm1022, %v1251, 0
  %1255 = vmatprep.subr.mxu0 0.0
  %1256 = vmatpush1.msra.mxu0 %v1253
  %1257 = vmatprep.subr.mxu0 0.0
  %1258 = vmatpush1.msra.mxu0 0.0
  %1259 = vmatprep.subr.mxu0 0.0
  %1260 = vmatpush1.msra.mxu0 0.0
  %1261 = vmatprep.subr.mxu0 0.0
  %1262 = vmatpush1.msra.mxu0 0.0
  %1263 = vmatprep.subr.mxu0 0.0
  %1264 = vmatpush1.msra.mxu0 0.0
  %1265 = vmatprep.subr.mxu0 0.0
  %1266 = vmatpush1.msra.mxu0 0.0
  %1267 = vmatprep.subr.mxu0 0.0
  %1268 = vmatpush1.msra.mxu0 0.0
  %1269 = vmatprep.subr.mxu0 0.0
  %1270 = vmatpush1.msra.mxu0 0.0
  %1271 = vmatprep.subr.mxu0 0.0
  %1272 = vmatpush1.msra.mxu0 0.0
  %1273 = vmatprep.subr.mxu0 0.0
  %1274 = vmatpush1.msra.mxu0 0.0
  %1275 = vmatprep.subr.mxu0 0.0
  %1276 = vmatpush1.msra.mxu0 0.0
  %1277 = vmatprep.subr.mxu0 0.0
  %1278 = vmatpush1.msra.mxu0 0.0
  %1279 = vmatprep.subr.mxu0 0.0
  %1280 = vmatpush1.msra.mxu0 0.0
  %1281 = vmatprep.subr.mxu0 0.0
  %1282 = vmatpush1.msra.mxu0 0.0
  %1283 = vmatprep.subr.mxu0 0.0
  %1284 = vmatpush1.msra.mxu0 0.0
  %1285 = vmatprep.subr.mxu0 0.0
  %1286 = vmatpush1.msra.mxu0 0.0
  %1287 = vmatprep.subr.mxu0 0.0
  %1288 = vmatpush1.msra.mxu0 0.0
  %1289 = vmatprep.subr.mxu0 0.0
  %1290 = vmatpush1.msra.mxu0 0.0
  %1291 = vmatprep.subr.mxu0 0.0
  %1292 = vmatpush1.msra.mxu0 0.0
  %1293 = vmatprep.subr.mxu0 0.0
  %1294 = vmatpush1.msra.mxu0 0.0
  %1295 = vmatprep.subr.mxu0 0.0
  %1296 = vmatpush1.msra.mxu0 0.0
  %1297 = vmatprep.subr.mxu0 0.0
  %1298 = vmatpush1.msra.mxu0 0.0
  %1299 = vmatprep.subr.mxu0 0.0
  %1300 = vmatpush1.msra.mxu0 0.0
  %1301 = vmatprep.subr.mxu0 0.0
  %1302 = vmatpush1.msra.mxu0 0.0
  %1303 = vmatprep.subr.mxu0 0.0
  %1304 = vmatpush1.msra.mxu0 0.0
  %1305 = vmatprep.subr.mxu0 0.0
  %1306 = vmatpush1.msra.mxu0 0.0
  %1307 = vmatprep.subr.mxu0 0.0
  %1308 = vmatpush1.msra.mxu0 0.0
  %1309 = vmatprep.subr.mxu0 0.0
  %1310 = vmatpush1.msra.mxu0 0.0
  %1311 = vmatprep.subr.mxu0 0.0
  %1312 = vmatpush1.msra.mxu0 0.0
  %1313 = vmatprep.subr.mxu0 0.0
  %1314 = vmatpush1.msra.mxu0 0.0
  %1315 = vmatprep.subr.mxu0 0.0
  %1316 = vmatpush1.msra.mxu0 0.0
  %1317 = vmatprep.subr.mxu0 0.0
  %1318 = vmatpush1.msra.mxu0 0.0
  %1319 = vmatprep.mubr.f32.mxu0 0.0
  %1320 = vmatmul.mubr.f32.gmra.mrb[0].mxu0 %v927
  %v1321 = vpop.f32.mrb[0].mxu0
  %v1322 = vadd.f32 0.0, %v1321
  %v1323 = vpop.f32.mrb[0].mxu0
  %1324 = vmatprep.mubr.f32.mxu0 0.0
  %1325 = vmatmul.mubr.f32.gmra.mrb[0].mxu0 %v930
  %v1326 = vpop.f32.mrb[0].mxu0
  %v1327 = vadd.f32 0.0, %v1326
  %v1328 = vpop.f32.mrb[0].mxu0
  %1329 = vmatprep.mubr.f32.mxu0 0.0
  %1330 = vmatmul.mubr.f32.gmra.mrb[0].mxu0 %v933
  %v1331 = vpop.f32.mrb[0].mxu0
  %v1332 = vadd.f32 0.0, %v1331
  %v1333 = vpop.f32.mrb[0].mxu0
  %1334 = vmatprep.mubr.f32.mxu0 0.0
  %1335 = vmatmul.mubr.f32.gmra.mrb[0].mxu0 %v936
  %v1336 = vpop.f32.mrb[0].mxu0
  %v1337 = vadd.f32 0.0, %v1336
  %v1338 = vpop.f32.mrb[0].mxu0
  %1339 = vmatprep.mubr.f32.mxu0 0.0
  %1340 = vmatmul.mubr.f32.gmra.mrb[0].mxu0 %v939
  %v1341 = vpop.f32.mrb[0].mxu0
  %v1342 = vadd.f32 0.0, %v1341
  %v1343 = vpop.f32.mrb[0].mxu0
  %1344 = vmatprep.mubr.f32.mxu0 0.0
  %1345 = vmatmul.mubr.f32.gmra.mrb[0].mxu0 %v942
  %v1346 = vpop.f32.mrb[0].mxu0
  %v1347 = vadd.f32 0.0, %v1346
  %v1348 = vpop.f32.mrb[0].mxu0
  %1349 = vmatprep.mubr.f32.mxu0 0.0
  %1350 = vmatmul.mubr.f32.gmra.mrb[0].mxu0 %v945
  %v1351 = vpop.f32.mrb[0].mxu0
  %v1352 = vadd.f32 0.0, %v1351
  %v1353 = vpop.f32.mrb[0].mxu0
  %1354 = vmatprep.mubr.f32.mxu0 0.0
  %1355 = vmatmul.mubr.f32.gmra.mrb[0].mxu0 %v948
  %v1356 = vpop.f32.mrb[0].mxu0
  %v1357 = vadd.f32 0.0, %v1356
  %v1358 = vpop.f32.mrb[0].mxu0
  %1359 = vmatprep.mubr.f32.mxu0 0.0
  %1360 = vmatmul.mubr.f32.gmra.mrb[0].mxu0 %v951
  %v1361 = vpop.f32.mrb[0].mxu0
  %v1362 = vadd.f32 0.0, %v1361
  %v1363 = vpop.f32.mrb[0].mxu0
  %1364 = vmatprep.mubr.f32.mxu0 0.0
  %1365 = vmatmul.mubr.f32.gmra.mrb[0].mxu0 %v954
  %v1366 = vpop.f32.mrb[0].mxu0
  %v1367 = vadd.f32 0.0, %v1366
  %v1368 = vpop.f32.mrb[0].mxu0
  %1369 = vmatprep.mubr.f32.mxu0 0.0
  %1370 = vmatmul.mubr.f32.gmra.mrb[0].mxu0 %v957
  %v1371 = vpop.f32.mrb[0].mxu0
  %v1372 = vadd.f32 0.0, %v1371
  %v1373 = vpop.f32.mrb[0].mxu0
  %1374 = vmatprep.mubr.f32.mxu0 0.0
  %1375 = vmatmul.mubr.f32.gmra.mrb[0].mxu0 %v960
  %v1376 = vpop.f32.mrb[0].mxu0
  %v1377 = vadd.f32 0.0, %v1376
  %v1378 = vpop.f32.mrb[0].mxu0
  %1379 = vmatprep.mubr.f32.mxu0 0.0
  %1380 = vmatmul.mubr.f32.gmra.mrb[0].mxu0 %v963
  %v1381 = vpop.f32.mrb[0].mxu0
  %v1382 = vadd.f32 0.0, %v1381
  %v1383 = vpop.f32.mrb[0].mxu0
  %1384 = vmatprep.mubr.f32.mxu0 0.0
  %1385 = vmatmul.mubr.f32.gmra.mrb[0].mxu0 %v966
  %v1386 = vpop.f32.mrb[0].mxu0
  %v1387 = vadd.f32 0.0, %v1386
  %v1388 = vpop.f32.mrb[0].mxu0
  %1389 = vmatprep.mubr.f32.mxu0 0.0
  %1390 = vmatmul.mubr.f32.gmra.mrb[0].mxu0 %v969
  %v1391 = vpop.f32.mrb[0].mxu0
  %v1392 = vadd.f32 0.0, %v1391
  %v1393 = vpop.f32.mrb[0].mxu0
  %1394 = vmatprep.mubr.f32.mxu0 0.0
  %1395 = vmatmul.mubr.f32.gmra.mrb[0].mxu0 %v972
  %v1396 = vpop.f32.mrb[0].mxu0
  %v1397 = vadd.f32 0.0, %v1396
  %v1398 = vpop.f32.mrb[0].mxu0
  %1399 = vmatprep.mubr.f32.mxu0 0.0
  %1400 = vmatmul.mubr.f32.gmra.mrb[0].mxu0 %v975
  %v1401 = vpop.f32.mrb[0].mxu0
  %v1402 = vadd.f32 0.0, %v1401
  %v1403 = vpop.f32.mrb[0].mxu0
  %1404 = vmatprep.mubr.f32.mxu0 0.0
  %1405 = vmatmul.mubr.f32.gmra.mrb[0].mxu0 %v978
  %v1406 = vpop.f32.mrb[0].mxu0
  %v1407 = vadd.f32 0.0, %v1406
  %v1408 = vpop.f32.mrb[0].mxu0
  %1409 = vmatprep.mubr.f32.mxu0 0.0
  %1410 = vmatmul.mubr.f32.gmra.mrb[0].mxu0 %v981
  %v1411 = vpop.f32.mrb[0].mxu0
  %v1412 = vadd.f32 0.0, %v1411
  %v1413 = vpop.f32.mrb[0].mxu0
  %1414 = vmatprep.mubr.f32.mxu0 0.0
  %1415 = vmatmul.mubr.f32.gmra.mrb[0].mxu0 %v984
  %v1416 = vpop.f32.mrb[0].mxu0
  %v1417 = vadd.f32 0.0, %v1416
  %v1418 = vpop.f32.mrb[0].mxu0
  %1419 = vmatprep.mubr.f32.mxu0 0.0
  %1420 = vmatmul.mubr.f32.gmra.mrb[0].mxu0 %v987
  %v1421 = vpop.f32.mrb[0].mxu0
  %v1422 = vadd.f32 0.0, %v1421
  %v1423 = vpop.f32.mrb[0].mxu0
  %1424 = vmatprep.mubr.f32.mxu0 0.0
  %1425 = vmatmul.mubr.f32.gmra.mrb[0].mxu0 %v990
  %v1426 = vpop.f32.mrb[0].mxu0
  %v1427 = vadd.f32 0.0, %v1426
  %v1428 = vpop.f32.mrb[0].mxu0
  %1429 = vmatprep.mubr.f32.mxu0 0.0
  %1430 = vmatmul.mubr.f32.gmra.mrb[0].mxu0 %v993
  %v1431 = vpop.f32.mrb[0].mxu0
  %v1432 = vadd.f32 0.0, %v1431
  %v1433 = vpop.f32.mrb[0].mxu0
  %1434 = vmatprep.mubr.f32.mxu0 0.0
  %1435 = vmatmul.mubr.f32.gmra.mrb[0].mxu0 %v996
  %v1436 = vpop.f32.mrb[0].mxu0
  %v1437 = vadd.f32 0.0, %v1436
  %v1438 = vpop.f32.mrb[0].mxu0
  %1439 = vmatprep.mubr.f32.mxu0 0.0
  %1440 = vmatmul.mubr.f32.gmra.mrb[0].mxu0 %v999
  %v1441 = vpop.f32.mrb[0].mxu0
  %v1442 = vadd.f32 0.0, %v1441
  %v1443 = vpop.f32.mrb[0].mxu0
  %1444 = vmatprep.mubr.f32.mxu0 0.0
  %1445 = vmatmul.mubr.f32.gmra.mrb[0].mxu0 %v1002
  %v1446 = vpop.f32.mrb[0].mxu0
  %v1447 = vadd.f32 0.0, %v1446
  %v1448 = vpop.f32.mrb[0].mxu0
  %1449 = vmatprep.mubr.f32.mxu0 0.0
  %1450 = vmatmul.mubr.f32.gmra.mrb[0].mxu0 %v1005
  %v1451 = vpop.f32.mrb[0].mxu0
  %v1452 = vadd.f32 0.0, %v1451
  %v1453 = vpop.f32.mrb[0].mxu0
  %1454 = vmatprep.mubr.f32.mxu0 0.0
  %1455 = vmatmul.mubr.f32.gmra.mrb[0].mxu0 %v1008
  %v1456 = vpop.f32.mrb[0].mxu0
  %v1457 = vadd.f32 0.0, %v1456
  %v1458 = vpop.f32.mrb[0].mxu0
  %1459 = vmatprep.mubr.f32.mxu0 0.0
  %1460 = vmatmul.mubr.f32.gmra.mrb[0].mxu0 %v1011
  %v1461 = vpop.f32.mrb[0].mxu0
  %v1462 = vadd.f32 0.0, %v1461
  %v1463 = vpop.f32.mrb[0].mxu0
  %1464 = vmatprep.mubr.f32.mxu0 0.0
  %1465 = vmatmul.mubr.f32.gmra.mrb[0].mxu0 %v1014
  %v1466 = vpop.f32.mrb[0].mxu0
  %v1467 = vadd.f32 0.0, %v1466
  %v1468 = vpop.f32.mrb[0].mxu0
  %1469 = vmatprep.mubr.f32.mxu0 0.0
  %1470 = vmatmul.mubr.f32.gmra.mrb[0].mxu0 %v1017
  %v1471 = vpop.f32.mrb[0].mxu0
  %v1472 = vadd.f32 0.0, %v1471
  %v1473 = vpop.f32.mrb[0].mxu0
  %1474 = vmatprep.mubr.f32.mxu0 0.0
  %1475 = vmatmul.mubr.f32.gmra.mrb[0].mxu0 %v1020
  %v1476 = vpop.f32.mrb[0].mxu0
  %v1477 = vadd.f32 0.0, %v1476
  %v1478 = vpop.f32.mrb[0].mxu0
  %1479 = vdwg.mxu0
  %v1480 = vld [vmem:[%s6] sm:$0xf]
  %v1482 = vsel %vm1022, %v1480, 0
  %1484 = vmatprep.subr.mxu0 0.0
  %1485 = vmatpush1.msra.mxu0 %v1482
  %1486 = vmatprep.subr.mxu0 0.0
  %1487 = vmatpush1.msra.mxu0 0.0
  %1488 = vmatprep.subr.mxu0 0.0
  %1489 = vmatpush1.msra.mxu0 0.0
  %1490 = vmatprep.subr.mxu0 0.0
  %1491 = vmatpush1.msra.mxu0 0.0
  %1492 = vmatprep.subr.mxu0 0.0
  %1493 = vmatpush1.msra.mxu0 0.0
  %1494 = vmatprep.subr.mxu0 0.0
  %1495 = vmatpush1.msra.mxu0 0.0
  %1496 = vmatprep.subr.mxu0 0.0
  %1497 = vmatpush1.msra.mxu0 0.0
  %1498 = vmatprep.subr.mxu0 0.0
  %1499 = vmatpush1.msra.mxu0 0.0
  %1500 = vmatprep.subr.mxu0 0.0
  %1501 = vmatpush1.msra.mxu0 0.0
  %1502 = vmatprep.subr.mxu0 0.0
  %1503 = vmatpush1.msra.mxu0 0.0
  %1504 = vmatprep.subr.mxu0 0.0
  %1505 = vmatpush1.msra.mxu0 0.0
  %1506 = vmatprep.subr.mxu0 0.0
  %1507 = vmatpush1.msra.mxu0 0.0
  %1508 = vmatprep.subr.mxu0 0.0
  %1509 = vmatpush1.msra.mxu0 0.0
  %1510 = vmatprep.subr.mxu0 0.0
  %1511 = vmatpush1.msra.mxu0 0.0
  %1512 = vmatprep.subr.mxu0 0.0
  %1513 = vmatpush1.msra.mxu0 0.0
  %1514 = vmatprep.subr.mxu0 0.0
  %1515 = vmatpush1.msra.mxu0 0.0
  %1516 = vmatprep.subr.mxu0 0.0
  %1517 = vmatpush1.msra.mxu0 0.0
  %1518 = vmatprep.subr.mxu0 0.0
  %1519 = vmatpush1.msra.mxu0 0.0
  %1520 = vmatprep.subr.mxu0 0.0
  %1521 = vmatpush1.msra.mxu0 0.0
  %1522 = vmatprep.subr.mxu0 0.0
  %1523 = vmatpush1.msra.mxu0 0.0
  %1524 = vmatprep.subr.mxu0 0.0
  %1525 = vmatpush1.msra.mxu0 0.0
  %1526 = vmatprep.subr.mxu0 0.0
  %1527 = vmatpush1.msra.mxu0 0.0
  %1528 = vmatprep.subr.mxu0 0.0
  %1529 = vmatpush1.msra.mxu0 0.0
  %1530 = vmatprep.subr.mxu0 0.0
  %1531 = vmatpush1.msra.mxu0 0.0
  %1532 = vmatprep.subr.mxu0 0.0
  %1533 = vmatpush1.msra.mxu0 0.0
  %1534 = vmatprep.subr.mxu0 0.0
  %1535 = vmatpush1.msra.mxu0 0.0
  %1536 = vmatprep.subr.mxu0 0.0
  %1537 = vmatpush1.msra.mxu0 0.0
  %1538 = vmatprep.subr.mxu0 0.0
  %1539 = vmatpush1.msra.mxu0 0.0
  %1540 = vmatprep.subr.mxu0 0.0
  %1541 = vmatpush1.msra.mxu0 0.0
  %1542 = vmatprep.subr.mxu0 0.0
  %1543 = vmatpush1.msra.mxu0 0.0
  %1544 = vmatprep.subr.mxu0 0.0
  %1545 = vmatpush1.msra.mxu0 0.0
  %1546 = vmatprep.subr.mxu0 0.0
  %1547 = vmatpush1.msra.mxu0 0.0
  %1548 = vmatprep.mubr.f32.mxu0 0.0
  %1549 = vmatmul.mubr.f32.gmra.mrb[0].mxu0 %v927
  %v1550 = vpop.f32.mrb[0].mxu0
  %v1551 = vadd.f32 0.0, %v1550
  %v1552 = vpop.f32.mrb[0].mxu0
  %1553 = vmatprep.mubr.f32.mxu0 0.0
  %1554 = vmatmul.mubr.f32.gmra.mrb[0].mxu0 %v930
  %v1555 = vpop.f32.mrb[0].mxu0
  %v1556 = vadd.f32 0.0, %v1555
  %v1557 = vpop.f32.mrb[0].mxu0
  %1558 = vmatprep.mubr.f32.mxu0 0.0
  %1559 = vmatmul.mubr.f32.gmra.mrb[0].mxu0 %v933
  %v1560 = vpop.f32.mrb[0].mxu0
  %v1561 = vadd.f32 0.0, %v1560
  %v1562 = vpop.f32.mrb[0].mxu0
  %1563 = vmatprep.mubr.f32.mxu0 0.0
  %1564 = vmatmul.mubr.f32.gmra.mrb[0].mxu0 %v936
  %v1565 = vpop.f32.mrb[0].mxu0
  %v1566 = vadd.f32 0.0, %v1565
  %v1567 = vpop.f32.mrb[0].mxu0
  %1568 = vmatprep.mubr.f32.mxu0 0.0
  %1569 = vmatmul.mubr.f32.gmra.mrb[0].mxu0 %v939
  %v1570 = vpop.f32.mrb[0].mxu0
  %v1571 = vadd.f32 0.0, %v1570
  %v1572 = vpop.f32.mrb[0].mxu0
  %1573 = vmatprep.mubr.f32.mxu0 0.0
  %1574 = vmatmul.mubr.f32.gmra.mrb[0].mxu0 %v942
  %v1575 = vpop.f32.mrb[0].mxu0
  %v1576 = vadd.f32 0.0, %v1575
  %v1577 = vpop.f32.mrb[0].mxu0
  %1578 = vmatprep.mubr.f32.mxu0 0.0
  %1579 = vmatmul.mubr.f32.gmra.mrb[0].mxu0 %v945
  %v1580 = vpop.f32.mrb[0].mxu0
  %v1581 = vadd.f32 0.0, %v1580
  %v1582 = vpop.f32.mrb[0].mxu0
  %1583 = vmatprep.mubr.f32.mxu0 0.0
  %1584 = vmatmul.mubr.f32.gmra.mrb[0].mxu0 %v948
  %v1585 = vpop.f32.mrb[0].mxu0
  %v1586 = vadd.f32 0.0, %v1585
  %v1587 = vpop.f32.mrb[0].mxu0
  %1588 = vmatprep.mubr.f32.mxu0 0.0
  %1589 = vmatmul.mubr.f32.gmra.mrb[0].mxu0 %v951
  %v1590 = vpop.f32.mrb[0].mxu0
  %v1591 = vadd.f32 0.0, %v1590
  %v1592 = vpop.f32.mrb[0].mxu0
  %1593 = vmatprep.mubr.f32.mxu0 0.0
  %1594 = vmatmul.mubr.f32.gmra.mrb[0].mxu0 %v954
  %v1595 = vpop.f32.mrb[0].mxu0
  %v1596 = vadd.f32 0.0, %v1595
  %v1597 = vpop.f32.mrb[0].mxu0
  %1598 = vmatprep.mubr.f32.mxu0 0.0
  %1599 = vmatmul.mubr.f32.gmra.mrb[0].mxu0 %v957
  %v1600 = vpop.f32.mrb[0].mxu0
  %v1601 = vadd.f32 0.0, %v1600
  %v1602 = vpop.f32.mrb[0].mxu0
  %1603 = vmatprep.mubr.f32.mxu0 0.0
  %1604 = vmatmul.mubr.f32.gmra.mrb[0].mxu0 %v960
  %v1605 = vpop.f32.mrb[0].mxu0
  %v1606 = vadd.f32 0.0, %v1605
  %v1607 = vpop.f32.mrb[0].mxu0
  %1608 = vmatprep.mubr.f32.mxu0 0.0
  %1609 = vmatmul.mubr.f32.gmra.mrb[0].mxu0 %v963
  %v1610 = vpop.f32.mrb[0].mxu0
  %v1611 = vadd.f32 0.0, %v1610
  %v1612 = vpop.f32.mrb[0].mxu0
  %1613 = vmatprep.mubr.f32.mxu0 0.0
  %1614 = vmatmul.mubr.f32.gmra.mrb[0].mxu0 %v966
  %v1615 = vpop.f32.mrb[0].mxu0
  %v1616 = vadd.f32 0.0, %v1615
  %v1617 = vpop.f32.mrb[0].mxu0
  %1618 = vmatprep.mubr.f32.mxu0 0.0
  %1619 = vmatmul.mubr.f32.gmra.mrb[0].mxu0 %v969
  %v1620 = vpop.f32.mrb[0].mxu0
  %v1621 = vadd.f32 0.0, %v1620
  %v1622 = vpop.f32.mrb[0].mxu0
  %1623 = vmatprep.mubr.f32.mxu0 0.0
  %1624 = vmatmul.mubr.f32.gmra.mrb[0].mxu0 %v972
  %v1625 = vpop.f32.mrb[0].mxu0
  %v1626 = vadd.f32 0.0, %v1625
  %v1627 = vpop.f32.mrb[0].mxu0
  %1628 = vmatprep.mubr.f32.mxu0 0.0
  %1629 = vmatmul.mubr.f32.gmra.mrb[0].mxu0 %v975
  %v1630 = vpop.f32.mrb[0].mxu0
  %v1631 = vadd.f32 0.0, %v1630
  %v1632 = vpop.f32.mrb[0].mxu0
  %1633 = vmatprep.mubr.f32.mxu0 0.0
  %1634 = vmatmul.mubr.f32.gmra.mrb[0].mxu0 %v978
  %v1635 = vpop.f32.mrb[0].mxu0
  %v1636 = vadd.f32 0.0, %v1635
  %v1637 = vpop.f32.mrb[0].mxu0
  %1638 = vmatprep.mubr.f32.mxu0 0.0
  %1639 = vmatmul.mubr.f32.gmra.mrb[0].mxu0 %v981
  %v1640 = vpop.f32.mrb[0].mxu0
  %v1641 = vadd.f32 0.0, %v1640
  %v1642 = vpop.f32.mrb[0].mxu0
  %1643 = vmatprep.mubr.f32.mxu0 0.0
  %1644 = vmatmul.mubr.f32.gmra.mrb[0].mxu0 %v984
  %v1645 = vpop.f32.mrb[0].mxu0
  %v1646 = vadd.f32 0.0, %v1645
  %v1647 = vpop.f32.mrb[0].mxu0
  %1648 = vmatprep.mubr.f32.mxu0 0.0
  %1649 = vmatmul.mubr.f32.gmra.mrb[0].mxu0 %v987
  %v1650 = vpop.f32.mrb[0].mxu0
  %v1651 = vadd.f32 0.0, %v1650
  %v1652 = vpop.f32.mrb[0].mxu0
  %1653 = vmatprep.mubr.f32.mxu0 0.0
  %1654 = vmatmul.mubr.f32.gmra.mrb[0].mxu0 %v990
  %v1655 = vpop.f32.mrb[0].mxu0
  %v1656 = vadd.f32 0.0, %v1655
  %v1657 = vpop.f32.mrb[0].mxu0
  %1658 = vmatprep.mubr.f32.mxu0 0.0
  %1659 = vmatmul.mubr.f32.gmra.mrb[0].mxu0 %v993
  %v1660 = vpop.f32.mrb[0].mxu0
  %v1661 = vadd.f32 0.0, %v1660
  %v1662 = vpop.f32.mrb[0].mxu0
  %1663 = vmatprep.mubr.f32.mxu0 0.0
  %1664 = vmatmul.mubr.f32.gmra.mrb[0].mxu0 %v996
  %v1665 = vpop.f32.mrb[0].mxu0
  %v1666 = vadd.f32 0.0, %v1665
  %v1667 = vpop.f32.mrb[0].mxu0
  %1668 = vmatprep.mubr.f32.mxu0 0.0
  %1669 = vmatmul.mubr.f32.gmra.mrb[0].mxu0 %v999
  %v1670 = vpop.f32.mrb[0].mxu0
  %v1671 = vadd.f32 0.0, %v1670
  %v1672 = vpop.f32.mrb[0].mxu0
  %1673 = vmatprep.mubr.f32.mxu0 0.0
  %1674 = vmatmul.mubr.f32.gmra.mrb[0].mxu0 %v1002
  %v1675 = vpop.f32.mrb[0].mxu0
  %v1676 = vadd.f32 0.0, %v1675
  %v1677 = vpop.f32.mrb[0].mxu0
  %1678 = vmatprep.mubr.f32.mxu0 0.0
  %1679 = vmatmul.mubr.f32.gmra.mrb[0].mxu0 %v1005
  %v1680 = vpop.f32.mrb[0].mxu0
  %v1681 = vadd.f32 0.0, %v1680
  %v1682 = vpop.f32.mrb[0].mxu0
  %1683 = vmatprep.mubr.f32.mxu0 0.0
  %1684 = vmatmul.mubr.f32.gmra.mrb[0].mxu0 %v1008
  %v1685 = vpop.f32.mrb[0].mxu0
  %v1686 = vadd.f32 0.0, %v1685
  %v1687 = vpop.f32.mrb[0].mxu0
  %1688 = vmatprep.mubr.f32.mxu0 0.0
  %1689 = vmatmul.mubr.f32.gmra.mrb[0].mxu0 %v1011
  %v1690 = vpop.f32.mrb[0].mxu0
  %v1691 = vadd.f32 0.0, %v1690
  %v1692 = vpop.f32.mrb[0].mxu0
  %1693 = vmatprep.mubr.f32.mxu0 0.0
  %1694 = vmatmul.mubr.f32.gmra.mrb[0].mxu0 %v1014
  %v1695 = vpop.f32.mrb[0].mxu0
  %v1696 = vadd.f32 0.0, %v1695
  %v1697 = vpop.f32.mrb[0].mxu0
  %1698 = vmatprep.mubr.f32.mxu0 0.0
  %1699 = vmatmul.mubr.f32.gmra.mrb[0].mxu0 %v1017
  %v1700 = vpop.f32.mrb[0].mxu0
  %v1701 = vadd.f32 0.0, %v1700
  %v1702 = vpop.f32.mrb[0].mxu0
  %1703 = vmatprep.mubr.f32.mxu0 0.0
  %1704 = vmatmul.mubr.f32.gmra.mrb[0].mxu0 %v1020
  %v1705 = vpop.f32.mrb[0].mxu0
  %v1706 = vadd.f32 0.0, %v1705
  %v1707 = vpop.f32.mrb[0].mxu0
  %1708 = vdwg.mxu0
  %v1709 = vmul.f32 %v1093, %v1322
  %v1710 = vmul.f32 %v1098, %v1327
  %v1711 = vmul.f32 %v1103, %v1332
  %v1712 = vmul.f32 %v1108, %v1337
  %v1713 = vmul.f32 %v1113, %v1342
  %v1714 = vmul.f32 %v1118, %v1347
  %v1715 = vmul.f32 %v1123, %v1352
  %v1716 = vmul.f32 %v1128, %v1357
  %v1717 = vmul.f32 %v1133, %v1362
  %v1718 = vmul.f32 %v1138, %v1367
  %v1719 = vmul.f32 %v1143, %v1372
  %v1720 = vmul.f32 %v1148, %v1377
  %v1721 = vmul.f32 %v1153, %v1382
  %v1722 = vmul.f32 %v1158, %v1387
  %v1723 = vmul.f32 %v1163, %v1392
  %v1724 = vmul.f32 %v1168, %v1397
  %v1725 = vmul.f32 %v1173, %v1402
  %v1726 = vmul.f32 %v1178, %v1407
  %v1727 = vmul.f32 %v1183, %v1412
  %v1728 = vmul.f32 %v1188, %v1417
  %v1729 = vmul.f32 %v1193, %v1422
  %v1730 = vmul.f32 %v1198, %v1427
  %v1731 = vmul.f32 %v1203, %v1432
  %v1732 = vmul.f32 %v1208, %v1437
  %v1733 = vmul.f32 %v1213, %v1442
  %v1734 = vmul.f32 %v1218, %v1447
  %v1735 = vmul.f32 %v1223, %v1452
  %v1736 = vmul.f32 %v1228, %v1457
  %v1737 = vmul.f32 %v1233, %v1462
  %v1738 = vmul.f32 %v1238, %v1467
  %v1739 = vmul.f32 %v1243, %v1472
  %v1740 = vmul.f32 %v1248, %v1477
  %v1741 = vmul.f32 %v1709, %v1551
  %v1742 = vmul.f32 %v1710, %v1556
  %v1743 = vmul.f32 %v1711, %v1561
  %v1744 = vmul.f32 %v1712, %v1566
  %v1745 = vmul.f32 %v1713, %v1571
  %v1746 = vmul.f32 %v1714, %v1576
  %v1747 = vmul.f32 %v1715, %v1581
  %v1748 = vmul.f32 %v1716, %v1586
  %v1749 = vmul.f32 %v1717, %v1591
  %v1750 = vmul.f32 %v1718, %v1596
  %v1751 = vmul.f32 %v1719, %v1601
  %v1752 = vmul.f32 %v1720, %v1606
  %v1753 = vmul.f32 %v1721, %v1611
  %v1754 = vmul.f32 %v1722, %v1616
  %v1755 = vmul.f32 %v1723, %v1621
  %v1756 = vmul.f32 %v1724, %v1626
  %v1757 = vmul.f32 %v1725, %v1631
  %v1758 = vmul.f32 %v1726, %v1636
  %v1759 = vmul.f32 %v1727, %v1641
  %v1760 = vmul.f32 %v1728, %v1646
  %v1761 = vmul.f32 %v1729, %v1651
  %v1762 = vmul.f32 %v1730, %v1656
  %v1763 = vmul.f32 %v1731, %v1661
  %v1764 = vmul.f32 %v1732, %v1666
  %v1765 = vmul.f32 %v1733, %v1671
  %v1766 = vmul.f32 %v1734, %v1676
  %v1767 = vmul.f32 %v1735, %v1681
  %v1768 = vmul.f32 %v1736, %v1686
  %v1769 = vmul.f32 %v1737, %v1691
  %v1770 = vmul.f32 %v1738, %v1696
  %v1771 = vmul.f32 %v1739, %v1701
  %v1772 = vmul.f32 %v1740, %v1706
  %v1773 = vpack.c.bf16 %v1742, %v1741
  %v1774 = vpack.c.bf16 %v1744, %v1743
  %v1775 = vpack.c.bf16 %v1746, %v1745
  %v1776 = vpack.c.bf16 %v1748, %v1747
  %v1777 = vpack.c.bf16 %v1750, %v1749
  %v1778 = vpack.c.bf16 %v1752, %v1751
  %v1779 = vpack.c.bf16 %v1754, %v1753
  %v1780 = vpack.c.bf16 %v1756, %v1755
  %v1781 = vpack.c.bf16 %v1758, %v1757
  %v1782 = vpack.c.bf16 %v1760, %v1759
  %v1783 = vpack.c.bf16 %v1762, %v1761
  %v1784 = vpack.c.bf16 %v1764, %v1763
  %v1785 = vpack.c.bf16 %v1766, %v1765
  %v1786 = vpack.c.bf16 %v1768, %v1767
  %v1787 = vpack.c.bf16 %v1770, %v1769
  %v1788 = vpack.c.bf16 %v1772, %v1771
  %v1789 = vld [vmem:[%s7] sm:$0xf]
  %v1790 = vld [vmem:[%s7 + $0x4] sm:$0xf]
  %v1791 = vld [vmem:[%s7 + $0x8] sm:$0x3]
  %v1792 = vpack.c.bf16 %v480, %v477
  %v1793 = vpack.c.bf16 %v488, %v485
  %v1794 = vpack.c.bf16 %v496, %v493
  %v1795 = vpack.c.bf16 %v504, %v501
  %v1796 = vpack.c.bf16 %v512, %v509
  %v1797 = vpack.c.bf16 %v520, %v517
  %v1798 = vpack.c.bf16 %v528, %v525
  %v1799 = vpack.c.bf16 %v536, %v533
  %v1800 = vpack.c.bf16 %v544, %v541
  %v1801 = vpack.c.bf16 %v552, %v549
  %v1802 = vpack.c.bf16 %v560, %v557
  %v1803 = vpack.c.bf16 %v568, %v565
  %v1804 = vpack.c.bf16 %v576, %v573
  %v1805 = vpack.c.bf16 %v584, %v581
  %v1806 = vpack.c.bf16 %v592, %v589
  %v1807 = vpack.c.bf16 %v600, %v597
  %v1808 = vld [vmem:[%s8] sm:$0xf]
  %v1809 = vld [vmem:[%s8 + $0x4] sm:$0xf]
  %v1812 = vunpack.c.l.b16 %v1808
  %v1813 = vunpack.c.l.b16 %v1809
  %v1814 = vpack.c.b16 %v1813, %v1812
  %vm1816 = vcmask 130048
  %v1818 = vsel %vm1816, %v1792, 0
  %v1821 = vsel %vm1816, %v1793, 0
  %v1824 = vsel %vm1816, %v1794, 0
  %v1827 = vsel %vm1816, %v1795, 0
  %v1830 = vsel %vm1816, %v1796, 0
  %v1833 = vsel %vm1816, %v1797, 0
  %v1836 = vsel %vm1816, %v1798, 0
  %v1839 = vsel %vm1816, %v1799, 0
  %v1842 = vsel %vm1816, %v1800, 0
  %v1845 = vsel %vm1816, %v1801, 0
  %v1848 = vsel %vm1816, %v1802, 0
  %v1851 = vsel %vm1816, %v1803, 0
  %v1854 = vsel %vm1816, %v1804, 0
  %v1857 = vsel %vm1816, %v1805, 0
  %v1860 = vsel %vm1816, %v1806, 0
  %v1863 = vsel %vm1816, %v1807, 0
  %1865 = vmatprep.subr.bf16.mxu0 0
  %1866 = vmatpush1.bf16.msra.mxu0 %v1814
  %1867 = vmatprep.subr.bf16.mxu0 0
  %1868 = vmatpush1.bf16.msra.mxu0 0
  %1869 = vmatprep.subr.bf16.mxu0 0
  %1870 = vmatpush1.bf16.msra.mxu0 0
  %1871 = vmatprep.subr.bf16.mxu0 0
  %1872 = vmatpush1.bf16.msra.mxu0 0
  %1873 = vmatprep.subr.bf16.mxu0 0
  %1874 = vmatpush1.bf16.msra.mxu0 0
  %1875 = vmatprep.subr.bf16.mxu0 0
  %1876 = vmatpush1.bf16.msra.mxu0 0
  %1877 = vmatprep.subr.bf16.mxu0 0
  %1878 = vmatpush1.bf16.msra.mxu0 0
  %1879 = vmatprep.subr.bf16.mxu0 0
  %1880 = vmatpush1.bf16.msra.mxu0 0
  %1881 = vmatprep.subr.bf16.mxu0 0
  %1882 = vmatpush1.bf16.msra.mxu0 0
  %1883 = vmatprep.subr.bf16.mxu0 0
  %1884 = vmatpush1.bf16.msra.mxu0 0
  %1885 = vmatprep.subr.bf16.mxu0 0
  %1886 = vmatpush1.bf16.msra.mxu0 0
  %1887 = vmatprep.subr.bf16.mxu0 0
  %1888 = vmatpush1.bf16.msra.mxu0 0
  %1889 = vmatprep.subr.bf16.mxu0 0
  %1890 = vmatpush1.bf16.msra.mxu0 0
  %1891 = vmatprep.subr.bf16.mxu0 0
  %1892 = vmatpush1.bf16.msra.mxu0 0
  %1893 = vmatprep.subr.bf16.mxu0 0
  %1894 = vmatpush1.bf16.msra.mxu0 0
  %1895 = vmatprep.subr.bf16.mxu0 0
  %1896 = vmatpush1.bf16.msra.mxu0 0
  %1897 = vmatprep.mubr.bf16.mxu0 0
  %1898 = vmatmul.mubr.bf16.gmra.mrb[0].mxu0 %v1818
  %v1899 = vpop.f32.mrb[0].mxu0
  %v1900 = vadd.f32 0.0, %v1899
  %v1901 = vpop.f32.mrb[0].mxu0
  %v1902 = vpop.f32.mrb[0].mxu0
  %v1903 = vadd.f32 0.0, %v1902
  %v1904 = vpop.f32.mrb[0].mxu0
  %1905 = vmatprep.mubr.bf16.mxu0 0
  %1906 = vmatmul.mubr.bf16.gmra.mrb[0].mxu0 %v1821
  %v1907 = vpop.f32.mrb[0].mxu0
  %v1908 = vadd.f32 0.0, %v1907
  %v1909 = vpop.f32.mrb[0].mxu0
  %v1910 = vpop.f32.mrb[0].mxu0
  %v1911 = vadd.f32 0.0, %v1910
  %v1912 = vpop.f32.mrb[0].mxu0
  %1913 = vmatprep.mubr.bf16.mxu0 0
  %1914 = vmatmul.mubr.bf16.gmra.mrb[0].mxu0 %v1824
  %v1915 = vpop.f32.mrb[0].mxu0
  %v1916 = vadd.f32 0.0, %v1915
  %v1917 = vpop.f32.mrb[0].mxu0
  %v1918 = vpop.f32.mrb[0].mxu0
  %v1919 = vadd.f32 0.0, %v1918
  %v1920 = vpop.f32.mrb[0].mxu0
  %1921 = vmatprep.mubr.bf16.mxu0 0
  %1922 = vmatmul.mubr.bf16.gmra.mrb[0].mxu0 %v1827
  %v1923 = vpop.f32.mrb[0].mxu0
  %v1924 = vadd.f32 0.0, %v1923
  %v1925 = vpop.f32.mrb[0].mxu0
  %v1926 = vpop.f32.mrb[0].mxu0
  %v1927 = vadd.f32 0.0, %v1926
  %v1928 = vpop.f32.mrb[0].mxu0
  %1929 = vmatprep.mubr.bf16.mxu0 0
  %1930 = vmatmul.mubr.bf16.gmra.mrb[0].mxu0 %v1830
  %v1931 = vpop.f32.mrb[0].mxu0
  %v1932 = vadd.f32 0.0, %v1931
  %v1933 = vpop.f32.mrb[0].mxu0
  %v1934 = vpop.f32.mrb[0].mxu0
  %v1935 = vadd.f32 0.0, %v1934
  %v1936 = vpop.f32.mrb[0].mxu0
  %1937 = vmatprep.mubr.bf16.mxu0 0
  %1938 = vmatmul.mubr.bf16.gmra.mrb[0].mxu0 %v1833
  %v1939 = vpop.f32.mrb[0].mxu0
  %v1940 = vadd.f32 0.0, %v1939
  %v1941 = vpop.f32.mrb[0].mxu0
  %v1942 = vpop.f32.mrb[0].mxu0
  %v1943 = vadd.f32 0.0, %v1942
  %v1944 = vpop.f32.mrb[0].mxu0
  %1945 = vmatprep.mubr.bf16.mxu0 0
  %1946 = vmatmul.mubr.bf16.gmra.mrb[0].mxu0 %v1836
  %v1947 = vpop.f32.mrb[0].mxu0
  %v1948 = vadd.f32 0.0, %v1947
  %v1949 = vpop.f32.mrb[0].mxu0
  %v1950 = vpop.f32.mrb[0].mxu0
  %v1951 = vadd.f32 0.0, %v1950
  %v1952 = vpop.f32.mrb[0].mxu0
  %1953 = vmatprep.mubr.bf16.mxu0 0
  %1954 = vmatmul.mubr.bf16.gmra.mrb[0].mxu0 %v1839
  %v1955 = vpop.f32.mrb[0].mxu0
  %v1956 = vadd.f32 0.0, %v1955
  %v1957 = vpop.f32.mrb[0].mxu0
  %v1958 = vpop.f32.mrb[0].mxu0
  %v1959 = vadd.f32 0.0, %v1958
  %v1960 = vpop.f32.mrb[0].mxu0
  %1961 = vmatprep.mubr.bf16.mxu0 0
  %1962 = vmatmul.mubr.bf16.gmra.mrb[0].mxu0 %v1842
  %v1963 = vpop.f32.mrb[0].mxu0
  %v1964 = vadd.f32 0.0, %v1963
  %v1965 = vpop.f32.mrb[0].mxu0
  %v1966 = vpop.f32.mrb[0].mxu0
  %v1967 = vadd.f32 0.0, %v1966
  %v1968 = vpop.f32.mrb[0].mxu0
  %1969 = vmatprep.mubr.bf16.mxu0 0
  %1970 = vmatmul.mubr.bf16.gmra.mrb[0].mxu0 %v1845
  %v1971 = vpop.f32.mrb[0].mxu0
  %v1972 = vadd.f32 0.0, %v1971
  %v1973 = vpop.f32.mrb[0].mxu0
  %v1974 = vpop.f32.mrb[0].mxu0
  %v1975 = vadd.f32 0.0, %v1974
  %v1976 = vpop.f32.mrb[0].mxu0
  %1977 = vmatprep.mubr.bf16.mxu0 0
  %1978 = vmatmul.mubr.bf16.gmra.mrb[0].mxu0 %v1848
  %v1979 = vpop.f32.mrb[0].mxu0
  %v1980 = vadd.f32 0.0, %v1979
  %v1981 = vpop.f32.mrb[0].mxu0
  %v1982 = vpop.f32.mrb[0].mxu0
  %v1983 = vadd.f32 0.0, %v1982
  %v1984 = vpop.f32.mrb[0].mxu0
  %1985 = vmatprep.mubr.bf16.mxu0 0
  %1986 = vmatmul.mubr.bf16.gmra.mrb[0].mxu0 %v1851
  %v1987 = vpop.f32.mrb[0].mxu0
  %v1988 = vadd.f32 0.0, %v1987
  %v1989 = vpop.f32.mrb[0].mxu0
  %v1990 = vpop.f32.mrb[0].mxu0
  %v1991 = vadd.f32 0.0, %v1990
  %v1992 = vpop.f32.mrb[0].mxu0
  %1993 = vmatprep.mubr.bf16.mxu0 0
  %1994 = vmatmul.mubr.bf16.gmra.mrb[0].mxu0 %v1854
  %v1995 = vpop.f32.mrb[0].mxu0
  %v1996 = vadd.f32 0.0, %v1995
  %v1997 = vpop.f32.mrb[0].mxu0
  %v1998 = vpop.f32.mrb[0].mxu0
  %v1999 = vadd.f32 0.0, %v1998
  %v2000 = vpop.f32.mrb[0].mxu0
  %2001 = vmatprep.mubr.bf16.mxu0 0
  %2002 = vmatmul.mubr.bf16.gmra.mrb[0].mxu0 %v1857
  %v2003 = vpop.f32.mrb[0].mxu0
  %v2004 = vadd.f32 0.0, %v2003
  %v2005 = vpop.f32.mrb[0].mxu0
  %v2006 = vpop.f32.mrb[0].mxu0
  %v2007 = vadd.f32 0.0, %v2006
  %v2008 = vpop.f32.mrb[0].mxu0
  %2009 = vmatprep.mubr.bf16.mxu0 0
  %2010 = vmatmul.mubr.bf16.gmra.mrb[0].mxu0 %v1860
  %v2011 = vpop.f32.mrb[0].mxu0
  %v2012 = vadd.f32 0.0, %v2011
  %v2013 = vpop.f32.mrb[0].mxu0
  %v2014 = vpop.f32.mrb[0].mxu0
  %v2015 = vadd.f32 0.0, %v2014
  %v2016 = vpop.f32.mrb[0].mxu0
  %2017 = vmatprep.mubr.bf16.mxu0 0
  %2018 = vmatmul.mubr.bf16.gmra.mrb[0].mxu0 %v1863
  %v2019 = vpop.f32.mrb[0].mxu0
  %v2020 = vadd.f32 0.0, %v2019
  %v2021 = vpop.f32.mrb[0].mxu0
  %v2022 = vpop.f32.mrb[0].mxu0
  %v2023 = vadd.f32 0.0, %v2022
  %v2024 = vpop.f32.mrb[0].mxu0
  %2025 = vdwg.mxu0
  %v2029 = vunpack.c.l.b16 %v1789
  %v2030 = vunpack.c.l.b16 %v1790
  %v2031 = vunpack.c.l.b16 %v1791
  %v2032 = vpack.c.b16 %v2030, %v2029
  %v2033 = vpack.c.b16 %v2031, %v2031
  %vm2035 = vcmask 162816
  %v2037 = vsel %vm2035, %v1773, 0
  %v2040 = vsel %vm2035, %v1774, 0
  %v2043 = vsel %vm2035, %v1775, 0
  %v2046 = vsel %vm2035, %v1776, 0
  %v2049 = vsel %vm2035, %v1777, 0
  %v2052 = vsel %vm2035, %v1778, 0
  %v2055 = vsel %vm2035, %v1779, 0
  %v2058 = vsel %vm2035, %v1780, 0
  %v2061 = vsel %vm2035, %v1781, 0
  %v2064 = vsel %vm2035, %v1782, 0
  %v2067 = vsel %vm2035, %v1783, 0
  %v2070 = vsel %vm2035, %v1784, 0
  %v2073 = vsel %vm2035, %v1785, 0
  %v2076 = vsel %vm2035, %v1786, 0
  %v2079 = vsel %vm2035, %v1787, 0
  %v2082 = vsel %vm2035, %v1788, 0
  %vm2084 = vcmask 1041408
  %v2086 = vsel %vm2084, %v2033, 0
  %2088 = vmatprep.subr.bf16.mxu0 0
  %2089 = vmatpush1.bf16.msra.mxu0 %v2032
  %2090 = vmatprep.subr.bf16.mxu0 0
  %2091 = vmatpush1.bf16.msra.mxu0 %v2086
  %2092 = vmatprep.subr.bf16.mxu0 0
  %2093 = vmatpush1.bf16.msra.mxu0 0
  %2094 = vmatprep.subr.bf16.mxu0 0
  %2095 = vmatpush1.bf16.msra.mxu0 0
  %2096 = vmatprep.subr.bf16.mxu0 0
  %2097 = vmatpush1.bf16.msra.mxu0 0
  %2098 = vmatprep.subr.bf16.mxu0 0
  %2099 = vmatpush1.bf16.msra.mxu0 0
  %2100 = vmatprep.subr.bf16.mxu0 0
  %2101 = vmatpush1.bf16.msra.mxu0 0
  %2102 = vmatprep.subr.bf16.mxu0 0
  %2103 = vmatpush1.bf16.msra.mxu0 0
  %2104 = vmatprep.subr.bf16.mxu0 0
  %2105 = vmatpush1.bf16.msra.mxu0 0
  %2106 = vmatprep.subr.bf16.mxu0 0
  %2107 = vmatpush1.bf16.msra.mxu0 0
  %2108 = vmatprep.subr.bf16.mxu0 0
  %2109 = vmatpush1.bf16.msra.mxu0 0
  %2110 = vmatprep.subr.bf16.mxu0 0
  %2111 = vmatpush1.bf16.msra.mxu0 0
  %2112 = vmatprep.subr.bf16.mxu0 0
  %2113 = vmatpush1.bf16.msra.mxu0 0
  %2114 = vmatprep.subr.bf16.mxu0 0
  %2115 = vmatpush1.bf16.msra.mxu0 0
  %2116 = vmatprep.subr.bf16.mxu0 0
  %2117 = vmatpush1.bf16.msra.mxu0 0
  %2118 = vmatprep.subr.bf16.mxu0 0
  %2119 = vmatpush1.bf16.msra.mxu0 0
  %2120 = vmatprep.mubr.bf16.mxu0 0
  %2121 = vmatmul.mubr.bf16.gmra.mrb[0].mxu0 %v2037
  %v2122 = vpop.f32.mrb[0].mxu0
  %v2123 = vadd.f32 %v1900, %v2122
  %v2124 = vpop.f32.mrb[0].mxu0
  %v2125 = vpop.f32.mrb[0].mxu0
  %v2126 = vadd.f32 %v1903, %v2125
  %v2127 = vpop.f32.mrb[0].mxu0
  %2128 = vmatprep.mubr.bf16.mxu0 0
  %2129 = vmatmul.mubr.bf16.gmra.mrb[0].mxu0 %v2040
  %v2130 = vpop.f32.mrb[0].mxu0
  %v2131 = vadd.f32 %v1908, %v2130
  %v2132 = vpop.f32.mrb[0].mxu0
  %v2133 = vpop.f32.mrb[0].mxu0
  %v2134 = vadd.f32 %v1911, %v2133
  %v2135 = vpop.f32.mrb[0].mxu0
  %2136 = vmatprep.mubr.bf16.mxu0 0
  %2137 = vmatmul.mubr.bf16.gmra.mrb[0].mxu0 %v2043
  %v2138 = vpop.f32.mrb[0].mxu0
  %v2139 = vadd.f32 %v1916, %v2138
  %v2140 = vpop.f32.mrb[0].mxu0
  %v2141 = vpop.f32.mrb[0].mxu0
  %v2142 = vadd.f32 %v1919, %v2141
  %v2143 = vpop.f32.mrb[0].mxu0
  %2144 = vmatprep.mubr.bf16.mxu0 0
  %2145 = vmatmul.mubr.bf16.gmra.mrb[0].mxu0 %v2046
  %v2146 = vpop.f32.mrb[0].mxu0
  %v2147 = vadd.f32 %v1924, %v2146
  %v2148 = vpop.f32.mrb[0].mxu0
  %v2149 = vpop.f32.mrb[0].mxu0
  %v2150 = vadd.f32 %v1927, %v2149
  %v2151 = vpop.f32.mrb[0].mxu0
  %2152 = vmatprep.mubr.bf16.mxu0 0
  %2153 = vmatmul.mubr.bf16.gmra.mrb[0].mxu0 %v2049
  %v2154 = vpop.f32.mrb[0].mxu0
  %v2155 = vadd.f32 %v1932, %v2154
  %v2156 = vpop.f32.mrb[0].mxu0
  %v2157 = vpop.f32.mrb[0].mxu0
  %v2158 = vadd.f32 %v1935, %v2157
  %v2159 = vpop.f32.mrb[0].mxu0
  %2160 = vmatprep.mubr.bf16.mxu0 0
  %2161 = vmatmul.mubr.bf16.gmra.mrb[0].mxu0 %v2052
  %v2162 = vpop.f32.mrb[0].mxu0
  %v2163 = vadd.f32 %v1940, %v2162
  %v2164 = vpop.f32.mrb[0].mxu0
  %v2165 = vpop.f32.mrb[0].mxu0
  %v2166 = vadd.f32 %v1943, %v2165
  %v2167 = vpop.f32.mrb[0].mxu0
  %2168 = vmatprep.mubr.bf16.mxu0 0
  %2169 = vmatmul.mubr.bf16.gmra.mrb[0].mxu0 %v2055
  %v2170 = vpop.f32.mrb[0].mxu0
  %v2171 = vadd.f32 %v1948, %v2170
  %v2172 = vpop.f32.mrb[0].mxu0
  %v2173 = vpop.f32.mrb[0].mxu0
  %v2174 = vadd.f32 %v1951, %v2173
  %v2175 = vpop.f32.mrb[0].mxu0
  %2176 = vmatprep.mubr.bf16.mxu0 0
  %2177 = vmatmul.mubr.bf16.gmra.mrb[0].mxu0 %v2058
  %v2178 = vpop.f32.mrb[0].mxu0
  %v2179 = vadd.f32 %v1956, %v2178
  %v2180 = vpop.f32.mrb[0].mxu0
  %v2181 = vpop.f32.mrb[0].mxu0
  %v2182 = vadd.f32 %v1959, %v2181
  %v2183 = vpop.f32.mrb[0].mxu0
  %2184 = vmatprep.mubr.bf16.mxu0 0
  %2185 = vmatmul.mubr.bf16.gmra.mrb[0].mxu0 %v2061
  %v2186 = vpop.f32.mrb[0].mxu0
  %v2187 = vadd.f32 %v1964, %v2186
  %v2188 = vpop.f32.mrb[0].mxu0
  %v2189 = vpop.f32.mrb[0].mxu0
  %v2190 = vadd.f32 %v1967, %v2189
  %v2191 = vpop.f32.mrb[0].mxu0
  %2192 = vmatprep.mubr.bf16.mxu0 0
  %2193 = vmatmul.mubr.bf16.gmra.mrb[0].mxu0 %v2064
  %v2194 = vpop.f32.mrb[0].mxu0
  %v2195 = vadd.f32 %v1972, %v2194
  %v2196 = vpop.f32.mrb[0].mxu0
  %v2197 = vpop.f32.mrb[0].mxu0
  %v2198 = vadd.f32 %v1975, %v2197
  %v2199 = vpop.f32.mrb[0].mxu0
  %2200 = vmatprep.mubr.bf16.mxu0 0
  %2201 = vmatmul.mubr.bf16.gmra.mrb[0].mxu0 %v2067
  %v2202 = vpop.f32.mrb[0].mxu0
  %v2203 = vadd.f32 %v1980, %v2202
  %v2204 = vpop.f32.mrb[0].mxu0
  %v2205 = vpop.f32.mrb[0].mxu0
  %v2206 = vadd.f32 %v1983, %v2205
  %v2207 = vpop.f32.mrb[0].mxu0
  %2208 = vmatprep.mubr.bf16.mxu0 0
  %2209 = vmatmul.mubr.bf16.gmra.mrb[0].mxu0 %v2070
  %v2210 = vpop.f32.mrb[0].mxu0
  %v2211 = vadd.f32 %v1988, %v2210
  %v2212 = vpop.f32.mrb[0].mxu0
  %v2213 = vpop.f32.mrb[0].mxu0
  %v2214 = vadd.f32 %v1991, %v2213
  %v2215 = vpop.f32.mrb[0].mxu0
  %2216 = vmatprep.mubr.bf16.mxu0 0
  %2217 = vmatmul.mubr.bf16.gmra.mrb[0].mxu0 %v2073
  %v2218 = vpop.f32.mrb[0].mxu0
  %v2219 = vadd.f32 %v1996, %v2218
  %v2220 = vpop.f32.mrb[0].mxu0
  %v2221 = vpop.f32.mrb[0].mxu0
  %v2222 = vadd.f32 %v1999, %v2221
  %v2223 = vpop.f32.mrb[0].mxu0
  %2224 = vmatprep.mubr.bf16.mxu0 0
  %2225 = vmatmul.mubr.bf16.gmra.mrb[0].mxu0 %v2076
  %v2226 = vpop.f32.mrb[0].mxu0
  %v2227 = vadd.f32 %v2004, %v2226
  %v2228 = vpop.f32.mrb[0].mxu0
  %v2229 = vpop.f32.mrb[0].mxu0
  %v2230 = vadd.f32 %v2007, %v2229
  %v2231 = vpop.f32.mrb[0].mxu0
  %2232 = vmatprep.mubr.bf16.mxu0 0
  %2233 = vmatmul.mubr.bf16.gmra.mrb[0].mxu0 %v2079
  %v2234 = vpop.f32.mrb[0].mxu0
  %v2235 = vadd.f32 %v2012, %v2234
  %v2236 = vpop.f32.mrb[0].mxu0
  %v2237 = vpop.f32.mrb[0].mxu0
  %v2238 = vadd.f32 %v2015, %v2237
  %v2239 = vpop.f32.mrb[0].mxu0
  %2240 = vmatprep.mubr.bf16.mxu0 0
  %2241 = vmatmul.mubr.bf16.gmra.mrb[0].mxu0 %v2082
  %v2242 = vpop.f32.mrb[0].mxu0
  %v2243 = vadd.f32 %v2020, %v2242
  %v2244 = vpop.f32.mrb[0].mxu0
  %v2245 = vpop.f32.mrb[0].mxu0
  %v2246 = vadd.f32 %v2023, %v2245
  %v2247 = vpop.f32.mrb[0].mxu0
  %2248 = vdwg.mxu0
  %v2249 = vmax.f32 %v2123, 0.0
  %v2250 = vmax.f32 %v2126, 0.0
  %v2251 = vmax.f32 %v2131, 0.0
  %v2252 = vmax.f32 %v2134, 0.0
  %v2253 = vmax.f32 %v2139, 0.0
  %v2254 = vmax.f32 %v2142, 0.0
  %v2255 = vmax.f32 %v2147, 0.0
  %v2256 = vmax.f32 %v2150, 0.0
  %v2257 = vmax.f32 %v2155, 0.0
  %v2258 = vmax.f32 %v2158, 0.0
  %v2259 = vmax.f32 %v2163, 0.0
  %v2260 = vmax.f32 %v2166, 0.0
  %v2261 = vmax.f32 %v2171, 0.0
  %v2262 = vmax.f32 %v2174, 0.0
  %v2263 = vmax.f32 %v2179, 0.0
  %v2264 = vmax.f32 %v2182, 0.0
  %v2265 = vmax.f32 %v2187, 0.0
  %v2266 = vmax.f32 %v2190, 0.0
  %v2267 = vmax.f32 %v2195, 0.0
  %v2268 = vmax.f32 %v2198, 0.0
  %v2269 = vmax.f32 %v2203, 0.0
  %v2270 = vmax.f32 %v2206, 0.0
  %v2271 = vmax.f32 %v2211, 0.0
  %v2272 = vmax.f32 %v2214, 0.0
  %v2273 = vmax.f32 %v2219, 0.0
  %v2274 = vmax.f32 %v2222, 0.0
  %v2275 = vmax.f32 %v2227, 0.0
  %v2276 = vmax.f32 %v2230, 0.0
  %v2277 = vmax.f32 %v2235, 0.0
  %v2278 = vmax.f32 %v2238, 0.0
  %v2279 = vmax.f32 %v2243, 0.0
  %v2280 = vmax.f32 %v2246, 0.0
  %v2281 = vpack.c.bf16 %v2250, %v2249
  %v2282 = vpack.c.bf16 %v2252, %v2251
  %v2283 = vpack.c.bf16 %v2254, %v2253
  %v2284 = vpack.c.bf16 %v2256, %v2255
  %v2285 = vpack.c.bf16 %v2258, %v2257
  %v2286 = vpack.c.bf16 %v2260, %v2259
  %v2287 = vpack.c.bf16 %v2262, %v2261
  %v2288 = vpack.c.bf16 %v2264, %v2263
  %v2289 = vpack.c.bf16 %v2266, %v2265
  %v2290 = vpack.c.bf16 %v2268, %v2267
  %v2291 = vpack.c.bf16 %v2270, %v2269
  %v2292 = vpack.c.bf16 %v2272, %v2271
  %v2293 = vpack.c.bf16 %v2274, %v2273
  %v2294 = vpack.c.bf16 %v2276, %v2275
  %v2295 = vpack.c.bf16 %v2278, %v2277
  %v2296 = vpack.c.bf16 %v2280, %v2279
  %v2297 = vld [vmem:[%s9] sm:$0xf]
  %v2298 = vld [vmem:[%s9 + $0x4] sm:$0xf]
  %v2299 = vld [vmem:[%s9 + $0x8] sm:$0xf]
  %v2300 = vld [vmem:[%s9 + $0xc] sm:$0xf]
  %v2301 = vld [vmem:[%s9 + $0x10] sm:$0xf]
  %v2302 = vld [vmem:[%s9 + $0x14] sm:$0xf]
  %v2303 = vld [vmem:[%s9 + $0x18] sm:$0xf]
  %v2304 = vld [vmem:[%s9 + $0x1c] sm:$0xf]
  %v2313 = vunpack.c.l.b16 %v2297
  %v2314 = vunpack.c.l.b16 %v2298
  %v2315 = vunpack.c.l.b16 %v2299
  %v2316 = vunpack.c.l.b16 %v2300
  %v2317 = vunpack.c.l.b16 %v2301
  %v2318 = vunpack.c.l.b16 %v2302
  %v2319 = vunpack.c.l.b16 %v2303
  %v2320 = vunpack.c.l.b16 %v2304
  %v2321 = vpack.c.b16 %v2314, %v2313
  %v2322 = vpack.c.b16 %v2316, %v2315
  %v2323 = vpack.c.b16 %v2318, %v2317
  %v2324 = vpack.c.b16 %v2320, %v2319
  %v2330 = vsel %vm393, %v2281, 0
  %v2333 = vsel %vm393, %v2282, 0
  %v2336 = vsel %vm393, %v2283, 0
  %v2339 = vsel %vm393, %v2284, 0
  %v2342 = vsel %vm393, %v2285, 0
  %v2345 = vsel %vm393, %v2286, 0
  %v2348 = vsel %vm393, %v2287, 0
  %v2351 = vsel %vm393, %v2288, 0
  %v2354 = vsel %vm393, %v2289, 0
  %v2357 = vsel %vm393, %v2290, 0
  %v2360 = vsel %vm393, %v2291, 0
  %v2363 = vsel %vm393, %v2292, 0
  %v2366 = vsel %vm393, %v2293, 0
  %v2369 = vsel %vm393, %v2294, 0
  %v2372 = vsel %vm393, %v2295, 0
  %v2375 = vsel %vm393, %v2296, 0
  %2377 = vmatprep.subr.bf16.mxu0 0
  %2378 = vmatpush1.bf16.msra.mxu0 %v2321
  %2379 = vmatprep.subr.bf16.mxu0 0
  %2380 = vmatpush1.bf16.msra.mxu0 %v2322
  %2381 = vmatprep.subr.bf16.mxu0 0
  %2382 = vmatpush1.bf16.msra.mxu0 %v2323
  %2383 = vmatprep.subr.bf16.mxu0 0
  %2384 = vmatpush1.bf16.msra.mxu0 %v2324
  %2385 = vmatprep.subr.bf16.mxu0 0
  %2386 = vmatpush1.bf16.msra.mxu0 0
  %2387 = vmatprep.subr.bf16.mxu0 0
  %2388 = vmatpush1.bf16.msra.mxu0 0
  %2389 = vmatprep.subr.bf16.mxu0 0
  %2390 = vmatpush1.bf16.msra.mxu0 0
  %2391 = vmatprep.subr.bf16.mxu0 0
  %2392 = vmatpush1.bf16.msra.mxu0 0
  %2393 = vmatprep.subr.bf16.mxu0 0
  %2394 = vmatpush1.bf16.msra.mxu0 0
  %2395 = vmatprep.subr.bf16.mxu0 0
  %2396 = vmatpush1.bf16.msra.mxu0 0
  %2397 = vmatprep.subr.bf16.mxu0 0
  %2398 = vmatpush1.bf16.msra.mxu0 0
  %2399 = vmatprep.subr.bf16.mxu0 0
  %2400 = vmatpush1.bf16.msra.mxu0 0
  %2401 = vmatprep.subr.bf16.mxu0 0
  %2402 = vmatpush1.bf16.msra.mxu0 0
  %2403 = vmatprep.subr.bf16.mxu0 0
  %2404 = vmatpush1.bf16.msra.mxu0 0
  %2405 = vmatprep.subr.bf16.mxu0 0
  %2406 = vmatpush1.bf16.msra.mxu0 0
  %2407 = vmatprep.subr.bf16.mxu0 0
  %2408 = vmatpush1.bf16.msra.mxu0 0
  %2409 = vmatprep.mubr.bf16.mxu0 0
  %2410 = vmatmul.mubr.bf16.gmra.mrb[0].mxu0 %v2330
  %v2411 = vpop.f32.mrb[0].mxu0
  %v2412 = vadd.f32 0.0, %v2411
  %v2413 = vpop.f32.mrb[0].mxu0
  %v2414 = vpop.f32.mrb[0].mxu0
  %v2415 = vadd.f32 0.0, %v2414
  %v2416 = vpop.f32.mrb[0].mxu0
  %2417 = vmatprep.mubr.bf16.mxu0 0
  %2418 = vmatmul.mubr.bf16.gmra.mrb[0].mxu0 %v2333
  %v2419 = vpop.f32.mrb[0].mxu0
  %v2420 = vadd.f32 0.0, %v2419
  %v2421 = vpop.f32.mrb[0].mxu0
  %v2422 = vpop.f32.mrb[0].mxu0
  %v2423 = vadd.f32 0.0, %v2422
  %v2424 = vpop.f32.mrb[0].mxu0
  %2425 = vmatprep.mubr.bf16.mxu0 0
  %2426 = vmatmul.mubr.bf16.gmra.mrb[0].mxu0 %v2336
  %v2427 = vpop.f32.mrb[0].mxu0
  %v2428 = vadd.f32 0.0, %v2427
  %v2429 = vpop.f32.mrb[0].mxu0
  %v2430 = vpop.f32.mrb[0].mxu0
  %v2431 = vadd.f32 0.0, %v2430
  %v2432 = vpop.f32.mrb[0].mxu0
  %2433 = vmatprep.mubr.bf16.mxu0 0
  %2434 = vmatmul.mubr.bf16.gmra.mrb[0].mxu0 %v2339
  %v2435 = vpop.f32.mrb[0].mxu0
  %v2436 = vadd.f32 0.0, %v2435
  %v2437 = vpop.f32.mrb[0].mxu0
  %v2438 = vpop.f32.mrb[0].mxu0
  %v2439 = vadd.f32 0.0, %v2438
  %v2440 = vpop.f32.mrb[0].mxu0
  %2441 = vmatprep.mubr.bf16.mxu0 0
  %2442 = vmatmul.mubr.bf16.gmra.mrb[0].mxu0 %v2342
  %v2443 = vpop.f32.mrb[0].mxu0
  %v2444 = vadd.f32 0.0, %v2443
  %v2445 = vpop.f32.mrb[0].mxu0
  %v2446 = vpop.f32.mrb[0].mxu0
  %v2447 = vadd.f32 0.0, %v2446
  %v2448 = vpop.f32.mrb[0].mxu0
  %2449 = vmatprep.mubr.bf16.mxu0 0
  %2450 = vmatmul.mubr.bf16.gmra.mrb[0].mxu0 %v2345
  %v2451 = vpop.f32.mrb[0].mxu0
  %v2452 = vadd.f32 0.0, %v2451
  %v2453 = vpop.f32.mrb[0].mxu0
  %v2454 = vpop.f32.mrb[0].mxu0
  %v2455 = vadd.f32 0.0, %v2454
  %v2456 = vpop.f32.mrb[0].mxu0
  %2457 = vmatprep.mubr.bf16.mxu0 0
  %2458 = vmatmul.mubr.bf16.gmra.mrb[0].mxu0 %v2348
  %v2459 = vpop.f32.mrb[0].mxu0
  %v2460 = vadd.f32 0.0, %v2459
  %v2461 = vpop.f32.mrb[0].mxu0
  %v2462 = vpop.f32.mrb[0].mxu0
  %v2463 = vadd.f32 0.0, %v2462
  %v2464 = vpop.f32.mrb[0].mxu0
  %2465 = vmatprep.mubr.bf16.mxu0 0
  %2466 = vmatmul.mubr.bf16.gmra.mrb[0].mxu0 %v2351
  %v2467 = vpop.f32.mrb[0].mxu0
  %v2468 = vadd.f32 0.0, %v2467
  %v2469 = vpop.f32.mrb[0].mxu0
  %v2470 = vpop.f32.mrb[0].mxu0
  %v2471 = vadd.f32 0.0, %v2470
  %v2472 = vpop.f32.mrb[0].mxu0
  %2473 = vmatprep.mubr.bf16.mxu0 0
  %2474 = vmatmul.mubr.bf16.gmra.mrb[0].mxu0 %v2354
  %v2475 = vpop.f32.mrb[0].mxu0
  %v2476 = vadd.f32 0.0, %v2475
  %v2477 = vpop.f32.mrb[0].mxu0
  %v2478 = vpop.f32.mrb[0].mxu0
  %v2479 = vadd.f32 0.0, %v2478
  %v2480 = vpop.f32.mrb[0].mxu0
  %2481 = vmatprep.mubr.bf16.mxu0 0
  %2482 = vmatmul.mubr.bf16.gmra.mrb[0].mxu0 %v2357
  %v2483 = vpop.f32.mrb[0].mxu0
  %v2484 = vadd.f32 0.0, %v2483
  %v2485 = vpop.f32.mrb[0].mxu0
  %v2486 = vpop.f32.mrb[0].mxu0
  %v2487 = vadd.f32 0.0, %v2486
  %v2488 = vpop.f32.mrb[0].mxu0
  %2489 = vmatprep.mubr.bf16.mxu0 0
  %2490 = vmatmul.mubr.bf16.gmra.mrb[0].mxu0 %v2360
  %v2491 = vpop.f32.mrb[0].mxu0
  %v2492 = vadd.f32 0.0, %v2491
  %v2493 = vpop.f32.mrb[0].mxu0
  %v2494 = vpop.f32.mrb[0].mxu0
  %v2495 = vadd.f32 0.0, %v2494
  %v2496 = vpop.f32.mrb[0].mxu0
  %2497 = vmatprep.mubr.bf16.mxu0 0
  %2498 = vmatmul.mubr.bf16.gmra.mrb[0].mxu0 %v2363
  %v2499 = vpop.f32.mrb[0].mxu0
  %v2500 = vadd.f32 0.0, %v2499
  %v2501 = vpop.f32.mrb[0].mxu0
  %v2502 = vpop.f32.mrb[0].mxu0
  %v2503 = vadd.f32 0.0, %v2502
  %v2504 = vpop.f32.mrb[0].mxu0
  %2505 = vmatprep.mubr.bf16.mxu0 0
  %2506 = vmatmul.mubr.bf16.gmra.mrb[0].mxu0 %v2366
  %v2507 = vpop.f32.mrb[0].mxu0
  %v2508 = vadd.f32 0.0, %v2507
  %v2509 = vpop.f32.mrb[0].mxu0
  %v2510 = vpop.f32.mrb[0].mxu0
  %v2511 = vadd.f32 0.0, %v2510
  %v2512 = vpop.f32.mrb[0].mxu0
  %2513 = vmatprep.mubr.bf16.mxu0 0
  %2514 = vmatmul.mubr.bf16.gmra.mrb[0].mxu0 %v2369
  %v2515 = vpop.f32.mrb[0].mxu0
  %v2516 = vadd.f32 0.0, %v2515
  %v2517 = vpop.f32.mrb[0].mxu0
  %v2518 = vpop.f32.mrb[0].mxu0
  %v2519 = vadd.f32 0.0, %v2518
  %v2520 = vpop.f32.mrb[0].mxu0
  %2521 = vmatprep.mubr.bf16.mxu0 0
  %2522 = vmatmul.mubr.bf16.gmra.mrb[0].mxu0 %v2372
  %v2523 = vpop.f32.mrb[0].mxu0
  %v2524 = vadd.f32 0.0, %v2523
  %v2525 = vpop.f32.mrb[0].mxu0
  %v2526 = vpop.f32.mrb[0].mxu0
  %v2527 = vadd.f32 0.0, %v2526
  %v2528 = vpop.f32.mrb[0].mxu0
  %2529 = vmatprep.mubr.bf16.mxu0 0
  %2530 = vmatmul.mubr.bf16.gmra.mrb[0].mxu0 %v2375
  %v2531 = vpop.f32.mrb[0].mxu0
  %v2532 = vadd.f32 0.0, %v2531
  %v2533 = vpop.f32.mrb[0].mxu0
  %v2534 = vpop.f32.mrb[0].mxu0
  %v2535 = vadd.f32 0.0, %v2534
  %v2536 = vpop.f32.mrb[0].mxu0
  %2537 = vdwg.mxu0
  %v2538 = vmax.f32 %v2412, 0.0
  %v2539 = vmax.f32 %v2415, 0.0
  %v2540 = vmax.f32 %v2420, 0.0
  %v2541 = vmax.f32 %v2423, 0.0
  %v2542 = vmax.f32 %v2428, 0.0
  %v2543 = vmax.f32 %v2431, 0.0
  %v2544 = vmax.f32 %v2436, 0.0
  %v2545 = vmax.f32 %v2439, 0.0
  %v2546 = vmax.f32 %v2444, 0.0
  %v2547 = vmax.f32 %v2447, 0.0
  %v2548 = vmax.f32 %v2452, 0.0
  %v2549 = vmax.f32 %v2455, 0.0
  %v2550 = vmax.f32 %v2460, 0.0
  %v2551 = vmax.f32 %v2463, 0.0
  %v2552 = vmax.f32 %v2468, 0.0
  %v2553 = vmax.f32 %v2471, 0.0
  %v2554 = vmax.f32 %v2476, 0.0
  %v2555 = vmax.f32 %v2479, 0.0
  %v2556 = vmax.f32 %v2484, 0.0
  %v2557 = vmax.f32 %v2487, 0.0
  %v2558 = vmax.f32 %v2492, 0.0
  %v2559 = vmax.f32 %v2495, 0.0
  %v2560 = vmax.f32 %v2500, 0.0
  %v2561 = vmax.f32 %v2503, 0.0
  %v2562 = vmax.f32 %v2508, 0.0
  %v2563 = vmax.f32 %v2511, 0.0
  %v2564 = vmax.f32 %v2516, 0.0
  %v2565 = vmax.f32 %v2519, 0.0
  %v2566 = vmax.f32 %v2524, 0.0
  %v2567 = vmax.f32 %v2527, 0.0
  %v2568 = vmax.f32 %v2532, 0.0
  %v2569 = vmax.f32 %v2535, 0.0
  %v2570 = vpack.c.bf16 %v2539, %v2538
  %v2571 = vpack.c.bf16 %v2541, %v2540
  %v2572 = vpack.c.bf16 %v2543, %v2542
  %v2573 = vpack.c.bf16 %v2545, %v2544
  %v2574 = vpack.c.bf16 %v2547, %v2546
  %v2575 = vpack.c.bf16 %v2549, %v2548
  %v2576 = vpack.c.bf16 %v2551, %v2550
  %v2577 = vpack.c.bf16 %v2553, %v2552
  %v2578 = vpack.c.bf16 %v2555, %v2554
  %v2579 = vpack.c.bf16 %v2557, %v2556
  %v2580 = vpack.c.bf16 %v2559, %v2558
  %v2581 = vpack.c.bf16 %v2561, %v2560
  %v2582 = vpack.c.bf16 %v2563, %v2562
  %v2583 = vpack.c.bf16 %v2565, %v2564
  %v2584 = vpack.c.bf16 %v2567, %v2566
  %v2585 = vpack.c.bf16 %v2569, %v2568
  %v2586 = vld [vmem:[%s10] sm:$0xf]
  %v2587 = vld [vmem:[%s10 + $0x4] sm:$0xf]
  %v2588 = vld [vmem:[%s10 + $0x8] sm:$0xf]
  %v2589 = vld [vmem:[%s10 + $0xc] sm:$0xf]
  %v2590 = vld [vmem:[%s10 + $0x10] sm:$0xf]
  %v2591 = vld [vmem:[%s10 + $0x14] sm:$0xf]
  %v2592 = vld [vmem:[%s10 + $0x18] sm:$0xf]
  %v2593 = vld [vmem:[%s10 + $0x1c] sm:$0xf]
  %v2602 = vunpack.c.l.b16 %v2586
  %v2603 = vunpack.c.l.b16 %v2587
  %v2604 = vunpack.c.l.b16 %v2588
  %v2605 = vunpack.c.l.b16 %v2589
  %v2606 = vunpack.c.l.b16 %v2590
  %v2607 = vunpack.c.l.b16 %v2591
  %v2608 = vunpack.c.l.b16 %v2592
  %v2609 = vunpack.c.l.b16 %v2593
  %v2610 = vpack.c.b16 %v2603, %v2602
  %v2611 = vpack.c.b16 %v2605, %v2604
  %v2612 = vpack.c.b16 %v2607, %v2606
  %v2613 = vpack.c.b16 %v2609, %v2608
  %v2619 = vsel %vm393, %v2570, 0
  %v2622 = vsel %vm393, %v2571, 0
  %v2625 = vsel %vm393, %v2572, 0
  %v2628 = vsel %vm393, %v2573, 0
  %v2631 = vsel %vm393, %v2574, 0
  %v2634 = vsel %vm393, %v2575, 0
  %v2637 = vsel %vm393, %v2576, 0
  %v2640 = vsel %vm393, %v2577, 0
  %v2643 = vsel %vm393, %v2578, 0
  %v2646 = vsel %vm393, %v2579, 0
  %v2649 = vsel %vm393, %v2580, 0
  %v2652 = vsel %vm393, %v2581, 0
  %v2655 = vsel %vm393, %v2582, 0
  %v2658 = vsel %vm393, %v2583, 0
  %v2661 = vsel %vm393, %v2584, 0
  %v2664 = vsel %vm393, %v2585, 0
  %2666 = vmatprep.subr.bf16.mxu0 0
  %2667 = vmatpush1.bf16.msra.mxu0 %v2610
  %2668 = vmatprep.subr.bf16.mxu0 0
  %2669 = vmatpush1.bf16.msra.mxu0 %v2611
  %2670 = vmatprep.subr.bf16.mxu0 0
  %2671 = vmatpush1.bf16.msra.mxu0 %v2612
  %2672 = vmatprep.subr.bf16.mxu0 0
  %2673 = vmatpush1.bf16.msra.mxu0 %v2613
  %2674 = vmatprep.subr.bf16.mxu0 0
  %2675 = vmatpush1.bf16.msra.mxu0 0
  %2676 = vmatprep.subr.bf16.mxu0 0
  %2677 = vmatpush1.bf16.msra.mxu0 0
  %2678 = vmatprep.subr.bf16.mxu0 0
  %2679 = vmatpush1.bf16.msra.mxu0 0
  %2680 = vmatprep.subr.bf16.mxu0 0
  %2681 = vmatpush1.bf16.msra.mxu0 0
  %2682 = vmatprep.subr.bf16.mxu0 0
  %2683 = vmatpush1.bf16.msra.mxu0 0
  %2684 = vmatprep.subr.bf16.mxu0 0
  %2685 = vmatpush1.bf16.msra.mxu0 0
  %2686 = vmatprep.subr.bf16.mxu0 0
  %2687 = vmatpush1.bf16.msra.mxu0 0
  %2688 = vmatprep.subr.bf16.mxu0 0
  %2689 = vmatpush1.bf16.msra.mxu0 0
  %2690 = vmatprep.subr.bf16.mxu0 0
  %2691 = vmatpush1.bf16.msra.mxu0 0
  %2692 = vmatprep.subr.bf16.mxu0 0
  %2693 = vmatpush1.bf16.msra.mxu0 0
  %2694 = vmatprep.subr.bf16.mxu0 0
  %2695 = vmatpush1.bf16.msra.mxu0 0
  %2696 = vmatprep.subr.bf16.mxu0 0
  %2697 = vmatpush1.bf16.msra.mxu0 0
  %2698 = vmatprep.mubr.bf16.mxu0 0
  %2699 = vmatmul.mubr.bf16.gmra.mrb[0].mxu0 %v2619
  %v2700 = vpop.f32.mrb[0].mxu0
  %v2701 = vadd.f32 0.0, %v2700
  %v2702 = vpop.f32.mrb[0].mxu0
  %v2703 = vpop.f32.mrb[0].mxu0
  %v2704 = vadd.f32 0.0, %v2703
  %v2705 = vpop.f32.mrb[0].mxu0
  %2706 = vmatprep.mubr.bf16.mxu0 0
  %2707 = vmatmul.mubr.bf16.gmra.mrb[0].mxu0 %v2622
  %v2708 = vpop.f32.mrb[0].mxu0
  %v2709 = vadd.f32 0.0, %v2708
  %v2710 = vpop.f32.mrb[0].mxu0
  %v2711 = vpop.f32.mrb[0].mxu0
  %v2712 = vadd.f32 0.0, %v2711
  %v2713 = vpop.f32.mrb[0].mxu0
  %2714 = vmatprep.mubr.bf16.mxu0 0
  %2715 = vmatmul.mubr.bf16.gmra.mrb[0].mxu0 %v2625
  %v2716 = vpop.f32.mrb[0].mxu0
  %v2717 = vadd.f32 0.0, %v2716
  %v2718 = vpop.f32.mrb[0].mxu0
  %v2719 = vpop.f32.mrb[0].mxu0
  %v2720 = vadd.f32 0.0, %v2719
  %v2721 = vpop.f32.mrb[0].mxu0
  %2722 = vmatprep.mubr.bf16.mxu0 0
  %2723 = vmatmul.mubr.bf16.gmra.mrb[0].mxu0 %v2628
  %v2724 = vpop.f32.mrb[0].mxu0
  %v2725 = vadd.f32 0.0, %v2724
  %v2726 = vpop.f32.mrb[0].mxu0
  %v2727 = vpop.f32.mrb[0].mxu0
  %v2728 = vadd.f32 0.0, %v2727
  %v2729 = vpop.f32.mrb[0].mxu0
  %2730 = vmatprep.mubr.bf16.mxu0 0
  %2731 = vmatmul.mubr.bf16.gmra.mrb[0].mxu0 %v2631
  %v2732 = vpop.f32.mrb[0].mxu0
  %v2733 = vadd.f32 0.0, %v2732
  %v2734 = vpop.f32.mrb[0].mxu0
  %v2735 = vpop.f32.mrb[0].mxu0
  %v2736 = vadd.f32 0.0, %v2735
  %v2737 = vpop.f32.mrb[0].mxu0
  %2738 = vmatprep.mubr.bf16.mxu0 0
  %2739 = vmatmul.mubr.bf16.gmra.mrb[0].mxu0 %v2634
  %v2740 = vpop.f32.mrb[0].mxu0
  %v2741 = vadd.f32 0.0, %v2740
  %v2742 = vpop.f32.mrb[0].mxu0
  %v2743 = vpop.f32.mrb[0].mxu0
  %v2744 = vadd.f32 0.0, %v2743
  %v2745 = vpop.f32.mrb[0].mxu0
  %2746 = vmatprep.mubr.bf16.mxu0 0
  %2747 = vmatmul.mubr.bf16.gmra.mrb[0].mxu0 %v2637
  %v2748 = vpop.f32.mrb[0].mxu0
  %v2749 = vadd.f32 0.0, %v2748
  %v2750 = vpop.f32.mrb[0].mxu0
  %v2751 = vpop.f32.mrb[0].mxu0
  %v2752 = vadd.f32 0.0, %v2751
  %v2753 = vpop.f32.mrb[0].mxu0
  %2754 = vmatprep.mubr.bf16.mxu0 0
  %2755 = vmatmul.mubr.bf16.gmra.mrb[0].mxu0 %v2640
  %v2756 = vpop.f32.mrb[0].mxu0
  %v2757 = vadd.f32 0.0, %v2756
  %v2758 = vpop.f32.mrb[0].mxu0
  %v2759 = vpop.f32.mrb[0].mxu0
  %v2760 = vadd.f32 0.0, %v2759
  %v2761 = vpop.f32.mrb[0].mxu0
  %2762 = vmatprep.mubr.bf16.mxu0 0
  %2763 = vmatmul.mubr.bf16.gmra.mrb[0].mxu0 %v2643
  %v2764 = vpop.f32.mrb[0].mxu0
  %v2765 = vadd.f32 0.0, %v2764
  %v2766 = vpop.f32.mrb[0].mxu0
  %v2767 = vpop.f32.mrb[0].mxu0
  %v2768 = vadd.f32 0.0, %v2767
  %v2769 = vpop.f32.mrb[0].mxu0
  %2770 = vmatprep.mubr.bf16.mxu0 0
  %2771 = vmatmul.mubr.bf16.gmra.mrb[0].mxu0 %v2646
  %v2772 = vpop.f32.mrb[0].mxu0
  %v2773 = vadd.f32 0.0, %v2772
  %v2774 = vpop.f32.mrb[0].mxu0
  %v2775 = vpop.f32.mrb[0].mxu0
  %v2776 = vadd.f32 0.0, %v2775
  %v2777 = vpop.f32.mrb[0].mxu0
  %2778 = vmatprep.mubr.bf16.mxu0 0
  %2779 = vmatmul.mubr.bf16.gmra.mrb[0].mxu0 %v2649
  %v2780 = vpop.f32.mrb[0].mxu0
  %v2781 = vadd.f32 0.0, %v2780
  %v2782 = vpop.f32.mrb[0].mxu0
  %v2783 = vpop.f32.mrb[0].mxu0
  %v2784 = vadd.f32 0.0, %v2783
  %v2785 = vpop.f32.mrb[0].mxu0
  %2786 = vmatprep.mubr.bf16.mxu0 0
  %2787 = vmatmul.mubr.bf16.gmra.mrb[0].mxu0 %v2652
  %v2788 = vpop.f32.mrb[0].mxu0
  %v2789 = vadd.f32 0.0, %v2788
  %v2790 = vpop.f32.mrb[0].mxu0
  %v2791 = vpop.f32.mrb[0].mxu0
  %v2792 = vadd.f32 0.0, %v2791
  %v2793 = vpop.f32.mrb[0].mxu0
  %2794 = vmatprep.mubr.bf16.mxu0 0
  %2795 = vmatmul.mubr.bf16.gmra.mrb[0].mxu0 %v2655
  %v2796 = vpop.f32.mrb[0].mxu0
  %v2797 = vadd.f32 0.0, %v2796
  %v2798 = vpop.f32.mrb[0].mxu0
  %v2799 = vpop.f32.mrb[0].mxu0
  %v2800 = vadd.f32 0.0, %v2799
  %v2801 = vpop.f32.mrb[0].mxu0
  %2802 = vmatprep.mubr.bf16.mxu0 0
  %2803 = vmatmul.mubr.bf16.gmra.mrb[0].mxu0 %v2658
  %v2804 = vpop.f32.mrb[0].mxu0
  %v2805 = vadd.f32 0.0, %v2804
  %v2806 = vpop.f32.mrb[0].mxu0
  %v2807 = vpop.f32.mrb[0].mxu0
  %v2808 = vadd.f32 0.0, %v2807
  %v2809 = vpop.f32.mrb[0].mxu0
  %2810 = vmatprep.mubr.bf16.mxu0 0
  %2811 = vmatmul.mubr.bf16.gmra.mrb[0].mxu0 %v2661
  %v2812 = vpop.f32.mrb[0].mxu0
  %v2813 = vadd.f32 0.0, %v2812
  %v2814 = vpop.f32.mrb[0].mxu0
  %v2815 = vpop.f32.mrb[0].mxu0
  %v2816 = vadd.f32 0.0, %v2815
  %v2817 = vpop.f32.mrb[0].mxu0
  %2818 = vmatprep.mubr.bf16.mxu0 0
  %2819 = vmatmul.mubr.bf16.gmra.mrb[0].mxu0 %v2664
  %v2820 = vpop.f32.mrb[0].mxu0
  %v2821 = vadd.f32 0.0, %v2820
  %v2822 = vpop.f32.mrb[0].mxu0
  %v2823 = vpop.f32.mrb[0].mxu0
  %v2824 = vadd.f32 0.0, %v2823
  %v2825 = vpop.f32.mrb[0].mxu0
  %2826 = vdwg.mxu0
  %v2827 = vxor.u32 %v2701, 2147483648
  %v2828 = vxor.u32 %v2704, 2147483648
  %v2829 = vxor.u32 %v2709, 2147483648
  %v2830 = vxor.u32 %v2712, 2147483648
  %v2831 = vxor.u32 %v2717, 2147483648
  %v2832 = vxor.u32 %v2720, 2147483648
  %v2833 = vxor.u32 %v2725, 2147483648
  %v2834 = vxor.u32 %v2728, 2147483648
  %v2835 = vxor.u32 %v2733, 2147483648
  %v2836 = vxor.u32 %v2736, 2147483648
  %v2837 = vxor.u32 %v2741, 2147483648
  %v2838 = vxor.u32 %v2744, 2147483648
  %v2839 = vxor.u32 %v2749, 2147483648
  %v2840 = vxor.u32 %v2752, 2147483648
  %v2841 = vxor.u32 %v2757, 2147483648
  %v2842 = vxor.u32 %v2760, 2147483648
  %v2843 = vxor.u32 %v2765, 2147483648
  %v2844 = vxor.u32 %v2768, 2147483648
  %v2845 = vxor.u32 %v2773, 2147483648
  %v2846 = vxor.u32 %v2776, 2147483648
  %v2847 = vxor.u32 %v2781, 2147483648
  %v2848 = vxor.u32 %v2784, 2147483648
  %v2849 = vxor.u32 %v2789, 2147483648
  %v2850 = vxor.u32 %v2792, 2147483648
  %v2851 = vxor.u32 %v2797, 2147483648
  %v2852 = vxor.u32 %v2800, 2147483648
  %v2853 = vxor.u32 %v2805, 2147483648
  %v2854 = vxor.u32 %v2808, 2147483648
  %v2855 = vxor.u32 %v2813, 2147483648
  %v2856 = vxor.u32 %v2816, 2147483648
  %v2857 = vxor.u32 %v2821, 2147483648
  %v2858 = vxor.u32 %v2824, 2147483648
  %v2859 = vmul.f32 %v2827, 1.442695
  %v2860 = vpow.pop %v2859
  %v2861 = vmul.f32 %v2828, 1.442695
  %v2862 = vpow.pop %v2861
  %v2863 = vmul.f32 %v2829, 1.442695
  %v2864 = vpow.pop %v2863
  %v2865 = vmul.f32 %v2830, 1.442695
  %v2866 = vpow.pop %v2865
  %v2867 = vmul.f32 %v2831, 1.442695
  %v2868 = vpow.pop %v2867
  %v2869 = vmul.f32 %v2832, 1.442695
  %v2870 = vpow.pop %v2869
  %v2871 = vmul.f32 %v2833, 1.442695
  %v2872 = vpow.pop %v2871
  %v2873 = vmul.f32 %v2834, 1.442695
  %v2874 = vpow.pop %v2873
  %v2875 = vmul.f32 %v2835, 1.442695
  %v2876 = vpow.pop %v2875
  %v2877 = vmul.f32 %v2836, 1.442695
  %v2878 = vpow.pop %v2877
  %v2879 = vmul.f32 %v2837, 1.442695
  %v2880 = vpow.pop %v2879
  %v2881 = vmul.f32 %v2838, 1.442695
  %v2882 = vpow.pop %v2881
  %v2883 = vmul.f32 %v2839, 1.442695
  %v2884 = vpow.pop %v2883
  %v2885 = vmul.f32 %v2840, 1.442695
  %v2886 = vpow.pop %v2885
  %v2887 = vmul.f32 %v2841, 1.442695
  %v2888 = vpow.pop %v2887
  %v2889 = vmul.f32 %v2842, 1.442695
  %v2890 = vpow.pop %v2889
  %v2891 = vmul.f32 %v2843, 1.442695
  %v2892 = vpow.pop %v2891
  %v2893 = vmul.f32 %v2844, 1.442695
  %v2894 = vpow.pop %v2893
  %v2895 = vmul.f32 %v2845, 1.442695
  %v2896 = vpow.pop %v2895
  %v2897 = vmul.f32 %v2846, 1.442695
  %v2898 = vpow.pop %v2897
  %v2899 = vmul.f32 %v2847, 1.442695
  %v2900 = vpow.pop %v2899
  %v2901 = vmul.f32 %v2848, 1.442695
  %v2902 = vpow.pop %v2901
  %v2903 = vmul.f32 %v2849, 1.442695
  %v2904 = vpow.pop %v2903
  %v2905 = vmul.f32 %v2850, 1.442695
  %v2906 = vpow.pop %v2905
  %v2907 = vmul.f32 %v2851, 1.442695
  %v2908 = vpow.pop %v2907
  %v2909 = vmul.f32 %v2852, 1.442695
  %v2910 = vpow.pop %v2909
  %v2911 = vmul.f32 %v2853, 1.442695
  %v2912 = vpow.pop %v2911
  %v2913 = vmul.f32 %v2854, 1.442695
  %v2914 = vpow.pop %v2913
  %v2915 = vmul.f32 %v2855, 1.442695
  %v2916 = vpow.pop %v2915
  %v2917 = vmul.f32 %v2856, 1.442695
  %v2918 = vpow.pop %v2917
  %v2919 = vmul.f32 %v2857, 1.442695
  %v2920 = vpow.pop %v2919
  %v2921 = vmul.f32 %v2858, 1.442695
  %v2922 = vpow.pop %v2921
  %v2923 = vadd.f32 %v2860, 1.0
  %v2924 = vadd.f32 %v2862, 1.0
  %v2925 = vadd.f32 %v2864, 1.0
  %v2926 = vadd.f32 %v2866, 1.0
  %v2927 = vadd.f32 %v2868, 1.0
  %v2928 = vadd.f32 %v2870, 1.0
  %v2929 = vadd.f32 %v2872, 1.0
  %v2930 = vadd.f32 %v2874, 1.0
  %v2931 = vadd.f32 %v2876, 1.0
  %v2932 = vadd.f32 %v2878, 1.0
  %v2933 = vadd.f32 %v2880, 1.0
  %v2934 = vadd.f32 %v2882, 1.0
  %v2935 = vadd.f32 %v2884, 1.0
  %v2936 = vadd.f32 %v2886, 1.0
  %v2937 = vadd.f32 %v2888, 1.0
  %v2938 = vadd.f32 %v2890, 1.0
  %v2939 = vadd.f32 %v2892, 1.0
  %v2940 = vadd.f32 %v2894, 1.0
  %v2941 = vadd.f32 %v2896, 1.0
  %v2942 = vadd.f32 %v2898, 1.0
  %v2943 = vadd.f32 %v2900, 1.0
  %v2944 = vadd.f32 %v2902, 1.0
  %v2945 = vadd.f32 %v2904, 1.0
  %v2946 = vadd.f32 %v2906, 1.0
  %v2947 = vadd.f32 %v2908, 1.0
  %v2948 = vadd.f32 %v2910, 1.0
  %v2949 = vadd.f32 %v2912, 1.0
  %v2950 = vadd.f32 %v2914, 1.0
  %v2951 = vadd.f32 %v2916, 1.0
  %v2952 = vadd.f32 %v2918, 1.0
  %v2953 = vadd.f32 %v2920, 1.0
  %v2954 = vadd.f32 %v2922, 1.0
  %v2955 = vrcp.pop %v2923
  %v2956 = vmul.f32 1.0, %v2955
  %v2957 = vrcp.pop %v2924
  %v2958 = vmul.f32 1.0, %v2957
  %v2959 = vrcp.pop %v2925
  %v2960 = vmul.f32 1.0, %v2959
  %v2961 = vrcp.pop %v2926
  %v2962 = vmul.f32 1.0, %v2961
  %v2963 = vrcp.pop %v2927
  %v2964 = vmul.f32 1.0, %v2963
  %v2965 = vrcp.pop %v2928
  %v2966 = vmul.f32 1.0, %v2965
  %v2967 = vrcp.pop %v2929
  %v2968 = vmul.f32 1.0, %v2967
  %v2969 = vrcp.pop %v2930
  %v2970 = vmul.f32 1.0, %v2969
  %v2971 = vrcp.pop %v2931
  %v2972 = vmul.f32 1.0, %v2971
  %v2973 = vrcp.pop %v2932
  %v2974 = vmul.f32 1.0, %v2973
  %v2975 = vrcp.pop %v2933
  %v2976 = vmul.f32 1.0, %v2975
  %v2977 = vrcp.pop %v2934
  %v2978 = vmul.f32 1.0, %v2977
  %v2979 = vrcp.pop %v2935
  %v2980 = vmul.f32 1.0, %v2979
  %v2981 = vrcp.pop %v2936
  %v2982 = vmul.f32 1.0, %v2981
  %v2983 = vrcp.pop %v2937
  %v2984 = vmul.f32 1.0, %v2983
  %v2985 = vrcp.pop %v2938
  %v2986 = vmul.f32 1.0, %v2985
  %v2987 = vrcp.pop %v2939
  %v2988 = vmul.f32 1.0, %v2987
  %v2989 = vrcp.pop %v2940
  %v2990 = vmul.f32 1.0, %v2989
  %v2991 = vrcp.pop %v2941
  %v2992 = vmul.f32 1.0, %v2991
  %v2993 = vrcp.pop %v2942
  %v2994 = vmul.f32 1.0, %v2993
  %v2995 = vrcp.pop %v2943
  %v2996 = vmul.f32 1.0, %v2995
  %v2997 = vrcp.pop %v2944
  %v2998 = vmul.f32 1.0, %v2997
  %v2999 = vrcp.pop %v2945
  %v3000 = vmul.f32 1.0, %v2999
  %v3001 = vrcp.pop %v2946
  %v3002 = vmul.f32 1.0, %v3001
  %v3003 = vrcp.pop %v2947
  %v3004 = vmul.f32 1.0, %v3003
  %v3005 = vrcp.pop %v2948
  %v3006 = vmul.f32 1.0, %v3005
  %v3007 = vrcp.pop %v2949
  %v3008 = vmul.f32 1.0, %v3007
  %v3009 = vrcp.pop %v2950
  %v3010 = vmul.f32 1.0, %v3009
  %v3011 = vrcp.pop %v2951
  %v3012 = vmul.f32 1.0, %v3011
  %v3013 = vrcp.pop %v2952
  %v3014 = vmul.f32 1.0, %v3013
  %v3015 = vrcp.pop %v2953
  %v3016 = vmul.f32 1.0, %v3015
  %v3017 = vrcp.pop %v2954
  %v3018 = vmul.f32 1.0, %v3017
  %3051 = vrot.lane.b32.xlu0 %v2956, 1
  %v3052 = vpop.permute.xlu0 %3051
  %3053 = vrot.lane.b32.xlu0 %v2958, 1
  %v3054 = vpop.permute.xlu0 %3053
  %3055 = vrot.lane.b32.xlu0 %v2960, 1
  %v3056 = vpop.permute.xlu0 %3055
  %3057 = vrot.lane.b32.xlu0 %v2962, 1
  %v3058 = vpop.permute.xlu0 %3057
  %3059 = vrot.lane.b32.xlu0 %v2964, 1
  %v3060 = vpop.permute.xlu0 %3059
  %3061 = vrot.lane.b32.xlu0 %v2966, 1
  %v3062 = vpop.permute.xlu0 %3061
  %3063 = vrot.lane.b32.xlu0 %v2968, 1
  %v3064 = vpop.permute.xlu0 %3063
  %3065 = vrot.lane.b32.xlu0 %v2970, 1
  %v3066 = vpop.permute.xlu0 %3065
  %3067 = vrot.lane.b32.xlu0 %v2972, 1
  %v3068 = vpop.permute.xlu0 %3067
  %3069 = vrot.lane.b32.xlu0 %v2974, 1
  %v3070 = vpop.permute.xlu0 %3069
  %3071 = vrot.lane.b32.xlu0 %v2976, 1
  %v3072 = vpop.permute.xlu0 %3071
  %3073 = vrot.lane.b32.xlu0 %v2978, 1
  %v3074 = vpop.permute.xlu0 %3073
  %3075 = vrot.lane.b32.xlu0 %v2980, 1
  %v3076 = vpop.permute.xlu0 %3075
  %3077 = vrot.lane.b32.xlu0 %v2982, 1
  %v3078 = vpop.permute.xlu0 %3077
  %3079 = vrot.lane.b32.xlu0 %v2984, 1
  %v3080 = vpop.permute.xlu0 %3079
  %3081 = vrot.lane.b32.xlu0 %v2986, 1
  %v3082 = vpop.permute.xlu0 %3081
  %3083 = vrot.lane.b32.xlu0 %v2988, 1
  %v3084 = vpop.permute.xlu0 %3083
  %3085 = vrot.lane.b32.xlu0 %v2990, 1
  %v3086 = vpop.permute.xlu0 %3085
  %3087 = vrot.lane.b32.xlu0 %v2992, 1
  %v3088 = vpop.permute.xlu0 %3087
  %3089 = vrot.lane.b32.xlu0 %v2994, 1
  %v3090 = vpop.permute.xlu0 %3089
  %3091 = vrot.lane.b32.xlu0 %v2996, 1
  %v3092 = vpop.permute.xlu0 %3091
  %3093 = vrot.lane.b32.xlu0 %v2998, 1
  %v3094 = vpop.permute.xlu0 %3093
  %3095 = vrot.lane.b32.xlu0 %v3000, 1
  %v3096 = vpop.permute.xlu0 %3095
  %3097 = vrot.lane.b32.xlu0 %v3002, 1
  %v3098 = vpop.permute.xlu0 %3097
  %3099 = vrot.lane.b32.xlu0 %v3004, 1
  %v3100 = vpop.permute.xlu0 %3099
  %3101 = vrot.lane.b32.xlu0 %v3006, 1
  %v3102 = vpop.permute.xlu0 %3101
  %3103 = vrot.lane.b32.xlu0 %v3008, 1
  %v3104 = vpop.permute.xlu0 %3103
  %3105 = vrot.lane.b32.xlu0 %v3010, 1
  %v3106 = vpop.permute.xlu0 %3105
  %3107 = vrot.lane.b32.xlu0 %v3012, 1
  %v3108 = vpop.permute.xlu0 %3107
  %3109 = vrot.lane.b32.xlu0 %v3014, 1
  %v3110 = vpop.permute.xlu0 %3109
  %3111 = vrot.lane.b32.xlu0 %v3016, 1
  %v3112 = vpop.permute.xlu0 %3111
  %3113 = vrot.lane.b32.xlu0 %v3018, 1
  %v3114 = vpop.permute.xlu0 %3113
  %vm3147 = vcmask 7168
  %v3148 = vsel %vm3147, %v604, %v3052
  %v3149 = vsel %vm3147, %v606, %v3054
  %v3150 = vsel %vm3147, %v608, %v3056
  %v3151 = vsel %vm3147, %v610, %v3058
  %v3152 = vsel %vm3147, %v612, %v3060
  %v3153 = vsel %vm3147, %v614, %v3062
  %v3154 = vsel %vm3147, %v616, %v3064
  %v3155 = vsel %vm3147, %v618, %v3066
  %v3156 = vsel %vm3147, %v620, %v3068
  %v3157 = vsel %vm3147, %v622, %v3070
  %v3158 = vsel %vm3147, %v624, %v3072
  %v3159 = vsel %vm3147, %v626, %v3074
  %v3160 = vsel %vm3147, %v628, %v3076
  %v3161 = vsel %vm3147, %v630, %v3078
  %v3162 = vsel %vm3147, %v632, %v3080
  %v3163 = vsel %vm3147, %v634, %v3082
  %v3164 = vsel %vm3147, %v636, %v3084
  %v3165 = vsel %vm3147, %v638, %v3086
  %v3166 = vsel %vm3147, %v640, %v3088
  %v3167 = vsel %vm3147, %v642, %v3090
  %v3168 = vsel %vm3147, %v644, %v3092
  %v3169 = vsel %vm3147, %v646, %v3094
  %v3170 = vsel %vm3147, %v648, %v3096
  %v3171 = vsel %vm3147, %v650, %v3098
  %v3172 = vsel %vm3147, %v652, %v3100
  %v3173 = vsel %vm3147, %v654, %v3102
  %v3174 = vsel %vm3147, %v656, %v3104
  %v3175 = vsel %vm3147, %v658, %v3106
  %v3176 = vsel %vm3147, %v660, %v3108
  %v3177 = vsel %vm3147, %v662, %v3110
  %v3178 = vsel %vm3147, %v664, %v3112
  %v3179 = vsel %vm3147, %v666, %v3114
  %3180 = vst.msk [vmem:[%s11] sm:$0xff] %vm925, %v3148
  %3181 = vst.msk [vmem:[%s11 + $0x8] sm:$0xff] %vm925, %v3149
  %3182 = vst.msk [vmem:[%s11 + $0x10] sm:$0xff] %vm925, %v3150
  %3183 = vst.msk [vmem:[%s11 + $0x18] sm:$0xff] %vm925, %v3151
  %3184 = vst.msk [vmem:[%s11 + $0x20] sm:$0xff] %vm925, %v3152
  %3185 = vst.msk [vmem:[%s11 + $0x28] sm:$0xff] %vm925, %v3153
  %3186 = vst.msk [vmem:[%s11 + $0x30] sm:$0xff] %vm925, %v3154
  %3187 = vst.msk [vmem:[%s11 + $0x38] sm:$0xff] %vm925, %v3155
  %3188 = vst.msk [vmem:[%s11 + $0x40] sm:$0xff] %vm925, %v3156
  %3189 = vst.msk [vmem:[%s11 + $0x48] sm:$0xff] %vm925, %v3157
  %3190 = vst.msk [vmem:[%s11 + $0x50] sm:$0xff] %vm925, %v3158
  %3191 = vst.msk [vmem:[%s11 + $0x58] sm:$0xff] %vm925, %v3159
  %3192 = vst.msk [vmem:[%s11 + $0x60] sm:$0xff] %vm925, %v3160
  %3193 = vst.msk [vmem:[%s11 + $0x68] sm:$0xff] %vm925, %v3161
  %3194 = vst.msk [vmem:[%s11 + $0x70] sm:$0xff] %vm925, %v3162
  %3195 = vst.msk [vmem:[%s11 + $0x78] sm:$0xff] %vm925, %v3163
  %3196 = vst.msk [vmem:[%s11 + $0x80] sm:$0xff] %vm925, %v3164
  %3197 = vst.msk [vmem:[%s11 + $0x88] sm:$0xff] %vm925, %v3165
  %3198 = vst.msk [vmem:[%s11 + $0x90] sm:$0xff] %vm925, %v3166
  %3199 = vst.msk [vmem:[%s11 + $0x98] sm:$0xff] %vm925, %v3167
  %3200 = vst.msk [vmem:[%s11 + $0xa0] sm:$0xff] %vm925, %v3168
  %3201 = vst.msk [vmem:[%s11 + $0xa8] sm:$0xff] %vm925, %v3169
  %3202 = vst.msk [vmem:[%s11 + $0xb0] sm:$0xff] %vm925, %v3170
  %3203 = vst.msk [vmem:[%s11 + $0xb8] sm:$0xff] %vm925, %v3171
  %3204 = vst.msk [vmem:[%s11 + $0xc0] sm:$0xff] %vm925, %v3172
  %3205 = vst.msk [vmem:[%s11 + $0xc8] sm:$0xff] %vm925, %v3173
  %3206 = vst.msk [vmem:[%s11 + $0xd0] sm:$0xff] %vm925, %v3174
  %3207 = vst.msk [vmem:[%s11 + $0xd8] sm:$0xff] %vm925, %v3175
  %3208 = vst.msk [vmem:[%s11 + $0xe0] sm:$0xff] %vm925, %v3176
  %3209 = vst.msk [vmem:[%s11 + $0xe8] sm:$0xff] %vm925, %v3177
  %3210 = vst.msk [vmem:[%s11 + $0xf0] sm:$0xff] %vm925, %v3178
  %3211 = vst.msk [vmem:[%s11 + $0xf8] sm:$0xff] %vm925, %v3179
  // Predicated region
  $region46: #{ngp_forward.1} parent=0 // pred_check
    _
  $region47: #{ngp_forward.1} parent=0 // pred_check_branch
    %3213 = sbr.rel (0) target = $region49
  $region48: #{ngp_forward.1} parent=0 // pred_region
    _
  $region49: #{ngp_forward.1} parent=0 // pred_fallthru
    _
  // Predicated region
  $region50: #{ngp_forward.1} parent=0 // pred_check
    _
  $region51: #{ngp_forward.1} parent=0 // pred_check_branch
    %3215 = sbr.rel (0) target = $region53
  $region52: #{ngp_forward.1} parent=0 // pred_region
    _
  $region53: #{ngp_forward.1} parent=0 // pred_fallthru
    _

</llo_original>
